<compile_context>
chip_gen: v5e
topology: v5e:2x2
jax: 0.10.0
libtpu: 0.0.40
codegen_flags: <defaults>
</compile_context>

<pallas_src>
import functools
import math

import jax
import jax.numpy as jnp
import numpy as np
from jax.experimental import pallas as pl
from jax.experimental.pallas import tpu as pltpu

OUT_SIZE = 32  # fixed 32x32 output, as in the module


def _cubic_taps(in_size: int, out_size: int):
    """Per-output-row (indices, weights): PyTorch bicubic, align_corners=False."""
    A = -0.75

    def w1(t):  # |t| <= 1
        return ((A + 2.0) * t - (A + 3.0)) * t * t + 1.0

    def w2(t):  # 1 < |t| < 2
        return ((A * t - 5.0 * A) * t + 8.0 * A) * t - 4.0 * A

    scale = in_size / out_size
    taps = []
    for o in range(out_size):
        src = scale * (o + 0.5) - 0.5
        base = math.floor(src)
        t = src - base
        wts = (w2(t + 1.0), w1(t), w1(1.0 - t), w2(2.0 - t))
        idx = tuple(min(max(base + k, 0), in_size - 1) for k in (-1, 0, 1, 2))
        taps.append((idx, tuple(float(w) for w in wts)))
    return tuple(taps)


def _cubic_weight_matrix(in_size: int, out_size: int) -> jnp.ndarray:
    """(out_size, in_size) dense interpolation matrix (for the W pass / reference)."""
    m = np.zeros((out_size, in_size), np.float32)
    for o, (idx, wts) in enumerate(_cubic_taps(in_size, out_size)):
        for i, w in zip(idx, wts):
            m[o, i] += np.float32(w)
    return jnp.asarray(m)


def _bicubic_kernel(wwt_ref, x_ref, o_ref, *, taps_h, out_size):
    # wwt_ref: (W, out_size)   column-interpolation matrix (transposed), matmul dtype
    # x_ref:   (B, H, W)       block of B images, native dtype
    # o_ref:   (B, 8, 128)     lane-dense output block (32*32 = 8*128 per image)
    f32 = jnp.float32
    wwt = wwt_ref[...]  # tiny; hoisted so the MXU stationary operand is one SSA value

    for o in range(out_size):  # static unroll: 32 output rows
        (i0, i1, i2, i3), (w0, w1, w2, w3) = taps_h[o]
        # H pass: 4-tap cubic row interpolation on the VPU, f32 accumulation.
        r = x_ref[:, i0, :].astype(f32) * w0
        r = r + x_ref[:, i1, :].astype(f32) * w1
        r = r + x_ref[:, i2, :].astype(f32) * w2
        r = r + x_ref[:, i3, :].astype(f32) * w3                  # (B, W) f32

        # W pass: one (B, W) @ (W, 32) MXU matmul, batch folded into M, f32 accum.
        out_o = jnp.dot(r.astype(wwt.dtype), wwt,
                        preferred_element_type=jnp.float32)       # (B, 32) f32

        row = (o * out_size) // 128
        col = (o * out_size) % 128
        o_ref[:, row, col:col + out_size] = out_o.astype(o_ref.dtype)


def terrain_downsample_cubic(x: jnp.ndarray, out_size: int = OUT_SIZE,
                             block_images=None,
                             matmul_dtype=jnp.bfloat16) -> jnp.ndarray:
    """x: (N, C, H, W) -> (N, C, out_size, out_size), bicubic, align_corners=False.

    The column-pass matmul runs with bf16 operands / f32 accumulation by default
    (pass matmul_dtype=jnp.float32 for stricter numerics at lower MXU throughput).
    """
    N, C, H, W = x.shape
    NC = N * C
    dtype = x.dtype
    assert (out_size * out_size) % 128 == 0 and 128 % out_size == 0, \
        "lane-dense output layout requires out_size dividing 128"
    out_rows = (out_size * out_size) // 128

    taps_h = _cubic_taps(H, out_size)                                   # python consts
    wwt = _cubic_weight_matrix(W, out_size).T.astype(matmul_dtype)      # (W, out_size)
    xf = x.reshape(NC, H, W)  # metadata-only reshape, native dtype

    # ---- generation-aware block sizing -------------------------------------------
    try:
        vmem_cap = int(pltpu.get_tpu_info().vmem_capacity_bytes)
    except Exception:
        vmem_cap = 128 * 1024 * 1024
    img_bytes = H * W * x.dtype.itemsize
    out_img_bytes = out_size * out_size * x.dtype.itemsize
    # ~8 MiB input blocks on 128 MiB-VMEM chips (v5e/v6e), ~4 MiB on v7x (64 MiB).
    tgt_bytes = max(2 * 1024 * 1024, min(8 * 1024 * 1024, vmem_cap // 16))

    if block_images is None:
        B = max(1, min(1024, tgt_bytes // max(1, img_bytes)))
    else:
        B = int(block_images)
    B = max(1, min(B, NC))
    if NC >= 2:
        # >= 2 grid steps so both v7x TensorCores get work; negligible cost elsewhere.
        B = min(B, (NC + 1) // 2)
    grid = (pl.cdiv(NC, B),)

    # VMEM budget: double-buffered input + output blocks plus headroom.
    base_limit = max(32 * 1024 * 1024, min(vmem_cap // 2, 64 * 1024 * 1024))
    needed = 2 * B * img_bytes + 2 * B * out_img_bytes + (4 << 20)
    vmem_limit = int(min(max(base_limit, needed), int(vmem_cap * 0.9)))
    # TODO(synk): single images larger than the VMEM budget (e.g. 4096x4096 f32) need a
    #             W-chunk reduction grid axis instead of one (H, W) block per image.

    kern = functools.partial(_bicubic_kernel, taps_h=taps_h, out_size=out_size)

    out = pl.pallas_call(
        kern,
        out_shape=jax.ShapeDtypeStruct((NC, out_rows, 128), dtype),
        grid=grid,
        in_specs=[
            pl.BlockSpec((W, out_size), lambda b: (0, 0)),        # WwT (shared, cached)
            pl.BlockSpec((B, H, W), lambda b: (b, 0, 0)),         # B images per step
        ],
        out_specs=pl.BlockSpec((B, out_rows, 128), lambda b: (b, 0, 0)),
        compiler_params=pltpu.CompilerParams(
            dimension_semantics=("parallel",),                    # megacore on v7x
            vmem_limit_bytes=vmem_limit,
        ),
    )(wwt, xf)

    return out.reshape(N, C, out_size, out_size)


if __name__ == "__main__":
    key = jax.random.PRNGKey(0)
    k1, k2 = jax.random.split(key)

    # Test 1: 64x64 -> 32x32 downsample, NCHW f32.
    N, C, H, W = 2, 4, 64, 64
    x = jax.random.normal(k1, (N, C, H, W), dtype=jnp.float32)
    y = jax.block_until_ready(terrain_downsample_cubic(x))
    assert y.shape == (N, C, OUT_SIZE, OUT_SIZE), y.shape

    Wh = _cubic_weight_matrix(H, OUT_SIZE)
    Ww = _cubic_weight_matrix(W, OUT_SIZE)
    y_ref = jnp.einsum("oh,nchw,pw->ncop", Wh, x, Ww,
                       precision=jax.lax.Precision.HIGHEST)
    err = float(jnp.max(jnp.abs(y - y_ref)))
    mean_err = float(jnp.mean(jnp.abs(y - y_ref)))
    # bf16 MXU operands with f32 accumulation -> small deviation from exact f32.
    assert err < 5e-2, err
    assert mean_err < 5e-3, mean_err

    # Test 2: non-divisible NC, non-square input, explicit block size.
    N2, C2, H2, W2 = 3, 2, 48, 80
    x2 = jax.random.normal(k2, (N2, C2, H2, W2), dtype=jnp.float32)
    y2 = jax.block_until_ready(terrain_downsample_cubic(x2, block_images=4))
    assert y2.shape == (N2, C2, OUT_SIZE, OUT_SIZE), y2.shape

    Wh2 = _cubic_weight_matrix(H2, OUT_SIZE)
    Ww2 = _cubic_weight_matrix(W2, OUT_SIZE)
    y2_ref = jnp.einsum("oh,nchw,pw->ncop", Wh2, x2, Ww2,
                        precision=jax.lax.Precision.HIGHEST)
    err2 = float(jnp.max(jnp.abs(y2 - y2_ref)))
    assert err2 < 5e-2, err2

    print("KERNEL_OK")
</pallas_src>

<mosaic_0001>
module attributes {stable_mosaic.version = 11 : i64} {
  func.func @_bicubic_kernel(%arg0: i32, %arg1: memref<64x32xbf16, #tpu.memory_space<vmem>>, %arg2: memref<4x64x64xf32, #tpu.memory_space<vmem>>, %arg3: memref<4x8x128xf32, #tpu.memory_space<vmem>>) attributes {dimension_semantics = [#tpu.dimension_semantics<parallel>], iteration_bounds = array<i64: 2>, scalar_prefetch = 0 : i64, scratch_operands = 0 : i64, tpu.core_type = #tpu.core_type<tc>, window_params = [{pipeline_mode = #tpu.pipeline_mode<synchronous>, transform_indices = @transform_0, window_bounds = array<i64: 64, 32>}, {transform_indices = @transform_1, window_bounds = array<i64: 4, 64, 64>}, {transform_indices = @transform_2, window_bounds = array<i64: 4, 8, 128>}]} {
    %c0 = arith.constant 0 : index
    %c0_0 = arith.constant 0 : index
    %0 = vector.load %arg1[%c0, %c0_0] : memref<64x32xbf16, #tpu.memory_space<vmem>>, vector<64x32xbf16>
    %c0_1 = arith.constant 0 : index
    %c0_2 = arith.constant 0 : index
    %c0_3 = arith.constant 0 : index
    %1 = vector.load %arg2[%c0_1, %c0_2, %c0_3] : memref<4x64x64xf32, #tpu.memory_space<vmem>>, vector<4x1x64xf32>
    %2 = vector.shape_cast %1 : vector<4x1x64xf32> to vector<4x64xf32>
    %cst = arith.constant -9.375000e-02 : f32
    %3 = vector.broadcast %cst : f32 to vector<4x64xf32>
    %4 = arith.mulf %2, %3 : vector<4x64xf32>
    %c0_4 = arith.constant 0 : index
    %c0_5 = arith.constant 0 : index
    %c0_6 = arith.constant 0 : index
    %5 = vector.load %arg2[%c0_4, %c0_5, %c0_6] : memref<4x64x64xf32, #tpu.memory_space<vmem>>, vector<4x1x64xf32>
    %6 = vector.shape_cast %5 : vector<4x1x64xf32> to vector<4x64xf32>
    %cst_7 = arith.constant 5.937500e-01 : f32
    %7 = vector.broadcast %cst_7 : f32 to vector<4x64xf32>
    %8 = arith.mulf %6, %7 : vector<4x64xf32>
    %9 = arith.addf %4, %8 : vector<4x64xf32>
    %c0_8 = arith.constant 0 : index
    %c1 = arith.constant 1 : index
    %c0_9 = arith.constant 0 : index
    %10 = vector.load %arg2[%c0_8, %c1, %c0_9] : memref<4x64x64xf32, #tpu.memory_space<vmem>>, vector<4x1x64xf32>
    %11 = vector.shape_cast %10 : vector<4x1x64xf32> to vector<4x64xf32>
    %cst_10 = arith.constant 5.937500e-01 : f32
    %12 = vector.broadcast %cst_10 : f32 to vector<4x64xf32>
    %13 = arith.mulf %11, %12 : vector<4x64xf32>
    %14 = arith.addf %9, %13 : vector<4x64xf32>
    %c0_11 = arith.constant 0 : index
    %c2 = arith.constant 2 : index
    %c0_12 = arith.constant 0 : index
    %15 = vector.load %arg2[%c0_11, %c2, %c0_12] : memref<4x64x64xf32, #tpu.memory_space<vmem>>, vector<4x1x64xf32>
    %16 = vector.shape_cast %15 : vector<4x1x64xf32> to vector<4x64xf32>
    %cst_13 = arith.constant -9.375000e-02 : f32
    %17 = vector.broadcast %cst_13 : f32 to vector<4x64xf32>
    %18 = arith.mulf %16, %17 : vector<4x64xf32>
    %19 = arith.addf %14, %18 : vector<4x64xf32>
    %20 = arith.truncf %19 : vector<4x64xf32> to vector<4x64xbf16>
    %cst_14 = arith.constant dense<0.000000e+00> : vector<4x32xf32>
    %21 = tpu.matmul %20, %0, %cst_14 {dimension_numbers = #tpu.dot_dimension_numbers<[1], [0], [0], [1], [0, 0, 1, 1], [], []>} : vector<4x64xbf16>, vector<64x32xbf16>, vector<4x32xf32> -> vector<4x32xf32>
    %c0_15 = arith.constant 0 : index
    %c0_16 = arith.constant 0 : index
    %c0_17 = arith.constant 0 : index
    %22 = vector.load %arg3[%c0_15, %c0_16, %c0_17] : memref<4x8x128xf32, #tpu.memory_space<vmem>>, vector<4x1x32xf32>
    %23 = vector.shape_cast %22 : vector<4x1x32xf32> to vector<4x32xf32>
    %24 = vector.shape_cast %21 : vector<4x32xf32> to vector<4x1x32xf32>
    tpu.vector_store %arg3[%c0_15, %c0_16, %c0_17], %24 {strides = array<i32>} : memref<4x8x128xf32, #tpu.memory_space<vmem>>, vector<4x1x32xf32>,
    %c0_18 = arith.constant 0 : index
    %c1_19 = arith.constant 1 : index
    %c0_20 = arith.constant 0 : index
    %25 = vector.load %arg2[%c0_18, %c1_19, %c0_20] : memref<4x64x64xf32, #tpu.memory_space<vmem>>, vector<4x1x64xf32>
    %26 = vector.shape_cast %25 : vector<4x1x64xf32> to vector<4x64xf32>
    %cst_21 = arith.constant -9.375000e-02 : f32
    %27 = vector.broadcast %cst_21 : f32 to vector<4x64xf32>
    %28 = arith.mulf %26, %27 : vector<4x64xf32>
    %c0_22 = arith.constant 0 : index
    %c2_23 = arith.constant 2 : index
    %c0_24 = arith.constant 0 : index
    %29 = vector.load %arg2[%c0_22, %c2_23, %c0_24] : memref<4x64x64xf32, #tpu.memory_space<vmem>>, vector<4x1x64xf32>
    %30 = vector.shape_cast %29 : vector<4x1x64xf32> to vector<4x64xf32>
    %cst_25 = arith.constant 5.937500e-01 : f32
    %31 = vector.broadcast %cst_25 : f32 to vector<4x64xf32>
    %32 = arith.mulf %30, %31 : vector<4x64xf32>
    %33 = arith.addf %28, %32 : vector<4x64xf32>
    %c0_26 = arith.constant 0 : index
    %c3 = arith.constant 3 : index
    %c0_27 = arith.constant 0 : index
    %34 = vector.load %arg2[%c0_26, %c3, %c0_27] : memref<4x64x64xf32, #tpu.memory_space<vmem>>, vector<4x1x64xf32>
    %35 = vector.shape_cast %34 : vector<4x1x64xf32> to vector<4x64xf32>
    %cst_28 = arith.constant 5.937500e-01 : f32
    %36 = vector.broadcast %cst_28 : f32 to vector<4x64xf32>
    %37 = arith.mulf %35, %36 : vector<4x64xf32>
    %38 = arith.addf %33, %37 : vector<4x64xf32>
    %c0_29 = arith.constant 0 : index
    %c4 = arith.constant 4 : index
    %c0_30 = arith.constant 0 : index
    %39 = vector.load %arg2[%c0_29, %c4, %c0_30] : memref<4x64x64xf32, #tpu.memory_space<vmem>>, vector<4x1x64xf32>
    %40 = vector.shape_cast %39 : vector<4x1x64xf32> to vector<4x64xf32>
    %cst_31 = arith.constant -9.375000e-02 : f32
    %41 = vector.broadcast %cst_31 : f32 to vector<4x64xf32>
    %42 = arith.mulf %40, %41 : vector<4x64xf32>
    %43 = arith.addf %38, %42 : vector<4x64xf32>
    %44 = arith.truncf %43 : vector<4x64xf32> to vector<4x64xbf16>
    %cst_32 = arith.constant dense<0.000000e+00> : vector<4x32xf32>
    %45 = tpu.matmul %44, %0, %cst_32 {dimension_numbers = #tpu.dot_dimension_numbers<[1], [0], [0], [1], [0, 0, 1, 1], [], []>} : vector<4x64xbf16>, vector<64x32xbf16>, vector<4x32xf32> -> vector<4x32xf32>
    %c0_33 = arith.constant 0 : index
    %c0_34 = arith.constant 0 : index
    %c32 = arith.constant 32 : index
    %46 = vector.load %arg3[%c0_33, %c0_34, %c32] : memref<4x8x128xf32, #tpu.memory_space<vmem>>, vector<4x1x32xf32>
    %47 = vector.shape_cast %46 : vector<4x1x32xf32> to vector<4x32xf32>
    %48 = vector.shape_cast %45 : vector<4x32xf32> to vector<4x1x32xf32>
    tpu.vector_store %arg3[%c0_33, %c0_34, %c32], %48 {strides = array<i32>} : memref<4x8x128xf32, #tpu.memory_space<vmem>>, vector<4x1x32xf32>,
    %c0_35 = arith.constant 0 : index
    %c3_36 = arith.constant 3 : index
    %c0_37 = arith.constant 0 : index
    %49 = vector.load %arg2[%c0_35, %c3_36, %c0_37] : memref<4x64x64xf32, #tpu.memory_space<vmem>>, vector<4x1x64xf32>
    %50 = vector.shape_cast %49 : vector<4x1x64xf32> to vector<4x64xf32>
    %cst_38 = arith.constant -9.375000e-02 : f32
    %51 = vector.broadcast %cst_38 : f32 to vector<4x64xf32>
    %52 = arith.mulf %50, %51 : vector<4x64xf32>
    %c0_39 = arith.constant 0 : index
    %c4_40 = arith.constant 4 : index
    %c0_41 = arith.constant 0 : index
    %53 = vector.load %arg2[%c0_39, %c4_40, %c0_41] : memref<4x64x64xf32, #tpu.memory_space<vmem>>, vector<4x1x64xf32>
    %54 = vector.shape_cast %53 : vector<4x1x64xf32> to vector<4x64xf32>
    %cst_42 = arith.constant 5.937500e-01 : f32
    %55 = vector.broadcast %cst_42 : f32 to vector<4x64xf32>
    %56 = arith.mulf %54, %55 : vector<4x64xf32>
    %57 = arith.addf %52, %56 : vector<4x64xf32>
    %c0_43 = arith.constant 0 : index
    %c5 = arith.constant 5 : index
    %c0_44 = arith.constant 0 : index
    %58 = vector.load %arg2[%c0_43, %c5, %c0_44] : memref<4x64x64xf32, #tpu.memory_space<vmem>>, vector<4x1x64xf32>
    %59 = vector.shape_cast %58 : vector<4x1x64xf32> to vector<4x64xf32>
    %cst_45 = arith.constant 5.937500e-01 : f32
    %60 = vector.broadcast %cst_45 : f32 to vector<4x64xf32>
    %61 = arith.mulf %59, %60 : vector<4x64xf32>
    %62 = arith.addf %57, %61 : vector<4x64xf32>
    %c0_46 = arith.constant 0 : index
    %c6 = arith.constant 6 : index
    %c0_47 = arith.constant 0 : index
    %63 = vector.load %arg2[%c0_46, %c6, %c0_47] : memref<4x64x64xf32, #tpu.memory_space<vmem>>, vector<4x1x64xf32>
    %64 = vector.shape_cast %63 : vector<4x1x64xf32> to vector<4x64xf32>
    %cst_48 = arith.constant -9.375000e-02 : f32
    %65 = vector.broadcast %cst_48 : f32 to vector<4x64xf32>
    %66 = arith.mulf %64, %65 : vector<4x64xf32>
    %67 = arith.addf %62, %66 : vector<4x64xf32>
    %68 = arith.truncf %67 : vector<4x64xf32> to vector<4x64xbf16>
    %cst_49 = arith.constant dense<0.000000e+00> : vector<4x32xf32>
    %69 = tpu.matmul %68, %0, %cst_49 {dimension_numbers = #tpu.dot_dimension_numbers<[1], [0], [0], [1], [0, 0, 1, 1], [], []>} : vector<4x64xbf16>, vector<64x32xbf16>, vector<4x32xf32> -> vector<4x32xf32>
    %c0_50 = arith.constant 0 : index
    %c0_51 = arith.constant 0 : index
    %c64 = arith.constant 64 : index
    %70 = vector.load %arg3[%c0_50, %c0_51, %c64] : memref<4x8x128xf32, #tpu.memory_space<vmem>>, vector<4x1x32xf32>
    %71 = vector.shape_cast %70 : vector<4x1x32xf32> to vector<4x32xf32>
    %72 = vector.shape_cast %69 : vector<4x32xf32> to vector<4x1x32xf32>
    tpu.vector_store %arg3[%c0_50, %c0_51, %c64], %72 {strides = array<i32>} : memref<4x8x128xf32, #tpu.memory_space<vmem>>, vector<4x1x32xf32>,
    %c0_52 = arith.constant 0 : index
    %c5_53 = arith.constant 5 : index
    %c0_54 = arith.constant 0 : index
    %73 = vector.load %arg2[%c0_52, %c5_53, %c0_54] : memref<4x64x64xf32, #tpu.memory_space<vmem>>, vector<4x1x64xf32>
    %74 = vector.shape_cast %73 : vector<4x1x64xf32> to vector<4x64xf32>
    %cst_55 = arith.constant -9.375000e-02 : f32
    %75 = vector.broadcast %cst_55 : f32 to vector<4x64xf32>
    %76 = arith.mulf %74, %75 : vector<4x64xf32>
    %c0_56 = arith.constant 0 : index
    %c6_57 = arith.constant 6 : index
    %c0_58 = arith.constant 0 : index
    %77 = vector.load %arg2[%c0_56, %c6_57, %c0_58] : memref<4x64x64xf32, #tpu.memory_space<vmem>>, vector<4x1x64xf32>
    %78 = vector.shape_cast %77 : vector<4x1x64xf32> to vector<4x64xf32>
    %cst_59 = arith.constant 5.937500e-01 : f32
    %79 = vector.broadcast %cst_59 : f32 to vector<4x64xf32>
    %80 = arith.mulf %78, %79 : vector<4x64xf32>
    %81 = arith.addf %76, %80 : vector<4x64xf32>
    %c0_60 = arith.constant 0 : index
    %c7 = arith.constant 7 : index
    %c0_61 = arith.constant 0 : index
    %82 = vector.load %arg2[%c0_60, %c7, %c0_61] : memref<4x64x64xf32, #tpu.memory_space<vmem>>, vector<4x1x64xf32>
    %83 = vector.shape_cast %82 : vector<4x1x64xf32> to vector<4x64xf32>
    %cst_62 = arith.constant 5.937500e-01 : f32
    %84 = vector.broadcast %cst_62 : f32 to vector<4x64xf32>
    %85 = arith.mulf %83, %84 : vector<4x64xf32>
    %86 = arith.addf %81, %85 : vector<4x64xf32>
    %c0_63 = arith.constant 0 : index
    %c8 = arith.constant 8 : index
    %c0_64 = arith.constant 0 : index
    %87 = vector.load %arg2[%c0_63, %c8, %c0_64] : memref<4x64x64xf32, #tpu.memory_space<vmem>>, vector<4x1x64xf32>
    %88 = vector.shape_cast %87 : vector<4x1x64xf32> to vector<4x64xf32>
    %cst_65 = arith.constant -9.375000e-02 : f32
    %89 = vector.broadcast %cst_65 : f32 to vector<4x64xf32>
    %90 = arith.mulf %88, %89 : vector<4x64xf32>
    %91 = arith.addf %86, %90 : vector<4x64xf32>
    %92 = arith.truncf %91 : vector<4x64xf32> to vector<4x64xbf16>
    %cst_66 = arith.constant dense<0.000000e+00> : vector<4x32xf32>
    %93 = tpu.matmul %92, %0, %cst_66 {dimension_numbers = #tpu.dot_dimension_numbers<[1], [0], [0], [1], [0, 0, 1, 1], [], []>} : vector<4x64xbf16>, vector<64x32xbf16>, vector<4x32xf32> -> vector<4x32xf32>
    %c0_67 = arith.constant 0 : index
    %c0_68 = arith.constant 0 : index
    %c96 = arith.constant 96 : index
    %94 = vector.load %arg3[%c0_67, %c0_68, %c96] : memref<4x8x128xf32, #tpu.memory_space<vmem>>, vector<4x1x32xf32>
    %95 = vector.shape_cast %94 : vector<4x1x32xf32> to vector<4x32xf32>
    %96 = vector.shape_cast %93 : vector<4x32xf32> to vector<4x1x32xf32>
    tpu.vector_store %arg3[%c0_67, %c0_68, %c96], %96 {strides = array<i32>} : memref<4x8x128xf32, #tpu.memory_space<vmem>>, vector<4x1x32xf32>,
    %c0_69 = arith.constant 0 : index
    %c7_70 = arith.constant 7 : index
    %c0_71 = arith.constant 0 : index
    %97 = vector.load %arg2[%c0_69, %c7_70, %c0_71] : memref<4x64x64xf32, #tpu.memory_space<vmem>>, vector<4x1x64xf32>
    %98 = vector.shape_cast %97 : vector<4x1x64xf32> to vector<4x64xf32>
    %cst_72 = arith.constant -9.375000e-02 : f32
    %99 = vector.broadcast %cst_72 : f32 to vector<4x64xf32>
    %100 = arith.mulf %98, %99 : vector<4x64xf32>
    %c0_73 = arith.constant 0 : index
    %c8_74 = arith.constant 8 : index
    %c0_75 = arith.constant 0 : index
    %101 = vector.load %arg2[%c0_73, %c8_74, %c0_75] : memref<4x64x64xf32, #tpu.memory_space<vmem>>, vector<4x1x64xf32>
    %102 = vector.shape_cast %101 : vector<4x1x64xf32> to vector<4x64xf32>
    %cst_76 = arith.constant 5.937500e-01 : f32
    %103 = vector.broadcast %cst_76 : f32 to vector<4x64xf32>
    %104 = arith.mulf %102, %103 : vector<4x64xf32>
    %105 = arith.addf %100, %104 : vector<4x64xf32>
    %c0_77 = arith.constant 0 : index
    %c9 = arith.constant 9 : index
    %c0_78 = arith.constant 0 : index
    %106 = vector.load %arg2[%c0_77, %c9, %c0_78] : memref<4x64x64xf32, #tpu.memory_space<vmem>>, vector<4x1x64xf32>
    %107 = vector.shape_cast %106 : vector<4x1x64xf32> to vector<4x64xf32>
    %cst_79 = arith.constant 5.937500e-01 : f32
    %108 = vector.broadcast %cst_79 : f32 to vector<4x64xf32>
    %109 = arith.mulf %107, %108 : vector<4x64xf32>
    %110 = arith.addf %105, %109 : vector<4x64xf32>
    %c0_80 = arith.constant 0 : index
    %c10 = arith.constant 10 : index
    %c0_81 = arith.constant 0 : index
    %111 = vector.load %arg2[%c0_80, %c10, %c0_81] : memref<4x64x64xf32, #tpu.memory_space<vmem>>, vector<4x1x64xf32>
    %112 = vector.shape_cast %111 : vector<4x1x64xf32> to vector<4x64xf32>
    %cst_82 = arith.constant -9.375000e-02 : f32
    %113 = vector.broadcast %cst_82 : f32 to vector<4x64xf32>
    %114 = arith.mulf %112, %113 : vector<4x64xf32>
    %115 = arith.addf %110, %114 : vector<4x64xf32>
    %116 = arith.truncf %115 : vector<4x64xf32> to vector<4x64xbf16>
    %cst_83 = arith.constant dense<0.000000e+00> : vector<4x32xf32>
    %117 = tpu.matmul %116, %0, %cst_83 {dimension_numbers = #tpu.dot_dimension_numbers<[1], [0], [0], [1], [0, 0, 1, 1], [], []>} : vector<4x64xbf16>, vector<64x32xbf16>, vector<4x32xf32> -> vector<4x32xf32>
    %c0_84 = arith.constant 0 : index
    %c1_85 = arith.constant 1 : index
    %c0_86 = arith.constant 0 : index
    %118 = vector.load %arg3[%c0_84, %c1_85, %c0_86] : memref<4x8x128xf32, #tpu.memory_space<vmem>>, vector<4x1x32xf32>
    %119 = vector.shape_cast %118 : vector<4x1x32xf32> to vector<4x32xf32>
    %120 = vector.shape_cast %117 : vector<4x32xf32> to vector<4x1x32xf32>
    tpu.vector_store %arg3[%c0_84, %c1_85, %c0_86], %120 {strides = array<i32>} : memref<4x8x128xf32, #tpu.memory_space<vmem>>, vector<4x1x32xf32>,
    %c0_87 = arith.constant 0 : index
    %c9_88 = arith.constant 9 : index
    %c0_89 = arith.constant 0 : index
    %121 = vector.load %arg2[%c0_87, %c9_88, %c0_89] : memref<4x64x64xf32, #tpu.memory_space<vmem>>, vector<4x1x64xf32>
    %122 = vector.shape_cast %121 : vector<4x1x64xf32> to vector<4x64xf32>
    %cst_90 = arith.constant -9.375000e-02 : f32
    %123 = vector.broadcast %cst_90 : f32 to vector<4x64xf32>
    %124 = arith.mulf %122, %123 : vector<4x64xf32>
    %c0_91 = arith.constant 0 : index
    %c10_92 = arith.constant 10 : index
    %c0_93 = arith.constant 0 : index
    %125 = vector.load %arg2[%c0_91, %c10_92, %c0_93] : memref<4x64x64xf32, #tpu.memory_space<vmem>>, vector<4x1x64xf32>
    %126 = vector.shape_cast %125 : vector<4x1x64xf32> to vector<4x64xf32>
    %cst_94 = arith.constant 5.937500e-01 : f32
    %127 = vector.broadcast %cst_94 : f32 to vector<4x64xf32>
    %128 = arith.mulf %126, %127 : vector<4x64xf32>
    %129 = arith.addf %124, %128 : vector<4x64xf32>
    %c0_95 = arith.constant 0 : index
    %c11 = arith.constant 11 : index
    %c0_96 = arith.constant 0 : index
    %130 = vector.load %arg2[%c0_95, %c11, %c0_96] : memref<4x64x64xf32, #tpu.memory_space<vmem>>, vector<4x1x64xf32>
    %131 = vector.shape_cast %130 : vector<4x1x64xf32> to vector<4x64xf32>
    %cst_97 = arith.constant 5.937500e-01 : f32
    %132 = vector.broadcast %cst_97 : f32 to vector<4x64xf32>
    %133 = arith.mulf %131, %132 : vector<4x64xf32>
    %134 = arith.addf %129, %133 : vector<4x64xf32>
    %c0_98 = arith.constant 0 : index
    %c12 = arith.constant 12 : index
    %c0_99 = arith.constant 0 : index
    %135 = vector.load %arg2[%c0_98, %c12, %c0_99] : memref<4x64x64xf32, #tpu.memory_space<vmem>>, vector<4x1x64xf32>
    %136 = vector.shape_cast %135 : vector<4x1x64xf32> to vector<4x64xf32>
    %cst_100 = arith.constant -9.375000e-02 : f32
    %137 = vector.broadcast %cst_100 : f32 to vector<4x64xf32>
    %138 = arith.mulf %136, %137 : vector<4x64xf32>
    %139 = arith.addf %134, %138 : vector<4x64xf32>
    %140 = arith.truncf %139 : vector<4x64xf32> to vector<4x64xbf16>
    %cst_101 = arith.constant dense<0.000000e+00> : vector<4x32xf32>
    %141 = tpu.matmul %140, %0, %cst_101 {dimension_numbers = #tpu.dot_dimension_numbers<[1], [0], [0], [1], [0, 0, 1, 1], [], []>} : vector<4x64xbf16>, vector<64x32xbf16>, vector<4x32xf32> -> vector<4x32xf32>
    %c0_102 = arith.constant 0 : index
    %c1_103 = arith.constant 1 : index
    %c32_104 = arith.constant 32 : index
    %142 = vector.load %arg3[%c0_102, %c1_103, %c32_104] : memref<4x8x128xf32, #tpu.memory_space<vmem>>, vector<4x1x32xf32>
    %143 = vector.shape_cast %142 : vector<4x1x32xf32> to vector<4x32xf32>
    %144 = vector.shape_cast %141 : vector<4x32xf32> to vector<4x1x32xf32>
    tpu.vector_store %arg3[%c0_102, %c1_103, %c32_104], %144 {strides = array<i32>} : memref<4x8x128xf32, #tpu.memory_space<vmem>>, vector<4x1x32xf32>,
    %c0_105 = arith.constant 0 : index
    %c11_106 = arith.constant 11 : index
    %c0_107 = arith.constant 0 : index
    %145 = vector.load %arg2[%c0_105, %c11_106, %c0_107] : memref<4x64x64xf32, #tpu.memory_space<vmem>>, vector<4x1x64xf32>
    %146 = vector.shape_cast %145 : vector<4x1x64xf32> to vector<4x64xf32>
    %cst_108 = arith.constant -9.375000e-02 : f32
    %147 = vector.broadcast %cst_108 : f32 to vector<4x64xf32>
    %148 = arith.mulf %146, %147 : vector<4x64xf32>
    %c0_109 = arith.constant 0 : index
    %c12_110 = arith.constant 12 : index
    %c0_111 = arith.constant 0 : index
    %149 = vector.load %arg2[%c0_109, %c12_110, %c0_111] : memref<4x64x64xf32, #tpu.memory_space<vmem>>, vector<4x1x64xf32>
    %150 = vector.shape_cast %149 : vector<4x1x64xf32> to vector<4x64xf32>
    %cst_112 = arith.constant 5.937500e-01 : f32
    %151 = vector.broadcast %cst_112 : f32 to vector<4x64xf32>
    %152 = arith.mulf %150, %151 : vector<4x64xf32>
    %153 = arith.addf %148, %152 : vector<4x64xf32>
    %c0_113 = arith.constant 0 : index
    %c13 = arith.constant 13 : index
    %c0_114 = arith.constant 0 : index
    %154 = vector.load %arg2[%c0_113, %c13, %c0_114] : memref<4x64x64xf32, #tpu.memory_space<vmem>>, vector<4x1x64xf32>
    %155 = vector.shape_cast %154 : vector<4x1x64xf32> to vector<4x64xf32>
    %cst_115 = arith.constant 5.937500e-01 : f32
    %156 = vector.broadcast %cst_115 : f32 to vector<4x64xf32>
    %157 = arith.mulf %155, %156 : vector<4x64xf32>
    %158 = arith.addf %153, %157 : vector<4x64xf32>
    %c0_116 = arith.constant 0 : index
    %c14 = arith.constant 14 : index
    %c0_117 = arith.constant 0 : index
    %159 = vector.load %arg2[%c0_116, %c14, %c0_117] : memref<4x64x64xf32, #tpu.memory_space<vmem>>, vector<4x1x64xf32>
    %160 = vector.shape_cast %159 : vector<4x1x64xf32> to vector<4x64xf32>
    %cst_118 = arith.constant -9.375000e-02 : f32
    %161 = vector.broadcast %cst_118 : f32 to vector<4x64xf32>
    %162 = arith.mulf %160, %161 : vector<4x64xf32>
    %163 = arith.addf %158, %162 : vector<4x64xf32>
    %164 = arith.truncf %163 : vector<4x64xf32> to vector<4x64xbf16>
    %cst_119 = arith.constant dense<0.000000e+00> : vector<4x32xf32>
    %165 = tpu.matmul %164, %0, %cst_119 {dimension_numbers = #tpu.dot_dimension_numbers<[1], [0], [0], [1], [0, 0, 1, 1], [], []>} : vector<4x64xbf16>, vector<64x32xbf16>, vector<4x32xf32> -> vector<4x32xf32>
    %c0_120 = arith.constant 0 : index
    %c1_121 = arith.constant 1 : index
    %c64_122 = arith.constant 64 : index
    %166 = vector.load %arg3[%c0_120, %c1_121, %c64_122] : memref<4x8x128xf32, #tpu.memory_space<vmem>>, vector<4x1x32xf32>
    %167 = vector.shape_cast %166 : vector<4x1x32xf32> to vector<4x32xf32>
    %168 = vector.shape_cast %165 : vector<4x32xf32> to vector<4x1x32xf32>
    tpu.vector_store %arg3[%c0_120, %c1_121, %c64_122], %168 {strides = array<i32>} : memref<4x8x128xf32, #tpu.memory_space<vmem>>, vector<4x1x32xf32>,
    %c0_123 = arith.constant 0 : index
    %c13_124 = arith.constant 13 : index
    %c0_125 = arith.constant 0 : index
    %169 = vector.load %arg2[%c0_123, %c13_124, %c0_125] : memref<4x64x64xf32, #tpu.memory_space<vmem>>, vector<4x1x64xf32>
    %170 = vector.shape_cast %169 : vector<4x1x64xf32> to vector<4x64xf32>
    %cst_126 = arith.constant -9.375000e-02 : f32
    %171 = vector.broadcast %cst_126 : f32 to vector<4x64xf32>
    %172 = arith.mulf %170, %171 : vector<4x64xf32>
    %c0_127 = arith.constant 0 : index
    %c14_128 = arith.constant 14 : index
    %c0_129 = arith.constant 0 : index
    %173 = vector.load %arg2[%c0_127, %c14_128, %c0_129] : memref<4x64x64xf32, #tpu.memory_space<vmem>>, vector<4x1x64xf32>
    %174 = vector.shape_cast %173 : vector<4x1x64xf32> to vector<4x64xf32>
    %cst_130 = arith.constant 5.937500e-01 : f32
    %175 = vector.broadcast %cst_130 : f32 to vector<4x64xf32>
    %176 = arith.mulf %174, %175 : vector<4x64xf32>
    %177 = arith.addf %172, %176 : vector<4x64xf32>
    %c0_131 = arith.constant 0 : index
    %c15 = arith.constant 15 : index
    %c0_132 = arith.constant 0 : index
    %178 = vector.load %arg2[%c0_131, %c15, %c0_132] : memref<4x64x64xf32, #tpu.memory_space<vmem>>, vector<4x1x64xf32>
    %179 = vector.shape_cast %178 : vector<4x1x64xf32> to vector<4x64xf32>
    %cst_133 = arith.constant 5.937500e-01 : f32
    %180 = vector.broadcast %cst_133 : f32 to vector<4x64xf32>
    %181 = arith.mulf %179, %180 : vector<4x64xf32>
    %182 = arith.addf %177, %181 : vector<4x64xf32>
    %c0_134 = arith.constant 0 : index
    %c16 = arith.constant 16 : index
    %c0_135 = arith.constant 0 : index
    %183 = vector.load %arg2[%c0_134, %c16, %c0_135] : memref<4x64x64xf32, #tpu.memory_space<vmem>>, vector<4x1x64xf32>
    %184 = vector.shape_cast %183 : vector<4x1x64xf32> to vector<4x64xf32>
    %cst_136 = arith.constant -9.375000e-02 : f32
    %185 = vector.broadcast %cst_136 : f32 to vector<4x64xf32>
    %186 = arith.mulf %184, %185 : vector<4x64xf32>
    %187 = arith.addf %182, %186 : vector<4x64xf32>
    %188 = arith.truncf %187 : vector<4x64xf32> to vector<4x64xbf16>
    %cst_137 = arith.constant dense<0.000000e+00> : vector<4x32xf32>
    %189 = tpu.matmul %188, %0, %cst_137 {dimension_numbers = #tpu.dot_dimension_numbers<[1], [0], [0], [1], [0, 0, 1, 1], [], []>} : vector<4x64xbf16>, vector<64x32xbf16>, vector<4x32xf32> -> vector<4x32xf32>
    %c0_138 = arith.constant 0 : index
    %c1_139 = arith.constant 1 : index
    %c96_140 = arith.constant 96 : index
    %190 = vector.load %arg3[%c0_138, %c1_139, %c96_140] : memref<4x8x128xf32, #tpu.memory_space<vmem>>, vector<4x1x32xf32>
    %191 = vector.shape_cast %190 : vector<4x1x32xf32> to vector<4x32xf32>
    %192 = vector.shape_cast %189 : vector<4x32xf32> to vector<4x1x32xf32>
    tpu.vector_store %arg3[%c0_138, %c1_139, %c96_140], %192 {strides = array<i32>} : memref<4x8x128xf32, #tpu.memory_space<vmem>>, vector<4x1x32xf32>,
    %c0_141 = arith.constant 0 : index
    %c15_142 = arith.constant 15 : index
    %c0_143 = arith.constant 0 : index
    %193 = vector.load %arg2[%c0_141, %c15_142, %c0_143] : memref<4x64x64xf32, #tpu.memory_space<vmem>>, vector<4x1x64xf32>
    %194 = vector.shape_cast %193 : vector<4x1x64xf32> to vector<4x64xf32>
    %cst_144 = arith.constant -9.375000e-02 : f32
    %195 = vector.broadcast %cst_144 : f32 to vector<4x64xf32>
    %196 = arith.mulf %194, %195 : vector<4x64xf32>
    %c0_145 = arith.constant 0 : index
    %c16_146 = arith.constant 16 : index
    %c0_147 = arith.constant 0 : index
    %197 = vector.load %arg2[%c0_145, %c16_146, %c0_147] : memref<4x64x64xf32, #tpu.memory_space<vmem>>, vector<4x1x64xf32>
    %198 = vector.shape_cast %197 : vector<4x1x64xf32> to vector<4x64xf32>
    %cst_148 = arith.constant 5.937500e-01 : f32
    %199 = vector.broadcast %cst_148 : f32 to vector<4x64xf32>
    %200 = arith.mulf %198, %199 : vector<4x64xf32>
    %201 = arith.addf %196, %200 : vector<4x64xf32>
    %c0_149 = arith.constant 0 : index
    %c17 = arith.constant 17 : index
    %c0_150 = arith.constant 0 : index
    %202 = vector.load %arg2[%c0_149, %c17, %c0_150] : memref<4x64x64xf32, #tpu.memory_space<vmem>>, vector<4x1x64xf32>
    %203 = vector.shape_cast %202 : vector<4x1x64xf32> to vector<4x64xf32>
    %cst_151 = arith.constant 5.937500e-01 : f32
    %204 = vector.broadcast %cst_151 : f32 to vector<4x64xf32>
    %205 = arith.mulf %203, %204 : vector<4x64xf32>
    %206 = arith.addf %201, %205 : vector<4x64xf32>
    %c0_152 = arith.constant 0 : index
    %c18 = arith.constant 18 : index
    %c0_153 = arith.constant 0 : index
    %207 = vector.load %arg2[%c0_152, %c18, %c0_153] : memref<4x64x64xf32, #tpu.memory_space<vmem>>, vector<4x1x64xf32>
    %208 = vector.shape_cast %207 : vector<4x1x64xf32> to vector<4x64xf32>
    %cst_154 = arith.constant -9.375000e-02 : f32
    %209 = vector.broadcast %cst_154 : f32 to vector<4x64xf32>
    %210 = arith.mulf %208, %209 : vector<4x64xf32>
    %211 = arith.addf %206, %210 : vector<4x64xf32>
    %212 = arith.truncf %211 : vector<4x64xf32> to vector<4x64xbf16>
    %cst_155 = arith.constant dense<0.000000e+00> : vector<4x32xf32>
    %213 = tpu.matmul %212, %0, %cst_155 {dimension_numbers = #tpu.dot_dimension_numbers<[1], [0], [0], [1], [0, 0, 1, 1], [], []>} : vector<4x64xbf16>, vector<64x32xbf16>, vector<4x32xf32> -> vector<4x32xf32>
    %c0_156 = arith.constant 0 : index
    %c2_157 = arith.constant 2 : index
    %c0_158 = arith.constant 0 : index
    %214 = vector.load %arg3[%c0_156, %c2_157, %c0_158] : memref<4x8x128xf32, #tpu.memory_space<vmem>>, vector<4x1x32xf32>
    %215 = vector.shape_cast %214 : vector<4x1x32xf32> to vector<4x32xf32>
    %216 = vector.shape_cast %213 : vector<4x32xf32> to vector<4x1x32xf32>
    tpu.vector_store %arg3[%c0_156, %c2_157, %c0_158], %216 {strides = array<i32>} : memref<4x8x128xf32, #tpu.memory_space<vmem>>, vector<4x1x32xf32>,
    %c0_159 = arith.constant 0 : index
    %c17_160 = arith.constant 17 : index
    %c0_161 = arith.constant 0 : index
    %217 = vector.load %arg2[%c0_159, %c17_160, %c0_161] : memref<4x64x64xf32, #tpu.memory_space<vmem>>, vector<4x1x64xf32>
    %218 = vector.shape_cast %217 : vector<4x1x64xf32> to vector<4x64xf32>
    %cst_162 = arith.constant -9.375000e-02 : f32
    %219 = vector.broadcast %cst_162 : f32 to vector<4x64xf32>
    %220 = arith.mulf %218, %219 : vector<4x64xf32>
    %c0_163 = arith.constant 0 : index
    %c18_164 = arith.constant 18 : index
    %c0_165 = arith.constant 0 : index
    %221 = vector.load %arg2[%c0_163, %c18_164, %c0_165] : memref<4x64x64xf32, #tpu.memory_space<vmem>>, vector<4x1x64xf32>
    %222 = vector.shape_cast %221 : vector<4x1x64xf32> to vector<4x64xf32>
    %cst_166 = arith.constant 5.937500e-01 : f32
    %223 = vector.broadcast %cst_166 : f32 to vector<4x64xf32>
    %224 = arith.mulf %222, %223 : vector<4x64xf32>
    %225 = arith.addf %220, %224 : vector<4x64xf32>
    %c0_167 = arith.constant 0 : index
    %c19 = arith.constant 19 : index
    %c0_168 = arith.constant 0 : index
    %226 = vector.load %arg2[%c0_167, %c19, %c0_168] : memref<4x64x64xf32, #tpu.memory_space<vmem>>, vector<4x1x64xf32>
    %227 = vector.shape_cast %226 : vector<4x1x64xf32> to vector<4x64xf32>
    %cst_169 = arith.constant 5.937500e-01 : f32
    %228 = vector.broadcast %cst_169 : f32 to vector<4x64xf32>
    %229 = arith.mulf %227, %228 : vector<4x64xf32>
    %230 = arith.addf %225, %229 : vector<4x64xf32>
    %c0_170 = arith.constant 0 : index
    %c20 = arith.constant 20 : index
    %c0_171 = arith.constant 0 : index
    %231 = vector.load %arg2[%c0_170, %c20, %c0_171] : memref<4x64x64xf32, #tpu.memory_space<vmem>>, vector<4x1x64xf32>
    %232 = vector.shape_cast %231 : vector<4x1x64xf32> to vector<4x64xf32>
    %cst_172 = arith.constant -9.375000e-02 : f32
    %233 = vector.broadcast %cst_172 : f32 to vector<4x64xf32>
    %234 = arith.mulf %232, %233 : vector<4x64xf32>
    %235 = arith.addf %230, %234 : vector<4x64xf32>
    %236 = arith.truncf %235 : vector<4x64xf32> to vector<4x64xbf16>
    %cst_173 = arith.constant dense<0.000000e+00> : vector<4x32xf32>
    %237 = tpu.matmul %236, %0, %cst_173 {dimension_numbers = #tpu.dot_dimension_numbers<[1], [0], [0], [1], [0, 0, 1, 1], [], []>} : vector<4x64xbf16>, vector<64x32xbf16>, vector<4x32xf32> -> vector<4x32xf32>
    %c0_174 = arith.constant 0 : index
    %c2_175 = arith.constant 2 : index
    %c32_176 = arith.constant 32 : index
    %238 = vector.load %arg3[%c0_174, %c2_175, %c32_176] : memref<4x8x128xf32, #tpu.memory_space<vmem>>, vector<4x1x32xf32>
    %239 = vector.shape_cast %238 : vector<4x1x32xf32> to vector<4x32xf32>
    %240 = vector.shape_cast %237 : vector<4x32xf32> to vector<4x1x32xf32>
    tpu.vector_store %arg3[%c0_174, %c2_175, %c32_176], %240 {strides = array<i32>} : memref<4x8x128xf32, #tpu.memory_space<vmem>>, vector<4x1x32xf32>,
    %c0_177 = arith.constant 0 : index
    %c19_178 = arith.constant 19 : index
    %c0_179 = arith.constant 0 : index
    %241 = vector.load %arg2[%c0_177, %c19_178, %c0_179] : memref<4x64x64xf32, #tpu.memory_space<vmem>>, vector<4x1x64xf32>
    %242 = vector.shape_cast %241 : vector<4x1x64xf32> to vector<4x64xf32>
    %cst_180 = arith.constant -9.375000e-02 : f32
    %243 = vector.broadcast %cst_180 : f32 to vector<4x64xf32>
    %244 = arith.mulf %242, %243 : vector<4x64xf32>
    %c0_181 = arith.constant 0 : index
    %c20_182 = arith.constant 20 : index
    %c0_183 = arith.constant 0 : index
    %245 = vector.load %arg2[%c0_181, %c20_182, %c0_183] : memref<4x64x64xf32, #tpu.memory_space<vmem>>, vector<4x1x64xf32>
    %246 = vector.shape_cast %245 : vector<4x1x64xf32> to vector<4x64xf32>
    %cst_184 = arith.constant 5.937500e-01 : f32
    %247 = vector.broadcast %cst_184 : f32 to vector<4x64xf32>
    %248 = arith.mulf %246, %247 : vector<4x64xf32>
    %249 = arith.addf %244, %248 : vector<4x64xf32>
    %c0_185 = arith.constant 0 : index
    %c21 = arith.constant 21 : index
    %c0_186 = arith.constant 0 : index
    %250 = vector.load %arg2[%c0_185, %c21, %c0_186] : memref<4x64x64xf32, #tpu.memory_space<vmem>>, vector<4x1x64xf32>
    %251 = vector.shape_cast %250 : vector<4x1x64xf32> to vector<4x64xf32>
    %cst_187 = arith.constant 5.937500e-01 : f32
    %252 = vector.broadcast %cst_187 : f32 to vector<4x64xf32>
    %253 = arith.mulf %251, %252 : vector<4x64xf32>
    %254 = arith.addf %249, %253 : vector<4x64xf32>
    %c0_188 = arith.constant 0 : index
    %c22 = arith.constant 22 : index
    %c0_189 = arith.constant 0 : index
    %255 = vector.load %arg2[%c0_188, %c22, %c0_189] : memref<4x64x64xf32, #tpu.memory_space<vmem>>, vector<4x1x64xf32>
    %256 = vector.shape_cast %255 : vector<4x1x64xf32> to vector<4x64xf32>
    %cst_190 = arith.constant -9.375000e-02 : f32
    %257 = vector.broadcast %cst_190 : f32 to vector<4x64xf32>
    %258 = arith.mulf %256, %257 : vector<4x64xf32>
    %259 = arith.addf %254, %258 : vector<4x64xf32>
    %260 = arith.truncf %259 : vector<4x64xf32> to vector<4x64xbf16>
    %cst_191 = arith.constant dense<0.000000e+00> : vector<4x32xf32>
    %261 = tpu.matmul %260, %0, %cst_191 {dimension_numbers = #tpu.dot_dimension_numbers<[1], [0], [0], [1], [0, 0, 1, 1], [], []>} : vector<4x64xbf16>, vector<64x32xbf16>, vector<4x32xf32> -> vector<4x32xf32>
    %c0_192 = arith.constant 0 : index
    %c2_193 = arith.constant 2 : index
    %c64_194 = arith.constant 64 : index
    %262 = vector.load %arg3[%c0_192, %c2_193, %c64_194] : memref<4x8x128xf32, #tpu.memory_space<vmem>>, vector<4x1x32xf32>
    %263 = vector.shape_cast %262 : vector<4x1x32xf32> to vector<4x32xf32>
    %264 = vector.shape_cast %261 : vector<4x32xf32> to vector<4x1x32xf32>
    tpu.vector_store %arg3[%c0_192, %c2_193, %c64_194], %264 {strides = array<i32>} : memref<4x8x128xf32, #tpu.memory_space<vmem>>, vector<4x1x32xf32>,
    %c0_195 = arith.constant 0 : index
    %c21_196 = arith.constant 21 : index
    %c0_197 = arith.constant 0 : index
    %265 = vector.load %arg2[%c0_195, %c21_196, %c0_197] : memref<4x64x64xf32, #tpu.memory_space<vmem>>, vector<4x1x64xf32>
    %266 = vector.shape_cast %265 : vector<4x1x64xf32> to vector<4x64xf32>
    %cst_198 = arith.constant -9.375000e-02 : f32
    %267 = vector.broadcast %cst_198 : f32 to vector<4x64xf32>
    %268 = arith.mulf %266, %267 : vector<4x64xf32>
    %c0_199 = arith.constant 0 : index
    %c22_200 = arith.constant 22 : index
    %c0_201 = arith.constant 0 : index
    %269 = vector.load %arg2[%c0_199, %c22_200, %c0_201] : memref<4x64x64xf32, #tpu.memory_space<vmem>>, vector<4x1x64xf32>
    %270 = vector.shape_cast %269 : vector<4x1x64xf32> to vector<4x64xf32>
    %cst_202 = arith.constant 5.937500e-01 : f32
    %271 = vector.broadcast %cst_202 : f32 to vector<4x64xf32>
    %272 = arith.mulf %270, %271 : vector<4x64xf32>
    %273 = arith.addf %268, %272 : vector<4x64xf32>
    %c0_203 = arith.constant 0 : index
    %c23 = arith.constant 23 : index
    %c0_204 = arith.constant 0 : index
    %274 = vector.load %arg2[%c0_203, %c23, %c0_204] : memref<4x64x64xf32, #tpu.memory_space<vmem>>, vector<4x1x64xf32>
    %275 = vector.shape_cast %274 : vector<4x1x64xf32> to vector<4x64xf32>
    %cst_205 = arith.constant 5.937500e-01 : f32
    %276 = vector.broadcast %cst_205 : f32 to vector<4x64xf32>
    %277 = arith.mulf %275, %276 : vector<4x64xf32>
    %278 = arith.addf %273, %277 : vector<4x64xf32>
    %c0_206 = arith.constant 0 : index
    %c24 = arith.constant 24 : index
    %c0_207 = arith.constant 0 : index
    %279 = vector.load %arg2[%c0_206, %c24, %c0_207] : memref<4x64x64xf32, #tpu.memory_space<vmem>>, vector<4x1x64xf32>
    %280 = vector.shape_cast %279 : vector<4x1x64xf32> to vector<4x64xf32>
    %cst_208 = arith.constant -9.375000e-02 : f32
    %281 = vector.broadcast %cst_208 : f32 to vector<4x64xf32>
    %282 = arith.mulf %280, %281 : vector<4x64xf32>
    %283 = arith.addf %278, %282 : vector<4x64xf32>
    %284 = arith.truncf %283 : vector<4x64xf32> to vector<4x64xbf16>
    %cst_209 = arith.constant dense<0.000000e+00> : vector<4x32xf32>
    %285 = tpu.matmul %284, %0, %cst_209 {dimension_numbers = #tpu.dot_dimension_numbers<[1], [0], [0], [1], [0, 0, 1, 1], [], []>} : vector<4x64xbf16>, vector<64x32xbf16>, vector<4x32xf32> -> vector<4x32xf32>
    %c0_210 = arith.constant 0 : index
    %c2_211 = arith.constant 2 : index
    %c96_212 = arith.constant 96 : index
    %286 = vector.load %arg3[%c0_210, %c2_211, %c96_212] : memref<4x8x128xf32, #tpu.memory_space<vmem>>, vector<4x1x32xf32>
    %287 = vector.shape_cast %286 : vector<4x1x32xf32> to vector<4x32xf32>
    %288 = vector.shape_cast %285 : vector<4x32xf32> to vector<4x1x32xf32>
    tpu.vector_store %arg3[%c0_210, %c2_211, %c96_212], %288 {strides = array<i32>} : memref<4x8x128xf32, #tpu.memory_space<vmem>>, vector<4x1x32xf32>,
    %c0_213 = arith.constant 0 : index
    %c23_214 = arith.constant 23 : index
    %c0_215 = arith.constant 0 : index
    %289 = vector.load %arg2[%c0_213, %c23_214, %c0_215] : memref<4x64x64xf32, #tpu.memory_space<vmem>>, vector<4x1x64xf32>
    %290 = vector.shape_cast %289 : vector<4x1x64xf32> to vector<4x64xf32>
    %cst_216 = arith.constant -9.375000e-02 : f32
    %291 = vector.broadcast %cst_216 : f32 to vector<4x64xf32>
    %292 = arith.mulf %290, %291 : vector<4x64xf32>
    %c0_217 = arith.constant 0 : index
    %c24_218 = arith.constant 24 : index
    %c0_219 = arith.constant 0 : index
    %293 = vector.load %arg2[%c0_217, %c24_218, %c0_219] : memref<4x64x64xf32, #tpu.memory_space<vmem>>, vector<4x1x64xf32>
    %294 = vector.shape_cast %293 : vector<4x1x64xf32> to vector<4x64xf32>
    %cst_220 = arith.constant 5.937500e-01 : f32
    %295 = vector.broadcast %cst_220 : f32 to vector<4x64xf32>
    %296 = arith.mulf %294, %295 : vector<4x64xf32>
    %297 = arith.addf %292, %296 : vector<4x64xf32>
    %c0_221 = arith.constant 0 : index
    %c25 = arith.constant 25 : index
    %c0_222 = arith.constant 0 : index
    %298 = vector.load %arg2[%c0_221, %c25, %c0_222] : memref<4x64x64xf32, #tpu.memory_space<vmem>>, vector<4x1x64xf32>
    %299 = vector.shape_cast %298 : vector<4x1x64xf32> to vector<4x64xf32>
    %cst_223 = arith.constant 5.937500e-01 : f32
    %300 = vector.broadcast %cst_223 : f32 to vector<4x64xf32>
    %301 = arith.mulf %299, %300 : vector<4x64xf32>
    %302 = arith.addf %297, %301 : vector<4x64xf32>
    %c0_224 = arith.constant 0 : index
    %c26 = arith.constant 26 : index
    %c0_225 = arith.constant 0 : index
    %303 = vector.load %arg2[%c0_224, %c26, %c0_225] : memref<4x64x64xf32, #tpu.memory_space<vmem>>, vector<4x1x64xf32>
    %304 = vector.shape_cast %303 : vector<4x1x64xf32> to vector<4x64xf32>
    %cst_226 = arith.constant -9.375000e-02 : f32
    %305 = vector.broadcast %cst_226 : f32 to vector<4x64xf32>
    %306 = arith.mulf %304, %305 : vector<4x64xf32>
    %307 = arith.addf %302, %306 : vector<4x64xf32>
    %308 = arith.truncf %307 : vector<4x64xf32> to vector<4x64xbf16>
    %cst_227 = arith.constant dense<0.000000e+00> : vector<4x32xf32>
    %309 = tpu.matmul %308, %0, %cst_227 {dimension_numbers = #tpu.dot_dimension_numbers<[1], [0], [0], [1], [0, 0, 1, 1], [], []>} : vector<4x64xbf16>, vector<64x32xbf16>, vector<4x32xf32> -> vector<4x32xf32>
    %c0_228 = arith.constant 0 : index
    %c3_229 = arith.constant 3 : index
    %c0_230 = arith.constant 0 : index
    %310 = vector.load %arg3[%c0_228, %c3_229, %c0_230] : memref<4x8x128xf32, #tpu.memory_space<vmem>>, vector<4x1x32xf32>
    %311 = vector.shape_cast %310 : vector<4x1x32xf32> to vector<4x32xf32>
    %312 = vector.shape_cast %309 : vector<4x32xf32> to vector<4x1x32xf32>
    tpu.vector_store %arg3[%c0_228, %c3_229, %c0_230], %312 {strides = array<i32>} : memref<4x8x128xf32, #tpu.memory_space<vmem>>, vector<4x1x32xf32>,
    %c0_231 = arith.constant 0 : index
    %c25_232 = arith.constant 25 : index
    %c0_233 = arith.constant 0 : index
    %313 = vector.load %arg2[%c0_231, %c25_232, %c0_233] : memref<4x64x64xf32, #tpu.memory_space<vmem>>, vector<4x1x64xf32>
    %314 = vector.shape_cast %313 : vector<4x1x64xf32> to vector<4x64xf32>
    %cst_234 = arith.constant -9.375000e-02 : f32
    %315 = vector.broadcast %cst_234 : f32 to vector<4x64xf32>
    %316 = arith.mulf %314, %315 : vector<4x64xf32>
    %c0_235 = arith.constant 0 : index
    %c26_236 = arith.constant 26 : index
    %c0_237 = arith.constant 0 : index
    %317 = vector.load %arg2[%c0_235, %c26_236, %c0_237] : memref<4x64x64xf32, #tpu.memory_space<vmem>>, vector<4x1x64xf32>
    %318 = vector.shape_cast %317 : vector<4x1x64xf32> to vector<4x64xf32>
    %cst_238 = arith.constant 5.937500e-01 : f32
    %319 = vector.broadcast %cst_238 : f32 to vector<4x64xf32>
    %320 = arith.mulf %318, %319 : vector<4x64xf32>
    %321 = arith.addf %316, %320 : vector<4x64xf32>
    %c0_239 = arith.constant 0 : index
    %c27 = arith.constant 27 : index
    %c0_240 = arith.constant 0 : index
    %322 = vector.load %arg2[%c0_239, %c27, %c0_240] : memref<4x64x64xf32, #tpu.memory_space<vmem>>, vector<4x1x64xf32>
    %323 = vector.shape_cast %322 : vector<4x1x64xf32> to vector<4x64xf32>
    %cst_241 = arith.constant 5.937500e-01 : f32
    %324 = vector.broadcast %cst_241 : f32 to vector<4x64xf32>
    %325 = arith.mulf %323, %324 : vector<4x64xf32>
    %326 = arith.addf %321, %325 : vector<4x64xf32>
    %c0_242 = arith.constant 0 : index
    %c28 = arith.constant 28 : index
    %c0_243 = arith.constant 0 : index
    %327 = vector.load %arg2[%c0_242, %c28, %c0_243] : memref<4x64x64xf32, #tpu.memory_space<vmem>>, vector<4x1x64xf32>
    %328 = vector.shape_cast %327 : vector<4x1x64xf32> to vector<4x64xf32>
    %cst_244 = arith.constant -9.375000e-02 : f32
    %329 = vector.broadcast %cst_244 : f32 to vector<4x64xf32>
    %330 = arith.mulf %328, %329 : vector<4x64xf32>
    %331 = arith.addf %326, %330 : vector<4x64xf32>
    %332 = arith.truncf %331 : vector<4x64xf32> to vector<4x64xbf16>
    %cst_245 = arith.constant dense<0.000000e+00> : vector<4x32xf32>
    %333 = tpu.matmul %332, %0, %cst_245 {dimension_numbers = #tpu.dot_dimension_numbers<[1], [0], [0], [1], [0, 0, 1, 1], [], []>} : vector<4x64xbf16>, vector<64x32xbf16>, vector<4x32xf32> -> vector<4x32xf32>
    %c0_246 = arith.constant 0 : index
    %c3_247 = arith.constant 3 : index
    %c32_248 = arith.constant 32 : index
    %334 = vector.load %arg3[%c0_246, %c3_247, %c32_248] : memref<4x8x128xf32, #tpu.memory_space<vmem>>, vector<4x1x32xf32>
    %335 = vector.shape_cast %334 : vector<4x1x32xf32> to vector<4x32xf32>
    %336 = vector.shape_cast %333 : vector<4x32xf32> to vector<4x1x32xf32>
    tpu.vector_store %arg3[%c0_246, %c3_247, %c32_248], %336 {strides = array<i32>} : memref<4x8x128xf32, #tpu.memory_space<vmem>>, vector<4x1x32xf32>,
    %c0_249 = arith.constant 0 : index
    %c27_250 = arith.constant 27 : index
    %c0_251 = arith.constant 0 : index
    %337 = vector.load %arg2[%c0_249, %c27_250, %c0_251] : memref<4x64x64xf32, #tpu.memory_space<vmem>>, vector<4x1x64xf32>
    %338 = vector.shape_cast %337 : vector<4x1x64xf32> to vector<4x64xf32>
    %cst_252 = arith.constant -9.375000e-02 : f32
    %339 = vector.broadcast %cst_252 : f32 to vector<4x64xf32>
    %340 = arith.mulf %338, %339 : vector<4x64xf32>
    %c0_253 = arith.constant 0 : index
    %c28_254 = arith.constant 28 : index
    %c0_255 = arith.constant 0 : index
    %341 = vector.load %arg2[%c0_253, %c28_254, %c0_255] : memref<4x64x64xf32, #tpu.memory_space<vmem>>, vector<4x1x64xf32>
    %342 = vector.shape_cast %341 : vector<4x1x64xf32> to vector<4x64xf32>
    %cst_256 = arith.constant 5.937500e-01 : f32
    %343 = vector.broadcast %cst_256 : f32 to vector<4x64xf32>
    %344 = arith.mulf %342, %343 : vector<4x64xf32>
    %345 = arith.addf %340, %344 : vector<4x64xf32>
    %c0_257 = arith.constant 0 : index
    %c29 = arith.constant 29 : index
    %c0_258 = arith.constant 0 : index
    %346 = vector.load %arg2[%c0_257, %c29, %c0_258] : memref<4x64x64xf32, #tpu.memory_space<vmem>>, vector<4x1x64xf32>
    %347 = vector.shape_cast %346 : vector<4x1x64xf32> to vector<4x64xf32>
    %cst_259 = arith.constant 5.937500e-01 : f32
    %348 = vector.broadcast %cst_259 : f32 to vector<4x64xf32>
    %349 = arith.mulf %347, %348 : vector<4x64xf32>
    %350 = arith.addf %345, %349 : vector<4x64xf32>
    %c0_260 = arith.constant 0 : index
    %c30 = arith.constant 30 : index
    %c0_261 = arith.constant 0 : index
    %351 = vector.load %arg2[%c0_260, %c30, %c0_261] : memref<4x64x64xf32, #tpu.memory_space<vmem>>, vector<4x1x64xf32>
    %352 = vector.shape_cast %351 : vector<4x1x64xf32> to vector<4x64xf32>
    %cst_262 = arith.constant -9.375000e-02 : f32
    %353 = vector.broadcast %cst_262 : f32 to vector<4x64xf32>
    %354 = arith.mulf %352, %353 : vector<4x64xf32>
    %355 = arith.addf %350, %354 : vector<4x64xf32>
    %356 = arith.truncf %355 : vector<4x64xf32> to vector<4x64xbf16>
    %cst_263 = arith.constant dense<0.000000e+00> : vector<4x32xf32>
    %357 = tpu.matmul %356, %0, %cst_263 {dimension_numbers = #tpu.dot_dimension_numbers<[1], [0], [0], [1], [0, 0, 1, 1], [], []>} : vector<4x64xbf16>, vector<64x32xbf16>, vector<4x32xf32> -> vector<4x32xf32>
    %c0_264 = arith.constant 0 : index
    %c3_265 = arith.constant 3 : index
    %c64_266 = arith.constant 64 : index
    %358 = vector.load %arg3[%c0_264, %c3_265, %c64_266] : memref<4x8x128xf32, #tpu.memory_space<vmem>>, vector<4x1x32xf32>
    %359 = vector.shape_cast %358 : vector<4x1x32xf32> to vector<4x32xf32>
    %360 = vector.shape_cast %357 : vector<4x32xf32> to vector<4x1x32xf32>
    tpu.vector_store %arg3[%c0_264, %c3_265, %c64_266], %360 {strides = array<i32>} : memref<4x8x128xf32, #tpu.memory_space<vmem>>, vector<4x1x32xf32>,
    %c0_267 = arith.constant 0 : index
    %c29_268 = arith.constant 29 : index
    %c0_269 = arith.constant 0 : index
    %361 = vector.load %arg2[%c0_267, %c29_268, %c0_269] : memref<4x64x64xf32, #tpu.memory_space<vmem>>, vector<4x1x64xf32>
    %362 = vector.shape_cast %361 : vector<4x1x64xf32> to vector<4x64xf32>
    %cst_270 = arith.constant -9.375000e-02 : f32
    %363 = vector.broadcast %cst_270 : f32 to vector<4x64xf32>
    %364 = arith.mulf %362, %363 : vector<4x64xf32>
    %c0_271 = arith.constant 0 : index
    %c30_272 = arith.constant 30 : index
    %c0_273 = arith.constant 0 : index
    %365 = vector.load %arg2[%c0_271, %c30_272, %c0_273] : memref<4x64x64xf32, #tpu.memory_space<vmem>>, vector<4x1x64xf32>
    %366 = vector.shape_cast %365 : vector<4x1x64xf32> to vector<4x64xf32>
    %cst_274 = arith.constant 5.937500e-01 : f32
    %367 = vector.broadcast %cst_274 : f32 to vector<4x64xf32>
    %368 = arith.mulf %366, %367 : vector<4x64xf32>
    %369 = arith.addf %364, %368 : vector<4x64xf32>
    %c0_275 = arith.constant 0 : index
    %c31 = arith.constant 31 : index
    %c0_276 = arith.constant 0 : index
    %370 = vector.load %arg2[%c0_275, %c31, %c0_276] : memref<4x64x64xf32, #tpu.memory_space<vmem>>, vector<4x1x64xf32>
    %371 = vector.shape_cast %370 : vector<4x1x64xf32> to vector<4x64xf32>
    %cst_277 = arith.constant 5.937500e-01 : f32
    %372 = vector.broadcast %cst_277 : f32 to vector<4x64xf32>
    %373 = arith.mulf %371, %372 : vector<4x64xf32>
    %374 = arith.addf %369, %373 : vector<4x64xf32>
    %c0_278 = arith.constant 0 : index
    %c32_279 = arith.constant 32 : index
    %c0_280 = arith.constant 0 : index
    %375 = vector.load %arg2[%c0_278, %c32_279, %c0_280] : memref<4x64x64xf32, #tpu.memory_space<vmem>>, vector<4x1x64xf32>
    %376 = vector.shape_cast %375 : vector<4x1x64xf32> to vector<4x64xf32>
    %cst_281 = arith.constant -9.375000e-02 : f32
    %377 = vector.broadcast %cst_281 : f32 to vector<4x64xf32>
    %378 = arith.mulf %376, %377 : vector<4x64xf32>
    %379 = arith.addf %374, %378 : vector<4x64xf32>
    %380 = arith.truncf %379 : vector<4x64xf32> to vector<4x64xbf16>
    %cst_282 = arith.constant dense<0.000000e+00> : vector<4x32xf32>
    %381 = tpu.matmul %380, %0, %cst_282 {dimension_numbers = #tpu.dot_dimension_numbers<[1], [0], [0], [1], [0, 0, 1, 1], [], []>} : vector<4x64xbf16>, vector<64x32xbf16>, vector<4x32xf32> -> vector<4x32xf32>
    %c0_283 = arith.constant 0 : index
    %c3_284 = arith.constant 3 : index
    %c96_285 = arith.constant 96 : index
    %382 = vector.load %arg3[%c0_283, %c3_284, %c96_285] : memref<4x8x128xf32, #tpu.memory_space<vmem>>, vector<4x1x32xf32>
    %383 = vector.shape_cast %382 : vector<4x1x32xf32> to vector<4x32xf32>
    %384 = vector.shape_cast %381 : vector<4x32xf32> to vector<4x1x32xf32>
    tpu.vector_store %arg3[%c0_283, %c3_284, %c96_285], %384 {strides = array<i32>} : memref<4x8x128xf32, #tpu.memory_space<vmem>>, vector<4x1x32xf32>,
    %c0_286 = arith.constant 0 : index
    %c31_287 = arith.constant 31 : index
    %c0_288 = arith.constant 0 : index
    %385 = vector.load %arg2[%c0_286, %c31_287, %c0_288] : memref<4x64x64xf32, #tpu.memory_space<vmem>>, vector<4x1x64xf32>
    %386 = vector.shape_cast %385 : vector<4x1x64xf32> to vector<4x64xf32>
    %cst_289 = arith.constant -9.375000e-02 : f32
    %387 = vector.broadcast %cst_289 : f32 to vector<4x64xf32>
    %388 = arith.mulf %386, %387 : vector<4x64xf32>
    %c0_290 = arith.constant 0 : index
    %c32_291 = arith.constant 32 : index
    %c0_292 = arith.constant 0 : index
    %389 = vector.load %arg2[%c0_290, %c32_291, %c0_292] : memref<4x64x64xf32, #tpu.memory_space<vmem>>, vector<4x1x64xf32>
    %390 = vector.shape_cast %389 : vector<4x1x64xf32> to vector<4x64xf32>
    %cst_293 = arith.constant 5.937500e-01 : f32
    %391 = vector.broadcast %cst_293 : f32 to vector<4x64xf32>
    %392 = arith.mulf %390, %391 : vector<4x64xf32>
    %393 = arith.addf %388, %392 : vector<4x64xf32>
    %c0_294 = arith.constant 0 : index
    %c33 = arith.constant 33 : index
    %c0_295 = arith.constant 0 : index
    %394 = vector.load %arg2[%c0_294, %c33, %c0_295] : memref<4x64x64xf32, #tpu.memory_space<vmem>>, vector<4x1x64xf32>
    %395 = vector.shape_cast %394 : vector<4x1x64xf32> to vector<4x64xf32>
    %cst_296 = arith.constant 5.937500e-01 : f32
    %396 = vector.broadcast %cst_296 : f32 to vector<4x64xf32>
    %397 = arith.mulf %395, %396 : vector<4x64xf32>
    %398 = arith.addf %393, %397 : vector<4x64xf32>
    %c0_297 = arith.constant 0 : index
    %c34 = arith.constant 34 : index
    %c0_298 = arith.constant 0 : index
    %399 = vector.load %arg2[%c0_297, %c34, %c0_298] : memref<4x64x64xf32, #tpu.memory_space<vmem>>, vector<4x1x64xf32>
    %400 = vector.shape_cast %399 : vector<4x1x64xf32> to vector<4x64xf32>
    %cst_299 = arith.constant -9.375000e-02 : f32
    %401 = vector.broadcast %cst_299 : f32 to vector<4x64xf32>
    %402 = arith.mulf %400, %401 : vector<4x64xf32>
    %403 = arith.addf %398, %402 : vector<4x64xf32>
    %404 = arith.truncf %403 : vector<4x64xf32> to vector<4x64xbf16>
    %cst_300 = arith.constant dense<0.000000e+00> : vector<4x32xf32>
    %405 = tpu.matmul %404, %0, %cst_300 {dimension_numbers = #tpu.dot_dimension_numbers<[1], [0], [0], [1], [0, 0, 1, 1], [], []>} : vector<4x64xbf16>, vector<64x32xbf16>, vector<4x32xf32> -> vector<4x32xf32>
    %c0_301 = arith.constant 0 : index
    %c4_302 = arith.constant 4 : index
    %c0_303 = arith.constant 0 : index
    %406 = vector.load %arg3[%c0_301, %c4_302, %c0_303] : memref<4x8x128xf32, #tpu.memory_space<vmem>>, vector<4x1x32xf32>
    %407 = vector.shape_cast %406 : vector<4x1x32xf32> to vector<4x32xf32>
    %408 = vector.shape_cast %405 : vector<4x32xf32> to vector<4x1x32xf32>
    tpu.vector_store %arg3[%c0_301, %c4_302, %c0_303], %408 {strides = array<i32>} : memref<4x8x128xf32, #tpu.memory_space<vmem>>, vector<4x1x32xf32>,
    %c0_304 = arith.constant 0 : index
    %c33_305 = arith.constant 33 : index
    %c0_306 = arith.constant 0 : index
    %409 = vector.load %arg2[%c0_304, %c33_305, %c0_306] : memref<4x64x64xf32, #tpu.memory_space<vmem>>, vector<4x1x64xf32>
    %410 = vector.shape_cast %409 : vector<4x1x64xf32> to vector<4x64xf32>
    %cst_307 = arith.constant -9.375000e-02 : f32
    %411 = vector.broadcast %cst_307 : f32 to vector<4x64xf32>
    %412 = arith.mulf %410, %411 : vector<4x64xf32>
    %c0_308 = arith.constant 0 : index
    %c34_309 = arith.constant 34 : index
    %c0_310 = arith.constant 0 : index
    %413 = vector.load %arg2[%c0_308, %c34_309, %c0_310] : memref<4x64x64xf32, #tpu.memory_space<vmem>>, vector<4x1x64xf32>
    %414 = vector.shape_cast %413 : vector<4x1x64xf32> to vector<4x64xf32>
    %cst_311 = arith.constant 5.937500e-01 : f32
    %415 = vector.broadcast %cst_311 : f32 to vector<4x64xf32>
    %416 = arith.mulf %414, %415 : vector<4x64xf32>
    %417 = arith.addf %412, %416 : vector<4x64xf32>
    %c0_312 = arith.constant 0 : index
    %c35 = arith.constant 35 : index
    %c0_313 = arith.constant 0 : index
    %418 = vector.load %arg2[%c0_312, %c35, %c0_313] : memref<4x64x64xf32, #tpu.memory_space<vmem>>, vector<4x1x64xf32>
    %419 = vector.shape_cast %418 : vector<4x1x64xf32> to vector<4x64xf32>
    %cst_314 = arith.constant 5.937500e-01 : f32
    %420 = vector.broadcast %cst_314 : f32 to vector<4x64xf32>
    %421 = arith.mulf %419, %420 : vector<4x64xf32>
    %422 = arith.addf %417, %421 : vector<4x64xf32>
    %c0_315 = arith.constant 0 : index
    %c36 = arith.constant 36 : index
    %c0_316 = arith.constant 0 : index
    %423 = vector.load %arg2[%c0_315, %c36, %c0_316] : memref<4x64x64xf32, #tpu.memory_space<vmem>>, vector<4x1x64xf32>
    %424 = vector.shape_cast %423 : vector<4x1x64xf32> to vector<4x64xf32>
    %cst_317 = arith.constant -9.375000e-02 : f32
    %425 = vector.broadcast %cst_317 : f32 to vector<4x64xf32>
    %426 = arith.mulf %424, %425 : vector<4x64xf32>
    %427 = arith.addf %422, %426 : vector<4x64xf32>
    %428 = arith.truncf %427 : vector<4x64xf32> to vector<4x64xbf16>
    %cst_318 = arith.constant dense<0.000000e+00> : vector<4x32xf32>
    %429 = tpu.matmul %428, %0, %cst_318 {dimension_numbers = #tpu.dot_dimension_numbers<[1], [0], [0], [1], [0, 0, 1, 1], [], []>} : vector<4x64xbf16>, vector<64x32xbf16>, vector<4x32xf32> -> vector<4x32xf32>
    %c0_319 = arith.constant 0 : index
    %c4_320 = arith.constant 4 : index
    %c32_321 = arith.constant 32 : index
    %430 = vector.load %arg3[%c0_319, %c4_320, %c32_321] : memref<4x8x128xf32, #tpu.memory_space<vmem>>, vector<4x1x32xf32>
    %431 = vector.shape_cast %430 : vector<4x1x32xf32> to vector<4x32xf32>
    %432 = vector.shape_cast %429 : vector<4x32xf32> to vector<4x1x32xf32>
    tpu.vector_store %arg3[%c0_319, %c4_320, %c32_321], %432 {strides = array<i32>} : memref<4x8x128xf32, #tpu.memory_space<vmem>>, vector<4x1x32xf32>,
    %c0_322 = arith.constant 0 : index
    %c35_323 = arith.constant 35 : index
    %c0_324 = arith.constant 0 : index
    %433 = vector.load %arg2[%c0_322, %c35_323, %c0_324] : memref<4x64x64xf32, #tpu.memory_space<vmem>>, vector<4x1x64xf32>
    %434 = vector.shape_cast %433 : vector<4x1x64xf32> to vector<4x64xf32>
    %cst_325 = arith.constant -9.375000e-02 : f32
    %435 = vector.broadcast %cst_325 : f32 to vector<4x64xf32>
    %436 = arith.mulf %434, %435 : vector<4x64xf32>
    %c0_326 = arith.constant 0 : index
    %c36_327 = arith.constant 36 : index
    %c0_328 = arith.constant 0 : index
    %437 = vector.load %arg2[%c0_326, %c36_327, %c0_328] : memref<4x64x64xf32, #tpu.memory_space<vmem>>, vector<4x1x64xf32>
    %438 = vector.shape_cast %437 : vector<4x1x64xf32> to vector<4x64xf32>
    %cst_329 = arith.constant 5.937500e-01 : f32
    %439 = vector.broadcast %cst_329 : f32 to vector<4x64xf32>
    %440 = arith.mulf %438, %439 : vector<4x64xf32>
    %441 = arith.addf %436, %440 : vector<4x64xf32>
    %c0_330 = arith.constant 0 : index
    %c37 = arith.constant 37 : index
    %c0_331 = arith.constant 0 : index
    %442 = vector.load %arg2[%c0_330, %c37, %c0_331] : memref<4x64x64xf32, #tpu.memory_space<vmem>>, vector<4x1x64xf32>
    %443 = vector.shape_cast %442 : vector<4x1x64xf32> to vector<4x64xf32>
    %cst_332 = arith.constant 5.937500e-01 : f32
    %444 = vector.broadcast %cst_332 : f32 to vector<4x64xf32>
    %445 = arith.mulf %443, %444 : vector<4x64xf32>
    %446 = arith.addf %441, %445 : vector<4x64xf32>
    %c0_333 = arith.constant 0 : index
    %c38 = arith.constant 38 : index
    %c0_334 = arith.constant 0 : index
    %447 = vector.load %arg2[%c0_333, %c38, %c0_334] : memref<4x64x64xf32, #tpu.memory_space<vmem>>, vector<4x1x64xf32>
    %448 = vector.shape_cast %447 : vector<4x1x64xf32> to vector<4x64xf32>
    %cst_335 = arith.constant -9.375000e-02 : f32
    %449 = vector.broadcast %cst_335 : f32 to vector<4x64xf32>
    %450 = arith.mulf %448, %449 : vector<4x64xf32>
    %451 = arith.addf %446, %450 : vector<4x64xf32>
    %452 = arith.truncf %451 : vector<4x64xf32> to vector<4x64xbf16>
    %cst_336 = arith.constant dense<0.000000e+00> : vector<4x32xf32>
    %453 = tpu.matmul %452, %0, %cst_336 {dimension_numbers = #tpu.dot_dimension_numbers<[1], [0], [0], [1], [0, 0, 1, 1], [], []>} : vector<4x64xbf16>, vector<64x32xbf16>, vector<4x32xf32> -> vector<4x32xf32>
    %c0_337 = arith.constant 0 : index
    %c4_338 = arith.constant 4 : index
    %c64_339 = arith.constant 64 : index
    %454 = vector.load %arg3[%c0_337, %c4_338, %c64_339] : memref<4x8x128xf32, #tpu.memory_space<vmem>>, vector<4x1x32xf32>
    %455 = vector.shape_cast %454 : vector<4x1x32xf32> to vector<4x32xf32>
    %456 = vector.shape_cast %453 : vector<4x32xf32> to vector<4x1x32xf32>
    tpu.vector_store %arg3[%c0_337, %c4_338, %c64_339], %456 {strides = array<i32>} : memref<4x8x128xf32, #tpu.memory_space<vmem>>, vector<4x1x32xf32>,
    %c0_340 = arith.constant 0 : index
    %c37_341 = arith.constant 37 : index
    %c0_342 = arith.constant 0 : index
    %457 = vector.load %arg2[%c0_340, %c37_341, %c0_342] : memref<4x64x64xf32, #tpu.memory_space<vmem>>, vector<4x1x64xf32>
    %458 = vector.shape_cast %457 : vector<4x1x64xf32> to vector<4x64xf32>
    %cst_343 = arith.constant -9.375000e-02 : f32
    %459 = vector.broadcast %cst_343 : f32 to vector<4x64xf32>
    %460 = arith.mulf %458, %459 : vector<4x64xf32>
    %c0_344 = arith.constant 0 : index
    %c38_345 = arith.constant 38 : index
    %c0_346 = arith.constant 0 : index
    %461 = vector.load %arg2[%c0_344, %c38_345, %c0_346] : memref<4x64x64xf32, #tpu.memory_space<vmem>>, vector<4x1x64xf32>
    %462 = vector.shape_cast %461 : vector<4x1x64xf32> to vector<4x64xf32>
    %cst_347 = arith.constant 5.937500e-01 : f32
    %463 = vector.broadcast %cst_347 : f32 to vector<4x64xf32>
    %464 = arith.mulf %462, %463 : vector<4x64xf32>
    %465 = arith.addf %460, %464 : vector<4x64xf32>
    %c0_348 = arith.constant 0 : index
    %c39 = arith.constant 39 : index
    %c0_349 = arith.constant 0 : index
    %466 = vector.load %arg2[%c0_348, %c39, %c0_349] : memref<4x64x64xf32, #tpu.memory_space<vmem>>, vector<4x1x64xf32>
    %467 = vector.shape_cast %466 : vector<4x1x64xf32> to vector<4x64xf32>
    %cst_350 = arith.constant 5.937500e-01 : f32
    %468 = vector.broadcast %cst_350 : f32 to vector<4x64xf32>
    %469 = arith.mulf %467, %468 : vector<4x64xf32>
    %470 = arith.addf %465, %469 : vector<4x64xf32>
    %c0_351 = arith.constant 0 : index
    %c40 = arith.constant 40 : index
    %c0_352 = arith.constant 0 : index
    %471 = vector.load %arg2[%c0_351, %c40, %c0_352] : memref<4x64x64xf32, #tpu.memory_space<vmem>>, vector<4x1x64xf32>
    %472 = vector.shape_cast %471 : vector<4x1x64xf32> to vector<4x64xf32>
    %cst_353 = arith.constant -9.375000e-02 : f32
    %473 = vector.broadcast %cst_353 : f32 to vector<4x64xf32>
    %474 = arith.mulf %472, %473 : vector<4x64xf32>
    %475 = arith.addf %470, %474 : vector<4x64xf32>
    %476 = arith.truncf %475 : vector<4x64xf32> to vector<4x64xbf16>
    %cst_354 = arith.constant dense<0.000000e+00> : vector<4x32xf32>
    %477 = tpu.matmul %476, %0, %cst_354 {dimension_numbers = #tpu.dot_dimension_numbers<[1], [0], [0], [1], [0, 0, 1, 1], [], []>} : vector<4x64xbf16>, vector<64x32xbf16>, vector<4x32xf32> -> vector<4x32xf32>
    %c0_355 = arith.constant 0 : index
    %c4_356 = arith.constant 4 : index
    %c96_357 = arith.constant 96 : index
    %478 = vector.load %arg3[%c0_355, %c4_356, %c96_357] : memref<4x8x128xf32, #tpu.memory_space<vmem>>, vector<4x1x32xf32>
    %479 = vector.shape_cast %478 : vector<4x1x32xf32> to vector<4x32xf32>
    %480 = vector.shape_cast %477 : vector<4x32xf32> to vector<4x1x32xf32>
    tpu.vector_store %arg3[%c0_355, %c4_356, %c96_357], %480 {strides = array<i32>} : memref<4x8x128xf32, #tpu.memory_space<vmem>>, vector<4x1x32xf32>,
    %c0_358 = arith.constant 0 : index
    %c39_359 = arith.constant 39 : index
    %c0_360 = arith.constant 0 : index
    %481 = vector.load %arg2[%c0_358, %c39_359, %c0_360] : memref<4x64x64xf32, #tpu.memory_space<vmem>>, vector<4x1x64xf32>
    %482 = vector.shape_cast %481 : vector<4x1x64xf32> to vector<4x64xf32>
    %cst_361 = arith.constant -9.375000e-02 : f32
    %483 = vector.broadcast %cst_361 : f32 to vector<4x64xf32>
    %484 = arith.mulf %482, %483 : vector<4x64xf32>
    %c0_362 = arith.constant 0 : index
    %c40_363 = arith.constant 40 : index
    %c0_364 = arith.constant 0 : index
    %485 = vector.load %arg2[%c0_362, %c40_363, %c0_364] : memref<4x64x64xf32, #tpu.memory_space<vmem>>, vector<4x1x64xf32>
    %486 = vector.shape_cast %485 : vector<4x1x64xf32> to vector<4x64xf32>
    %cst_365 = arith.constant 5.937500e-01 : f32
    %487 = vector.broadcast %cst_365 : f32 to vector<4x64xf32>
    %488 = arith.mulf %486, %487 : vector<4x64xf32>
    %489 = arith.addf %484, %488 : vector<4x64xf32>
    %c0_366 = arith.constant 0 : index
    %c41 = arith.constant 41 : index
    %c0_367 = arith.constant 0 : index
    %490 = vector.load %arg2[%c0_366, %c41, %c0_367] : memref<4x64x64xf32, #tpu.memory_space<vmem>>, vector<4x1x64xf32>
    %491 = vector.shape_cast %490 : vector<4x1x64xf32> to vector<4x64xf32>
    %cst_368 = arith.constant 5.937500e-01 : f32
    %492 = vector.broadcast %cst_368 : f32 to vector<4x64xf32>
    %493 = arith.mulf %491, %492 : vector<4x64xf32>
    %494 = arith.addf %489, %493 : vector<4x64xf32>
    %c0_369 = arith.constant 0 : index
    %c42 = arith.constant 42 : index
    %c0_370 = arith.constant 0 : index
    %495 = vector.load %arg2[%c0_369, %c42, %c0_370] : memref<4x64x64xf32, #tpu.memory_space<vmem>>, vector<4x1x64xf32>
    %496 = vector.shape_cast %495 : vector<4x1x64xf32> to vector<4x64xf32>
    %cst_371 = arith.constant -9.375000e-02 : f32
    %497 = vector.broadcast %cst_371 : f32 to vector<4x64xf32>
    %498 = arith.mulf %496, %497 : vector<4x64xf32>
    %499 = arith.addf %494, %498 : vector<4x64xf32>
    %500 = arith.truncf %499 : vector<4x64xf32> to vector<4x64xbf16>
    %cst_372 = arith.constant dense<0.000000e+00> : vector<4x32xf32>
    %501 = tpu.matmul %500, %0, %cst_372 {dimension_numbers = #tpu.dot_dimension_numbers<[1], [0], [0], [1], [0, 0, 1, 1], [], []>} : vector<4x64xbf16>, vector<64x32xbf16>, vector<4x32xf32> -> vector<4x32xf32>
    %c0_373 = arith.constant 0 : index
    %c5_374 = arith.constant 5 : index
    %c0_375 = arith.constant 0 : index
    %502 = vector.load %arg3[%c0_373, %c5_374, %c0_375] : memref<4x8x128xf32, #tpu.memory_space<vmem>>, vector<4x1x32xf32>
    %503 = vector.shape_cast %502 : vector<4x1x32xf32> to vector<4x32xf32>
    %504 = vector.shape_cast %501 : vector<4x32xf32> to vector<4x1x32xf32>
    tpu.vector_store %arg3[%c0_373, %c5_374, %c0_375], %504 {strides = array<i32>} : memref<4x8x128xf32, #tpu.memory_space<vmem>>, vector<4x1x32xf32>,
    %c0_376 = arith.constant 0 : index
    %c41_377 = arith.constant 41 : index
    %c0_378 = arith.constant 0 : index
    %505 = vector.load %arg2[%c0_376, %c41_377, %c0_378] : memref<4x64x64xf32, #tpu.memory_space<vmem>>, vector<4x1x64xf32>
    %506 = vector.shape_cast %505 : vector<4x1x64xf32> to vector<4x64xf32>
    %cst_379 = arith.constant -9.375000e-02 : f32
    %507 = vector.broadcast %cst_379 : f32 to vector<4x64xf32>
    %508 = arith.mulf %506, %507 : vector<4x64xf32>
    %c0_380 = arith.constant 0 : index
    %c42_381 = arith.constant 42 : index
    %c0_382 = arith.constant 0 : index
    %509 = vector.load %arg2[%c0_380, %c42_381, %c0_382] : memref<4x64x64xf32, #tpu.memory_space<vmem>>, vector<4x1x64xf32>
    %510 = vector.shape_cast %509 : vector<4x1x64xf32> to vector<4x64xf32>
    %cst_383 = arith.constant 5.937500e-01 : f32
    %511 = vector.broadcast %cst_383 : f32 to vector<4x64xf32>
    %512 = arith.mulf %510, %511 : vector<4x64xf32>
    %513 = arith.addf %508, %512 : vector<4x64xf32>
    %c0_384 = arith.constant 0 : index
    %c43 = arith.constant 43 : index
    %c0_385 = arith.constant 0 : index
    %514 = vector.load %arg2[%c0_384, %c43, %c0_385] : memref<4x64x64xf32, #tpu.memory_space<vmem>>, vector<4x1x64xf32>
    %515 = vector.shape_cast %514 : vector<4x1x64xf32> to vector<4x64xf32>
    %cst_386 = arith.constant 5.937500e-01 : f32
    %516 = vector.broadcast %cst_386 : f32 to vector<4x64xf32>
    %517 = arith.mulf %515, %516 : vector<4x64xf32>
    %518 = arith.addf %513, %517 : vector<4x64xf32>
    %c0_387 = arith.constant 0 : index
    %c44 = arith.constant 44 : index
    %c0_388 = arith.constant 0 : index
    %519 = vector.load %arg2[%c0_387, %c44, %c0_388] : memref<4x64x64xf32, #tpu.memory_space<vmem>>, vector<4x1x64xf32>
    %520 = vector.shape_cast %519 : vector<4x1x64xf32> to vector<4x64xf32>
    %cst_389 = arith.constant -9.375000e-02 : f32
    %521 = vector.broadcast %cst_389 : f32 to vector<4x64xf32>
    %522 = arith.mulf %520, %521 : vector<4x64xf32>
    %523 = arith.addf %518, %522 : vector<4x64xf32>
    %524 = arith.truncf %523 : vector<4x64xf32> to vector<4x64xbf16>
    %cst_390 = arith.constant dense<0.000000e+00> : vector<4x32xf32>
    %525 = tpu.matmul %524, %0, %cst_390 {dimension_numbers = #tpu.dot_dimension_numbers<[1], [0], [0], [1], [0, 0, 1, 1], [], []>} : vector<4x64xbf16>, vector<64x32xbf16>, vector<4x32xf32> -> vector<4x32xf32>
    %c0_391 = arith.constant 0 : index
    %c5_392 = arith.constant 5 : index
    %c32_393 = arith.constant 32 : index
    %526 = vector.load %arg3[%c0_391, %c5_392, %c32_393] : memref<4x8x128xf32, #tpu.memory_space<vmem>>, vector<4x1x32xf32>
    %527 = vector.shape_cast %526 : vector<4x1x32xf32> to vector<4x32xf32>
    %528 = vector.shape_cast %525 : vector<4x32xf32> to vector<4x1x32xf32>
    tpu.vector_store %arg3[%c0_391, %c5_392, %c32_393], %528 {strides = array<i32>} : memref<4x8x128xf32, #tpu.memory_space<vmem>>, vector<4x1x32xf32>,
    %c0_394 = arith.constant 0 : index
    %c43_395 = arith.constant 43 : index
    %c0_396 = arith.constant 0 : index
    %529 = vector.load %arg2[%c0_394, %c43_395, %c0_396] : memref<4x64x64xf32, #tpu.memory_space<vmem>>, vector<4x1x64xf32>
    %530 = vector.shape_cast %529 : vector<4x1x64xf32> to vector<4x64xf32>
    %cst_397 = arith.constant -9.375000e-02 : f32
    %531 = vector.broadcast %cst_397 : f32 to vector<4x64xf32>
    %532 = arith.mulf %530, %531 : vector<4x64xf32>
    %c0_398 = arith.constant 0 : index
    %c44_399 = arith.constant 44 : index
    %c0_400 = arith.constant 0 : index
    %533 = vector.load %arg2[%c0_398, %c44_399, %c0_400] : memref<4x64x64xf32, #tpu.memory_space<vmem>>, vector<4x1x64xf32>
    %534 = vector.shape_cast %533 : vector<4x1x64xf32> to vector<4x64xf32>
    %cst_401 = arith.constant 5.937500e-01 : f32
    %535 = vector.broadcast %cst_401 : f32 to vector<4x64xf32>
    %536 = arith.mulf %534, %535 : vector<4x64xf32>
    %537 = arith.addf %532, %536 : vector<4x64xf32>
    %c0_402 = arith.constant 0 : index
    %c45 = arith.constant 45 : index
    %c0_403 = arith.constant 0 : index
    %538 = vector.load %arg2[%c0_402, %c45, %c0_403] : memref<4x64x64xf32, #tpu.memory_space<vmem>>, vector<4x1x64xf32>
    %539 = vector.shape_cast %538 : vector<4x1x64xf32> to vector<4x64xf32>
    %cst_404 = arith.constant 5.937500e-01 : f32
    %540 = vector.broadcast %cst_404 : f32 to vector<4x64xf32>
    %541 = arith.mulf %539, %540 : vector<4x64xf32>
    %542 = arith.addf %537, %541 : vector<4x64xf32>
    %c0_405 = arith.constant 0 : index
    %c46 = arith.constant 46 : index
    %c0_406 = arith.constant 0 : index
    %543 = vector.load %arg2[%c0_405, %c46, %c0_406] : memref<4x64x64xf32, #tpu.memory_space<vmem>>, vector<4x1x64xf32>
    %544 = vector.shape_cast %543 : vector<4x1x64xf32> to vector<4x64xf32>
    %cst_407 = arith.constant -9.375000e-02 : f32
    %545 = vector.broadcast %cst_407 : f32 to vector<4x64xf32>
    %546 = arith.mulf %544, %545 : vector<4x64xf32>
    %547 = arith.addf %542, %546 : vector<4x64xf32>
    %548 = arith.truncf %547 : vector<4x64xf32> to vector<4x64xbf16>
    %cst_408 = arith.constant dense<0.000000e+00> : vector<4x32xf32>
    %549 = tpu.matmul %548, %0, %cst_408 {dimension_numbers = #tpu.dot_dimension_numbers<[1], [0], [0], [1], [0, 0, 1, 1], [], []>} : vector<4x64xbf16>, vector<64x32xbf16>, vector<4x32xf32> -> vector<4x32xf32>
    %c0_409 = arith.constant 0 : index
    %c5_410 = arith.constant 5 : index
    %c64_411 = arith.constant 64 : index
    %550 = vector.load %arg3[%c0_409, %c5_410, %c64_411] : memref<4x8x128xf32, #tpu.memory_space<vmem>>, vector<4x1x32xf32>
    %551 = vector.shape_cast %550 : vector<4x1x32xf32> to vector<4x32xf32>
    %552 = vector.shape_cast %549 : vector<4x32xf32> to vector<4x1x32xf32>
    tpu.vector_store %arg3[%c0_409, %c5_410, %c64_411], %552 {strides = array<i32>} : memref<4x8x128xf32, #tpu.memory_space<vmem>>, vector<4x1x32xf32>,
    %c0_412 = arith.constant 0 : index
    %c45_413 = arith.constant 45 : index
    %c0_414 = arith.constant 0 : index
    %553 = vector.load %arg2[%c0_412, %c45_413, %c0_414] : memref<4x64x64xf32, #tpu.memory_space<vmem>>, vector<4x1x64xf32>
    %554 = vector.shape_cast %553 : vector<4x1x64xf32> to vector<4x64xf32>
    %cst_415 = arith.constant -9.375000e-02 : f32
    %555 = vector.broadcast %cst_415 : f32 to vector<4x64xf32>
    %556 = arith.mulf %554, %555 : vector<4x64xf32>
    %c0_416 = arith.constant 0 : index
    %c46_417 = arith.constant 46 : index
    %c0_418 = arith.constant 0 : index
    %557 = vector.load %arg2[%c0_416, %c46_417, %c0_418] : memref<4x64x64xf32, #tpu.memory_space<vmem>>, vector<4x1x64xf32>
    %558 = vector.shape_cast %557 : vector<4x1x64xf32> to vector<4x64xf32>
    %cst_419 = arith.constant 5.937500e-01 : f32
    %559 = vector.broadcast %cst_419 : f32 to vector<4x64xf32>
    %560 = arith.mulf %558, %559 : vector<4x64xf32>
    %561 = arith.addf %556, %560 : vector<4x64xf32>
    %c0_420 = arith.constant 0 : index
    %c47 = arith.constant 47 : index
    %c0_421 = arith.constant 0 : index
    %562 = vector.load %arg2[%c0_420, %c47, %c0_421] : memref<4x64x64xf32, #tpu.memory_space<vmem>>, vector<4x1x64xf32>
    %563 = vector.shape_cast %562 : vector<4x1x64xf32> to vector<4x64xf32>
    %cst_422 = arith.constant 5.937500e-01 : f32
    %564 = vector.broadcast %cst_422 : f32 to vector<4x64xf32>
    %565 = arith.mulf %563, %564 : vector<4x64xf32>
    %566 = arith.addf %561, %565 : vector<4x64xf32>
    %c0_423 = arith.constant 0 : index
    %c48 = arith.constant 48 : index
    %c0_424 = arith.constant 0 : index
    %567 = vector.load %arg2[%c0_423, %c48, %c0_424] : memref<4x64x64xf32, #tpu.memory_space<vmem>>, vector<4x1x64xf32>
    %568 = vector.shape_cast %567 : vector<4x1x64xf32> to vector<4x64xf32>
    %cst_425 = arith.constant -9.375000e-02 : f32
    %569 = vector.broadcast %cst_425 : f32 to vector<4x64xf32>
    %570 = arith.mulf %568, %569 : vector<4x64xf32>
    %571 = arith.addf %566, %570 : vector<4x64xf32>
    %572 = arith.truncf %571 : vector<4x64xf32> to vector<4x64xbf16>
    %cst_426 = arith.constant dense<0.000000e+00> : vector<4x32xf32>
    %573 = tpu.matmul %572, %0, %cst_426 {dimension_numbers = #tpu.dot_dimension_numbers<[1], [0], [0], [1], [0, 0, 1, 1], [], []>} : vector<4x64xbf16>, vector<64x32xbf16>, vector<4x32xf32> -> vector<4x32xf32>
    %c0_427 = arith.constant 0 : index
    %c5_428 = arith.constant 5 : index
    %c96_429 = arith.constant 96 : index
    %574 = vector.load %arg3[%c0_427, %c5_428, %c96_429] : memref<4x8x128xf32, #tpu.memory_space<vmem>>, vector<4x1x32xf32>
    %575 = vector.shape_cast %574 : vector<4x1x32xf32> to vector<4x32xf32>
    %576 = vector.shape_cast %573 : vector<4x32xf32> to vector<4x1x32xf32>
    tpu.vector_store %arg3[%c0_427, %c5_428, %c96_429], %576 {strides = array<i32>} : memref<4x8x128xf32, #tpu.memory_space<vmem>>, vector<4x1x32xf32>,
    %c0_430 = arith.constant 0 : index
    %c47_431 = arith.constant 47 : index
    %c0_432 = arith.constant 0 : index
    %577 = vector.load %arg2[%c0_430, %c47_431, %c0_432] : memref<4x64x64xf32, #tpu.memory_space<vmem>>, vector<4x1x64xf32>
    %578 = vector.shape_cast %577 : vector<4x1x64xf32> to vector<4x64xf32>
    %cst_433 = arith.constant -9.375000e-02 : f32
    %579 = vector.broadcast %cst_433 : f32 to vector<4x64xf32>
    %580 = arith.mulf %578, %579 : vector<4x64xf32>
    %c0_434 = arith.constant 0 : index
    %c48_435 = arith.constant 48 : index
    %c0_436 = arith.constant 0 : index
    %581 = vector.load %arg2[%c0_434, %c48_435, %c0_436] : memref<4x64x64xf32, #tpu.memory_space<vmem>>, vector<4x1x64xf32>
    %582 = vector.shape_cast %581 : vector<4x1x64xf32> to vector<4x64xf32>
    %cst_437 = arith.constant 5.937500e-01 : f32
    %583 = vector.broadcast %cst_437 : f32 to vector<4x64xf32>
    %584 = arith.mulf %582, %583 : vector<4x64xf32>
    %585 = arith.addf %580, %584 : vector<4x64xf32>
    %c0_438 = arith.constant 0 : index
    %c49 = arith.constant 49 : index
    %c0_439 = arith.constant 0 : index
    %586 = vector.load %arg2[%c0_438, %c49, %c0_439] : memref<4x64x64xf32, #tpu.memory_space<vmem>>, vector<4x1x64xf32>
    %587 = vector.shape_cast %586 : vector<4x1x64xf32> to vector<4x64xf32>
    %cst_440 = arith.constant 5.937500e-01 : f32
    %588 = vector.broadcast %cst_440 : f32 to vector<4x64xf32>
    %589 = arith.mulf %587, %588 : vector<4x64xf32>
    %590 = arith.addf %585, %589 : vector<4x64xf32>
    %c0_441 = arith.constant 0 : index
    %c50 = arith.constant 50 : index
    %c0_442 = arith.constant 0 : index
    %591 = vector.load %arg2[%c0_441, %c50, %c0_442] : memref<4x64x64xf32, #tpu.memory_space<vmem>>, vector<4x1x64xf32>
    %592 = vector.shape_cast %591 : vector<4x1x64xf32> to vector<4x64xf32>
    %cst_443 = arith.constant -9.375000e-02 : f32
    %593 = vector.broadcast %cst_443 : f32 to vector<4x64xf32>
    %594 = arith.mulf %592, %593 : vector<4x64xf32>
    %595 = arith.addf %590, %594 : vector<4x64xf32>
    %596 = arith.truncf %595 : vector<4x64xf32> to vector<4x64xbf16>
    %cst_444 = arith.constant dense<0.000000e+00> : vector<4x32xf32>
    %597 = tpu.matmul %596, %0, %cst_444 {dimension_numbers = #tpu.dot_dimension_numbers<[1], [0], [0], [1], [0, 0, 1, 1], [], []>} : vector<4x64xbf16>, vector<64x32xbf16>, vector<4x32xf32> -> vector<4x32xf32>
    %c0_445 = arith.constant 0 : index
    %c6_446 = arith.constant 6 : index
    %c0_447 = arith.constant 0 : index
    %598 = vector.load %arg3[%c0_445, %c6_446, %c0_447] : memref<4x8x128xf32, #tpu.memory_space<vmem>>, vector<4x1x32xf32>
    %599 = vector.shape_cast %598 : vector<4x1x32xf32> to vector<4x32xf32>
    %600 = vector.shape_cast %597 : vector<4x32xf32> to vector<4x1x32xf32>
    tpu.vector_store %arg3[%c0_445, %c6_446, %c0_447], %600 {strides = array<i32>} : memref<4x8x128xf32, #tpu.memory_space<vmem>>, vector<4x1x32xf32>,
    %c0_448 = arith.constant 0 : index
    %c49_449 = arith.constant 49 : index
    %c0_450 = arith.constant 0 : index
    %601 = vector.load %arg2[%c0_448, %c49_449, %c0_450] : memref<4x64x64xf32, #tpu.memory_space<vmem>>, vector<4x1x64xf32>
    %602 = vector.shape_cast %601 : vector<4x1x64xf32> to vector<4x64xf32>
    %cst_451 = arith.constant -9.375000e-02 : f32
    %603 = vector.broadcast %cst_451 : f32 to vector<4x64xf32>
    %604 = arith.mulf %602, %603 : vector<4x64xf32>
    %c0_452 = arith.constant 0 : index
    %c50_453 = arith.constant 50 : index
    %c0_454 = arith.constant 0 : index
    %605 = vector.load %arg2[%c0_452, %c50_453, %c0_454] : memref<4x64x64xf32, #tpu.memory_space<vmem>>, vector<4x1x64xf32>
    %606 = vector.shape_cast %605 : vector<4x1x64xf32> to vector<4x64xf32>
    %cst_455 = arith.constant 5.937500e-01 : f32
    %607 = vector.broadcast %cst_455 : f32 to vector<4x64xf32>
    %608 = arith.mulf %606, %607 : vector<4x64xf32>
    %609 = arith.addf %604, %608 : vector<4x64xf32>
    %c0_456 = arith.constant 0 : index
    %c51 = arith.constant 51 : index
    %c0_457 = arith.constant 0 : index
    %610 = vector.load %arg2[%c0_456, %c51, %c0_457] : memref<4x64x64xf32, #tpu.memory_space<vmem>>, vector<4x1x64xf32>
    %611 = vector.shape_cast %610 : vector<4x1x64xf32> to vector<4x64xf32>
    %cst_458 = arith.constant 5.937500e-01 : f32
    %612 = vector.broadcast %cst_458 : f32 to vector<4x64xf32>
    %613 = arith.mulf %611, %612 : vector<4x64xf32>
    %614 = arith.addf %609, %613 : vector<4x64xf32>
    %c0_459 = arith.constant 0 : index
    %c52 = arith.constant 52 : index
    %c0_460 = arith.constant 0 : index
    %615 = vector.load %arg2[%c0_459, %c52, %c0_460] : memref<4x64x64xf32, #tpu.memory_space<vmem>>, vector<4x1x64xf32>
    %616 = vector.shape_cast %615 : vector<4x1x64xf32> to vector<4x64xf32>
    %cst_461 = arith.constant -9.375000e-02 : f32
    %617 = vector.broadcast %cst_461 : f32 to vector<4x64xf32>
    %618 = arith.mulf %616, %617 : vector<4x64xf32>
    %619 = arith.addf %614, %618 : vector<4x64xf32>
    %620 = arith.truncf %619 : vector<4x64xf32> to vector<4x64xbf16>
    %cst_462 = arith.constant dense<0.000000e+00> : vector<4x32xf32>
    %621 = tpu.matmul %620, %0, %cst_462 {dimension_numbers = #tpu.dot_dimension_numbers<[1], [0], [0], [1], [0, 0, 1, 1], [], []>} : vector<4x64xbf16>, vector<64x32xbf16>, vector<4x32xf32> -> vector<4x32xf32>
    %c0_463 = arith.constant 0 : index
    %c6_464 = arith.constant 6 : index
    %c32_465 = arith.constant 32 : index
    %622 = vector.load %arg3[%c0_463, %c6_464, %c32_465] : memref<4x8x128xf32, #tpu.memory_space<vmem>>, vector<4x1x32xf32>
    %623 = vector.shape_cast %622 : vector<4x1x32xf32> to vector<4x32xf32>
    %624 = vector.shape_cast %621 : vector<4x32xf32> to vector<4x1x32xf32>
    tpu.vector_store %arg3[%c0_463, %c6_464, %c32_465], %624 {strides = array<i32>} : memref<4x8x128xf32, #tpu.memory_space<vmem>>, vector<4x1x32xf32>,
    %c0_466 = arith.constant 0 : index
    %c51_467 = arith.constant 51 : index
    %c0_468 = arith.constant 0 : index
    %625 = vector.load %arg2[%c0_466, %c51_467, %c0_468] : memref<4x64x64xf32, #tpu.memory_space<vmem>>, vector<4x1x64xf32>
    %626 = vector.shape_cast %625 : vector<4x1x64xf32> to vector<4x64xf32>
    %cst_469 = arith.constant -9.375000e-02 : f32
    %627 = vector.broadcast %cst_469 : f32 to vector<4x64xf32>
    %628 = arith.mulf %626, %627 : vector<4x64xf32>
    %c0_470 = arith.constant 0 : index
    %c52_471 = arith.constant 52 : index
    %c0_472 = arith.constant 0 : index
    %629 = vector.load %arg2[%c0_470, %c52_471, %c0_472] : memref<4x64x64xf32, #tpu.memory_space<vmem>>, vector<4x1x64xf32>
    %630 = vector.shape_cast %629 : vector<4x1x64xf32> to vector<4x64xf32>
    %cst_473 = arith.constant 5.937500e-01 : f32
    %631 = vector.broadcast %cst_473 : f32 to vector<4x64xf32>
    %632 = arith.mulf %630, %631 : vector<4x64xf32>
    %633 = arith.addf %628, %632 : vector<4x64xf32>
    %c0_474 = arith.constant 0 : index
    %c53 = arith.constant 53 : index
    %c0_475 = arith.constant 0 : index
    %634 = vector.load %arg2[%c0_474, %c53, %c0_475] : memref<4x64x64xf32, #tpu.memory_space<vmem>>, vector<4x1x64xf32>
    %635 = vector.shape_cast %634 : vector<4x1x64xf32> to vector<4x64xf32>
    %cst_476 = arith.constant 5.937500e-01 : f32
    %636 = vector.broadcast %cst_476 : f32 to vector<4x64xf32>
    %637 = arith.mulf %635, %636 : vector<4x64xf32>
    %638 = arith.addf %633, %637 : vector<4x64xf32>
    %c0_477 = arith.constant 0 : index
    %c54 = arith.constant 54 : index
    %c0_478 = arith.constant 0 : index
    %639 = vector.load %arg2[%c0_477, %c54, %c0_478] : memref<4x64x64xf32, #tpu.memory_space<vmem>>, vector<4x1x64xf32>
    %640 = vector.shape_cast %639 : vector<4x1x64xf32> to vector<4x64xf32>
    %cst_479 = arith.constant -9.375000e-02 : f32
    %641 = vector.broadcast %cst_479 : f32 to vector<4x64xf32>
    %642 = arith.mulf %640, %641 : vector<4x64xf32>
    %643 = arith.addf %638, %642 : vector<4x64xf32>
    %644 = arith.truncf %643 : vector<4x64xf32> to vector<4x64xbf16>
    %cst_480 = arith.constant dense<0.000000e+00> : vector<4x32xf32>
    %645 = tpu.matmul %644, %0, %cst_480 {dimension_numbers = #tpu.dot_dimension_numbers<[1], [0], [0], [1], [0, 0, 1, 1], [], []>} : vector<4x64xbf16>, vector<64x32xbf16>, vector<4x32xf32> -> vector<4x32xf32>
    %c0_481 = arith.constant 0 : index
    %c6_482 = arith.constant 6 : index
    %c64_483 = arith.constant 64 : index
    %646 = vector.load %arg3[%c0_481, %c6_482, %c64_483] : memref<4x8x128xf32, #tpu.memory_space<vmem>>, vector<4x1x32xf32>
    %647 = vector.shape_cast %646 : vector<4x1x32xf32> to vector<4x32xf32>
    %648 = vector.shape_cast %645 : vector<4x32xf32> to vector<4x1x32xf32>
    tpu.vector_store %arg3[%c0_481, %c6_482, %c64_483], %648 {strides = array<i32>} : memref<4x8x128xf32, #tpu.memory_space<vmem>>, vector<4x1x32xf32>,
    %c0_484 = arith.constant 0 : index
    %c53_485 = arith.constant 53 : index
    %c0_486 = arith.constant 0 : index
    %649 = vector.load %arg2[%c0_484, %c53_485, %c0_486] : memref<4x64x64xf32, #tpu.memory_space<vmem>>, vector<4x1x64xf32>
    %650 = vector.shape_cast %649 : vector<4x1x64xf32> to vector<4x64xf32>
    %cst_487 = arith.constant -9.375000e-02 : f32
    %651 = vector.broadcast %cst_487 : f32 to vector<4x64xf32>
    %652 = arith.mulf %650, %651 : vector<4x64xf32>
    %c0_488 = arith.constant 0 : index
    %c54_489 = arith.constant 54 : index
    %c0_490 = arith.constant 0 : index
    %653 = vector.load %arg2[%c0_488, %c54_489, %c0_490] : memref<4x64x64xf32, #tpu.memory_space<vmem>>, vector<4x1x64xf32>
    %654 = vector.shape_cast %653 : vector<4x1x64xf32> to vector<4x64xf32>
    %cst_491 = arith.constant 5.937500e-01 : f32
    %655 = vector.broadcast %cst_491 : f32 to vector<4x64xf32>
    %656 = arith.mulf %654, %655 : vector<4x64xf32>
    %657 = arith.addf %652, %656 : vector<4x64xf32>
    %c0_492 = arith.constant 0 : index
    %c55 = arith.constant 55 : index
    %c0_493 = arith.constant 0 : index
    %658 = vector.load %arg2[%c0_492, %c55, %c0_493] : memref<4x64x64xf32, #tpu.memory_space<vmem>>, vector<4x1x64xf32>
    %659 = vector.shape_cast %658 : vector<4x1x64xf32> to vector<4x64xf32>
    %cst_494 = arith.constant 5.937500e-01 : f32
    %660 = vector.broadcast %cst_494 : f32 to vector<4x64xf32>
    %661 = arith.mulf %659, %660 : vector<4x64xf32>
    %662 = arith.addf %657, %661 : vector<4x64xf32>
    %c0_495 = arith.constant 0 : index
    %c56 = arith.constant 56 : index
    %c0_496 = arith.constant 0 : index
    %663 = vector.load %arg2[%c0_495, %c56, %c0_496] : memref<4x64x64xf32, #tpu.memory_space<vmem>>, vector<4x1x64xf32>
    %664 = vector.shape_cast %663 : vector<4x1x64xf32> to vector<4x64xf32>
    %cst_497 = arith.constant -9.375000e-02 : f32
    %665 = vector.broadcast %cst_497 : f32 to vector<4x64xf32>
    %666 = arith.mulf %664, %665 : vector<4x64xf32>
    %667 = arith.addf %662, %666 : vector<4x64xf32>
    %668 = arith.truncf %667 : vector<4x64xf32> to vector<4x64xbf16>
    %cst_498 = arith.constant dense<0.000000e+00> : vector<4x32xf32>
    %669 = tpu.matmul %668, %0, %cst_498 {dimension_numbers = #tpu.dot_dimension_numbers<[1], [0], [0], [1], [0, 0, 1, 1], [], []>} : vector<4x64xbf16>, vector<64x32xbf16>, vector<4x32xf32> -> vector<4x32xf32>
    %c0_499 = arith.constant 0 : index
    %c6_500 = arith.constant 6 : index
    %c96_501 = arith.constant 96 : index
    %670 = vector.load %arg3[%c0_499, %c6_500, %c96_501] : memref<4x8x128xf32, #tpu.memory_space<vmem>>, vector<4x1x32xf32>
    %671 = vector.shape_cast %670 : vector<4x1x32xf32> to vector<4x32xf32>
    %672 = vector.shape_cast %669 : vector<4x32xf32> to vector<4x1x32xf32>
    tpu.vector_store %arg3[%c0_499, %c6_500, %c96_501], %672 {strides = array<i32>} : memref<4x8x128xf32, #tpu.memory_space<vmem>>, vector<4x1x32xf32>,
    %c0_502 = arith.constant 0 : index
    %c55_503 = arith.constant 55 : index
    %c0_504 = arith.constant 0 : index
    %673 = vector.load %arg2[%c0_502, %c55_503, %c0_504] : memref<4x64x64xf32, #tpu.memory_space<vmem>>, vector<4x1x64xf32>
    %674 = vector.shape_cast %673 : vector<4x1x64xf32> to vector<4x64xf32>
    %cst_505 = arith.constant -9.375000e-02 : f32
    %675 = vector.broadcast %cst_505 : f32 to vector<4x64xf32>
    %676 = arith.mulf %674, %675 : vector<4x64xf32>
    %c0_506 = arith.constant 0 : index
    %c56_507 = arith.constant 56 : index
    %c0_508 = arith.constant 0 : index
    %677 = vector.load %arg2[%c0_506, %c56_507, %c0_508] : memref<4x64x64xf32, #tpu.memory_space<vmem>>, vector<4x1x64xf32>
    %678 = vector.shape_cast %677 : vector<4x1x64xf32> to vector<4x64xf32>
    %cst_509 = arith.constant 5.937500e-01 : f32
    %679 = vector.broadcast %cst_509 : f32 to vector<4x64xf32>
    %680 = arith.mulf %678, %679 : vector<4x64xf32>
    %681 = arith.addf %676, %680 : vector<4x64xf32>
    %c0_510 = arith.constant 0 : index
    %c57 = arith.constant 57 : index
    %c0_511 = arith.constant 0 : index
    %682 = vector.load %arg2[%c0_510, %c57, %c0_511] : memref<4x64x64xf32, #tpu.memory_space<vmem>>, vector<4x1x64xf32>
    %683 = vector.shape_cast %682 : vector<4x1x64xf32> to vector<4x64xf32>
    %cst_512 = arith.constant 5.937500e-01 : f32
    %684 = vector.broadcast %cst_512 : f32 to vector<4x64xf32>
    %685 = arith.mulf %683, %684 : vector<4x64xf32>
    %686 = arith.addf %681, %685 : vector<4x64xf32>
    %c0_513 = arith.constant 0 : index
    %c58 = arith.constant 58 : index
    %c0_514 = arith.constant 0 : index
    %687 = vector.load %arg2[%c0_513, %c58, %c0_514] : memref<4x64x64xf32, #tpu.memory_space<vmem>>, vector<4x1x64xf32>
    %688 = vector.shape_cast %687 : vector<4x1x64xf32> to vector<4x64xf32>
    %cst_515 = arith.constant -9.375000e-02 : f32
    %689 = vector.broadcast %cst_515 : f32 to vector<4x64xf32>
    %690 = arith.mulf %688, %689 : vector<4x64xf32>
    %691 = arith.addf %686, %690 : vector<4x64xf32>
    %692 = arith.truncf %691 : vector<4x64xf32> to vector<4x64xbf16>
    %cst_516 = arith.constant dense<0.000000e+00> : vector<4x32xf32>
    %693 = tpu.matmul %692, %0, %cst_516 {dimension_numbers = #tpu.dot_dimension_numbers<[1], [0], [0], [1], [0, 0, 1, 1], [], []>} : vector<4x64xbf16>, vector<64x32xbf16>, vector<4x32xf32> -> vector<4x32xf32>
    %c0_517 = arith.constant 0 : index
    %c7_518 = arith.constant 7 : index
    %c0_519 = arith.constant 0 : index
    %694 = vector.load %arg3[%c0_517, %c7_518, %c0_519] : memref<4x8x128xf32, #tpu.memory_space<vmem>>, vector<4x1x32xf32>
    %695 = vector.shape_cast %694 : vector<4x1x32xf32> to vector<4x32xf32>
    %696 = vector.shape_cast %693 : vector<4x32xf32> to vector<4x1x32xf32>
    tpu.vector_store %arg3[%c0_517, %c7_518, %c0_519], %696 {strides = array<i32>} : memref<4x8x128xf32, #tpu.memory_space<vmem>>, vector<4x1x32xf32>,
    %c0_520 = arith.constant 0 : index
    %c57_521 = arith.constant 57 : index
    %c0_522 = arith.constant 0 : index
    %697 = vector.load %arg2[%c0_520, %c57_521, %c0_522] : memref<4x64x64xf32, #tpu.memory_space<vmem>>, vector<4x1x64xf32>
    %698 = vector.shape_cast %697 : vector<4x1x64xf32> to vector<4x64xf32>
    %cst_523 = arith.constant -9.375000e-02 : f32
    %699 = vector.broadcast %cst_523 : f32 to vector<4x64xf32>
    %700 = arith.mulf %698, %699 : vector<4x64xf32>
    %c0_524 = arith.constant 0 : index
    %c58_525 = arith.constant 58 : index
    %c0_526 = arith.constant 0 : index
    %701 = vector.load %arg2[%c0_524, %c58_525, %c0_526] : memref<4x64x64xf32, #tpu.memory_space<vmem>>, vector<4x1x64xf32>
    %702 = vector.shape_cast %701 : vector<4x1x64xf32> to vector<4x64xf32>
    %cst_527 = arith.constant 5.937500e-01 : f32
    %703 = vector.broadcast %cst_527 : f32 to vector<4x64xf32>
    %704 = arith.mulf %702, %703 : vector<4x64xf32>
    %705 = arith.addf %700, %704 : vector<4x64xf32>
    %c0_528 = arith.constant 0 : index
    %c59 = arith.constant 59 : index
    %c0_529 = arith.constant 0 : index
    %706 = vector.load %arg2[%c0_528, %c59, %c0_529] : memref<4x64x64xf32, #tpu.memory_space<vmem>>, vector<4x1x64xf32>
    %707 = vector.shape_cast %706 : vector<4x1x64xf32> to vector<4x64xf32>
    %cst_530 = arith.constant 5.937500e-01 : f32
    %708 = vector.broadcast %cst_530 : f32 to vector<4x64xf32>
    %709 = arith.mulf %707, %708 : vector<4x64xf32>
    %710 = arith.addf %705, %709 : vector<4x64xf32>
    %c0_531 = arith.constant 0 : index
    %c60 = arith.constant 60 : index
    %c0_532 = arith.constant 0 : index
    %711 = vector.load %arg2[%c0_531, %c60, %c0_532] : memref<4x64x64xf32, #tpu.memory_space<vmem>>, vector<4x1x64xf32>
    %712 = vector.shape_cast %711 : vector<4x1x64xf32> to vector<4x64xf32>
    %cst_533 = arith.constant -9.375000e-02 : f32
    %713 = vector.broadcast %cst_533 : f32 to vector<4x64xf32>
    %714 = arith.mulf %712, %713 : vector<4x64xf32>
    %715 = arith.addf %710, %714 : vector<4x64xf32>
    %716 = arith.truncf %715 : vector<4x64xf32> to vector<4x64xbf16>
    %cst_534 = arith.constant dense<0.000000e+00> : vector<4x32xf32>
    %717 = tpu.matmul %716, %0, %cst_534 {dimension_numbers = #tpu.dot_dimension_numbers<[1], [0], [0], [1], [0, 0, 1, 1], [], []>} : vector<4x64xbf16>, vector<64x32xbf16>, vector<4x32xf32> -> vector<4x32xf32>
    %c0_535 = arith.constant 0 : index
    %c7_536 = arith.constant 7 : index
    %c32_537 = arith.constant 32 : index
    %718 = vector.load %arg3[%c0_535, %c7_536, %c32_537] : memref<4x8x128xf32, #tpu.memory_space<vmem>>, vector<4x1x32xf32>
    %719 = vector.shape_cast %718 : vector<4x1x32xf32> to vector<4x32xf32>
    %720 = vector.shape_cast %717 : vector<4x32xf32> to vector<4x1x32xf32>
    tpu.vector_store %arg3[%c0_535, %c7_536, %c32_537], %720 {strides = array<i32>} : memref<4x8x128xf32, #tpu.memory_space<vmem>>, vector<4x1x32xf32>,
    %c0_538 = arith.constant 0 : index
    %c59_539 = arith.constant 59 : index
    %c0_540 = arith.constant 0 : index
    %721 = vector.load %arg2[%c0_538, %c59_539, %c0_540] : memref<4x64x64xf32, #tpu.memory_space<vmem>>, vector<4x1x64xf32>
    %722 = vector.shape_cast %721 : vector<4x1x64xf32> to vector<4x64xf32>
    %cst_541 = arith.constant -9.375000e-02 : f32
    %723 = vector.broadcast %cst_541 : f32 to vector<4x64xf32>
    %724 = arith.mulf %722, %723 : vector<4x64xf32>
    %c0_542 = arith.constant 0 : index
    %c60_543 = arith.constant 60 : index
    %c0_544 = arith.constant 0 : index
    %725 = vector.load %arg2[%c0_542, %c60_543, %c0_544] : memref<4x64x64xf32, #tpu.memory_space<vmem>>, vector<4x1x64xf32>
    %726 = vector.shape_cast %725 : vector<4x1x64xf32> to vector<4x64xf32>
    %cst_545 = arith.constant 5.937500e-01 : f32
    %727 = vector.broadcast %cst_545 : f32 to vector<4x64xf32>
    %728 = arith.mulf %726, %727 : vector<4x64xf32>
    %729 = arith.addf %724, %728 : vector<4x64xf32>
    %c0_546 = arith.constant 0 : index
    %c61 = arith.constant 61 : index
    %c0_547 = arith.constant 0 : index
    %730 = vector.load %arg2[%c0_546, %c61, %c0_547] : memref<4x64x64xf32, #tpu.memory_space<vmem>>, vector<4x1x64xf32>
    %731 = vector.shape_cast %730 : vector<4x1x64xf32> to vector<4x64xf32>
    %cst_548 = arith.constant 5.937500e-01 : f32
    %732 = vector.broadcast %cst_548 : f32 to vector<4x64xf32>
    %733 = arith.mulf %731, %732 : vector<4x64xf32>
    %734 = arith.addf %729, %733 : vector<4x64xf32>
    %c0_549 = arith.constant 0 : index
    %c62 = arith.constant 62 : index
    %c0_550 = arith.constant 0 : index
    %735 = vector.load %arg2[%c0_549, %c62, %c0_550] : memref<4x64x64xf32, #tpu.memory_space<vmem>>, vector<4x1x64xf32>
    %736 = vector.shape_cast %735 : vector<4x1x64xf32> to vector<4x64xf32>
    %cst_551 = arith.constant -9.375000e-02 : f32
    %737 = vector.broadcast %cst_551 : f32 to vector<4x64xf32>
    %738 = arith.mulf %736, %737 : vector<4x64xf32>
    %739 = arith.addf %734, %738 : vector<4x64xf32>
    %740 = arith.truncf %739 : vector<4x64xf32> to vector<4x64xbf16>
    %cst_552 = arith.constant dense<0.000000e+00> : vector<4x32xf32>
    %741 = tpu.matmul %740, %0, %cst_552 {dimension_numbers = #tpu.dot_dimension_numbers<[1], [0], [0], [1], [0, 0, 1, 1], [], []>} : vector<4x64xbf16>, vector<64x32xbf16>, vector<4x32xf32> -> vector<4x32xf32>
    %c0_553 = arith.constant 0 : index
    %c7_554 = arith.constant 7 : index
    %c64_555 = arith.constant 64 : index
    %742 = vector.load %arg3[%c0_553, %c7_554, %c64_555] : memref<4x8x128xf32, #tpu.memory_space<vmem>>, vector<4x1x32xf32>
    %743 = vector.shape_cast %742 : vector<4x1x32xf32> to vector<4x32xf32>
    %744 = vector.shape_cast %741 : vector<4x32xf32> to vector<4x1x32xf32>
    tpu.vector_store %arg3[%c0_553, %c7_554, %c64_555], %744 {strides = array<i32>} : memref<4x8x128xf32, #tpu.memory_space<vmem>>, vector<4x1x32xf32>,
    %c0_556 = arith.constant 0 : index
    %c61_557 = arith.constant 61 : index
    %c0_558 = arith.constant 0 : index
    %745 = vector.load %arg2[%c0_556, %c61_557, %c0_558] : memref<4x64x64xf32, #tpu.memory_space<vmem>>, vector<4x1x64xf32>
    %746 = vector.shape_cast %745 : vector<4x1x64xf32> to vector<4x64xf32>
    %cst_559 = arith.constant -9.375000e-02 : f32
    %747 = vector.broadcast %cst_559 : f32 to vector<4x64xf32>
    %748 = arith.mulf %746, %747 : vector<4x64xf32>
    %c0_560 = arith.constant 0 : index
    %c62_561 = arith.constant 62 : index
    %c0_562 = arith.constant 0 : index
    %749 = vector.load %arg2[%c0_560, %c62_561, %c0_562] : memref<4x64x64xf32, #tpu.memory_space<vmem>>, vector<4x1x64xf32>
    %750 = vector.shape_cast %749 : vector<4x1x64xf32> to vector<4x64xf32>
    %cst_563 = arith.constant 5.937500e-01 : f32
    %751 = vector.broadcast %cst_563 : f32 to vector<4x64xf32>
    %752 = arith.mulf %750, %751 : vector<4x64xf32>
    %753 = arith.addf %748, %752 : vector<4x64xf32>
    %c0_564 = arith.constant 0 : index
    %c63 = arith.constant 63 : index
    %c0_565 = arith.constant 0 : index
    %754 = vector.load %arg2[%c0_564, %c63, %c0_565] : memref<4x64x64xf32, #tpu.memory_space<vmem>>, vector<4x1x64xf32>
    %755 = vector.shape_cast %754 : vector<4x1x64xf32> to vector<4x64xf32>
    %cst_566 = arith.constant 5.937500e-01 : f32
    %756 = vector.broadcast %cst_566 : f32 to vector<4x64xf32>
    %757 = arith.mulf %755, %756 : vector<4x64xf32>
    %758 = arith.addf %753, %757 : vector<4x64xf32>
    %c0_567 = arith.constant 0 : index
    %c63_568 = arith.constant 63 : index
    %c0_569 = arith.constant 0 : index
    %759 = vector.load %arg2[%c0_567, %c63_568, %c0_569] : memref<4x64x64xf32, #tpu.memory_space<vmem>>, vector<4x1x64xf32>
    %760 = vector.shape_cast %759 : vector<4x1x64xf32> to vector<4x64xf32>
    %cst_570 = arith.constant -9.375000e-02 : f32
    %761 = vector.broadcast %cst_570 : f32 to vector<4x64xf32>
    %762 = arith.mulf %760, %761 : vector<4x64xf32>
    %763 = arith.addf %758, %762 : vector<4x64xf32>
    %764 = arith.truncf %763 : vector<4x64xf32> to vector<4x64xbf16>
    %cst_571 = arith.constant dense<0.000000e+00> : vector<4x32xf32>
    %765 = tpu.matmul %764, %0, %cst_571 {dimension_numbers = #tpu.dot_dimension_numbers<[1], [0], [0], [1], [0, 0, 1, 1], [], []>} : vector<4x64xbf16>, vector<64x32xbf16>, vector<4x32xf32> -> vector<4x32xf32>
    %c0_572 = arith.constant 0 : index
    %c7_573 = arith.constant 7 : index
    %c96_574 = arith.constant 96 : index
    %766 = vector.load %arg3[%c0_572, %c7_573, %c96_574] : memref<4x8x128xf32, #tpu.memory_space<vmem>>, vector<4x1x32xf32>
    %767 = vector.shape_cast %766 : vector<4x1x32xf32> to vector<4x32xf32>
    %768 = vector.shape_cast %765 : vector<4x32xf32> to vector<4x1x32xf32>
    tpu.vector_store %arg3[%c0_572, %c7_573, %c96_574], %768 {strides = array<i32>} : memref<4x8x128xf32, #tpu.memory_space<vmem>>, vector<4x1x32xf32>,
    return
  }
  func.func @transform_0(%arg0: i32) -> (i32, i32) {
    %c0_i32 = arith.constant 0 : i32
    %c0_i32_0 = arith.constant 0 : i32
    %c0_i32_1 = arith.constant 0 : i32
    return %c0_i32, %c0_i32_0 : i32, i32
  }
  func.func @transform_1(%arg0: i32) -> (i32, i32, i32) {
    %c0_i32 = arith.constant 0 : i32
    %c0_i32_0 = arith.constant 0 : i32
    %c0_i32_1 = arith.constant 0 : i32
    return %arg0, %c0_i32, %c0_i32_0 : i32, i32, i32
  }
  func.func @transform_2(%arg0: i32) -> (i32, i32, i32) {
    %c0_i32 = arith.constant 0 : i32
    %c0_i32_0 = arith.constant 0 : i32
    %c0_i32_1 = arith.constant 0 : i32
    return %arg0, %c0_i32, %c0_i32_0 : i32, i32, i32
  }
}

</mosaic_0001>

<llo_original>
// kernel: tpu_custom_call.1
$region0: #{tpu_custom_call.1}
  #allocation0 [shape = 'u32[]', space=smem, size = 0x4, offset = 0x4, fixed_abs, tag = 'smem constant byte address 0x4 - core index']
  #allocation1 [shape = 'u32[72,128]{1,0:T(1,128)}', space=vmem, size = 0x9000, scoped, tag = 'internal scratch']
  %s0 = inlined_call_operand.vmem [shape: bf16[64,32], index: 0, kind: input, shape index: {}]
  %s1 = inlined_call_operand.hbm [shape: f32[8,64,64], index: 1, kind: input, shape index: {}]
  %s2 = inlined_call_operand.hbm [shape: f32[8,8,128], index: 2, kind: output, shape index: {}]
  %s3 = sld [smem:[#allocation0]]
  $region45: #{tpu_custom_call.1} parent=0
    _
  %s5 = ssub.s32 1, %s3
  %s6 = scalar_select 0, %s5, %s3
  $region1: #{tpu_custom_call.1} parent=0
    #allocation2 [shape = 'u8[262144]{0}', space=vmem, size = 0x40000, scoped, tag = 'input window, operand 1']
    #allocation3 [shape = 's32[2]{0}', space=sflag, size = 0x8, scoped, tag = 'scoped memory for tpu_custom_call.1']
    #allocation4 [shape = 's32[2]{0}', space=sflag, size = 0x8, scoped, tag = 'scoped memory for tpu_custom_call.1']
    #allocation5 [shape = 'u8[32768]{0}', space=vmem, size = 0x8000, scoped, tag = 'output window, operand 0']
    %7 = vsyncpa [#allocation3], 0
    %s8 = scalar_lea.sflag [#allocation3], 1
    %9 = vsyncpa %s8, 0
    %10 = vsyncpa [#allocation4], 0
    %s11 = scalar_lea.sflag [#allocation4], 1
    %12 = vsyncpa %s11, 0
    loop: start=0, step=1, limit=4
    $region2: #{tpu_custom_call.1} parent=1 // loop_pre_header
      _
    $region3: #{tpu_custom_call.1} parent=1 // loop_header
      %s14 = sphi 0, %s18
      %p15 = scmp.ge.s32.totalorder %s14, 4
      %s22 = sphi 0, %s22
      %s24 = sphi 0, %s22
      %s25 = sphi 0, %s24
      %s39 = sphi 0, %s25
      %s45 = sphi 0, %s47
      %s48 = sphi 0, %s45
      %s49 = sphi 0, %s48
      %s65 = sphi 0, %s49
      %s71 = sphi 0, %s73
      %s74 = sphi 0, %s71
      %s75 = sphi 0, %s74
      %s91 = sphi 0, %s75
    $region4: #{tpu_custom_call.1} parent=1 // loop_header_branch
      %17 = sbr.rel (%p15) target = $region8
    $region5: #{tpu_custom_call.1} parent=1 // loop_body
      %s19 = ssub.s32 %s14, 1
      %s20 = ssub.s32 %s14, 2
      %s21 = sadd.s32 %s14, 1
      %s23 = sadd.s32 %s22, 1
      %p26 = scmp.eq.s32.totalorder %s14, 1
      %p27 = scmp.ne.s32.totalorder %s22, %s24
      %p28 = scmp.eq.s32.totalorder %s14, 0
      %p29 = por %p27, %p28
      %p30 = scmp.ne.s32.totalorder %s22, %s24
      %p31 = scmp.eq.s32.totalorder %s19, 1
      %p32 = por %p30, %p31
      %p33 = scmp.ne.s32.totalorder %s24, %s25
      %p34 = scmp.eq.s32.totalorder %s19, 0
      %p35 = por %p33, %p34
      %p36 = scmp.ne.s32.totalorder %s24, %s25
      %p37 = scmp.eq.s32.totalorder %s20, 1
      %p38 = por %p36, %p37
      %p40 = scmp.ne.s32.totalorder %s25, %s39
      %p41 = scmp.eq.s32.totalorder %s20, 0
      %p42 = por %p40, %p41
      %s43 = ssub.s32 %s14, %s21
      %p44 = scmp.eq.s32.totalorder %s43, 0
      %s46 = sadd.s32 %s45, 1
      %s47 = scalar_select %p44, %s45, %s46
      %p50 = pneg %p44
      %p51 = scmp.eq.s32.totalorder %s14, 1
      %p52 = por %p50, %p51
      %p53 = scmp.ne.s32.totalorder %s45, %s48
      %p54 = scmp.eq.s32.totalorder %s14, 0
      %p55 = por %p53, %p54
      %p56 = scmp.ne.s32.totalorder %s45, %s48
      %p57 = scmp.eq.s32.totalorder %s19, 1
      %p58 = por %p56, %p57
      %p59 = scmp.ne.s32.totalorder %s48, %s49
      %p60 = scmp.eq.s32.totalorder %s19, 0
      %p61 = por %p59, %p60
      %p62 = scmp.ne.s32.totalorder %s48, %s49
      %p63 = scmp.eq.s32.totalorder %s20, 1
      %p64 = por %p62, %p63
      %p66 = scmp.ne.s32.totalorder %s49, %s65
      %p67 = scmp.eq.s32.totalorder %s20, 0
      %p68 = por %p66, %p67
      %s69 = ssub.s32 %s14, %s21
      %p70 = scmp.eq.s32.totalorder %s69, 0
      %s72 = sadd.s32 %s71, 1
      %s73 = scalar_select %p70, %s71, %s72
      %p76 = pneg %p70
      %p77 = scmp.eq.s32.totalorder %s14, 1
      %p78 = por %p76, %p77
      %p79 = scmp.ne.s32.totalorder %s71, %s74
      %p80 = scmp.eq.s32.totalorder %s14, 0
      %p81 = por %p79, %p80
      %p82 = scmp.ne.s32.totalorder %s71, %s74
      %p83 = scmp.eq.s32.totalorder %s19, 1
      %p84 = por %p82, %p83
      %p85 = scmp.ne.s32.totalorder %s74, %s75
      %p86 = scmp.eq.s32.totalorder %s19, 0
      %p87 = por %p85, %p86
      %p88 = scmp.ne.s32.totalorder %s74, %s75
      %p89 = scmp.eq.s32.totalorder %s20, 1
      %p90 = por %p88, %p89
      %p92 = scmp.ne.s32.totalorder %s75, %s91
      %p93 = scmp.eq.s32.totalorder %s20, 0
      %p94 = por %p92, %p93
      %p95 = scmp.le.s32.totalorder 1, %s14
      %p96 = scmp.lt.s32.totalorder %s14, 3
      %p97 = pnand %p95, %p96
      %p98 = pneg %p97
      // Predicated region
      $region9: #{tpu_custom_call.1} parent=5 // pred_check
        _
      $region10: #{tpu_custom_call.1} parent=5 // pred_check_branch
        %100 = sbr.rel (%p97) target = $region12
      $region11: #{tpu_custom_call.1} parent=5 // pred_region
        %s101 = ssub.s32 %s14, 1
        // Predicated region
        $region13: #{tpu_custom_call.1} parent=11 // pred_check
          %p102 = pneg %p35
        $region14: #{tpu_custom_call.1} parent=11 // pred_check_branch
          %104 = sbr.rel (%p102) target = $region16
        $region15: #{tpu_custom_call.1} parent=11 // pred_region
          _
        $region16: #{tpu_custom_call.1} parent=11 // pred_fallthru
          _
      $region12: #{tpu_custom_call.1} parent=5 // pred_fallthru
        _
      %p105 = scmp.lt.s32.totalorder %s14, 2
      // Predicated region
      $region17: #{tpu_custom_call.1} parent=5 // pred_check
        %p106 = pneg %p105
      $region18: #{tpu_custom_call.1} parent=5 // pred_check_branch
        %108 = sbr.rel (%p106) target = $region20
      $region19: #{tpu_custom_call.1} parent=5 // pred_region
        // Predicated region
        $region21: #{tpu_custom_call.1} parent=19 // pred_check
          %p109 = pneg %p55
        $region22: #{tpu_custom_call.1} parent=19 // pred_check_branch
          %111 = sbr.rel (%p109) target = $region24
        $region23: #{tpu_custom_call.1} parent=19 // pred_region
          %s112 = sand.u32 %s45, 1
          %s113 = scalar_lea.sflag [#allocation3], %s112
          %s114 = sand.u32 %s45, 1
          %s115 = smul.addr %s114, 256
          %s116 = scalar_lea.vmem [#allocation2], %s115
          %s117 = smul.u32 4, %s14
          %119 = vsyncadd %s113, 0
          %s120 = smul.addr %s117, 8
          %s121 = smul.addr %s120, 8
          %s122 = scalar_lea.hbm %s1, %s121
          %s123 = sshll.u32 %s122, 4
          %s124 = int_to_ptr.hbm [resolvable:$true] %s123
          %s125 = sshll.u32 %s116, 4
          %s126 = int_to_ptr.vmem [resolvable:$true] %s125
          %131 = dma.hbm_to_vmem [thread:$0]  %s124, 4096, %s126, %s113, 128, 128, 8
        $region24: #{tpu_custom_call.1} parent=19 // pred_fallthru
          _
      $region20: #{tpu_custom_call.1} parent=5 // pred_fallthru
        _
      %p132 = scmp.le.s32.totalorder 1, %s14
      %p133 = scmp.lt.s32.totalorder %s14, 3
      %p134 = pnand %p132, %p133
      %p135 = pneg %p134
      // Predicated region
      $region25: #{tpu_custom_call.1} parent=5 // pred_check
        _
      $region26: #{tpu_custom_call.1} parent=5 // pred_check_branch
        %137 = sbr.rel (%p134) target = $region28
      $region27: #{tpu_custom_call.1} parent=5 // pred_region
        %s138 = ssub.s32 %s14, 1
        %s139 = sand.u32 %s48, 1
        %s140 = scalar_lea.sflag [#allocation3], %s139
        %s141 = sand.u32 %s48, 1
        %s142 = smul.addr %s141, 256
        %s143 = scalar_lea.vmem [#allocation2], %s142
        // Predicated region
        $region29: #{tpu_custom_call.1} parent=27 // pred_check
          %p144 = pneg %p61
        $region30: #{tpu_custom_call.1} parent=27 // pred_check_branch
          %146 = sbr.rel (%p144) target = $region32
        $region31: #{tpu_custom_call.1} parent=27 // pred_region
          %148 = dma.done %s140, 4096
        $region32: #{tpu_custom_call.1} parent=27 // pred_fallthru
          _
        %p149 = pneg %p35
        %p150 = pneg %p32
        %s151 = sand.u32 %s48, 1
        %s152 = scalar_lea.sflag [#allocation3], %s151
        %s153 = sand.u32 %s48, 1
        %s154 = smul.addr %s153, 256
        %s155 = scalar_lea.vmem [#allocation2], %s154
        %p156 = pneg %p61
        %p157 = pneg %p58
        %p158 = pneg %p87
        %p159 = pneg %p84
        %s160 = sand.u32 %s74, 1
        %s161 = scalar_lea.sflag [#allocation4], %s160
        %s162 = sand.u32 %s74, 1
        %s163 = smul.addr %s162, 32
        %s164 = scalar_lea.vmem [#allocation5], %s163
        %s165 = smul.u32 4, %s19
        %s166 = smul.u32 4, %s19
        %v168 = vld [vmem:[%s0] sm:$0xf]
        %v169 = vld [vmem:[%s0 + $0x4] sm:$0xf]
        %v170 = vld [vmem:[%s0 + $0x8] sm:$0xf]
        %v171 = vld [vmem:[%s0 + $0xc] sm:$0xf]
        %v172 = vld [vmem:[%s0 + $0x10] sm:$0xf]
        %v173 = vld [vmem:[%s0 + $0x14] sm:$0xf]
        %v174 = vld [vmem:[%s0 + $0x18] sm:$0xf]
        %v175 = vld [vmem:[%s0 + $0x1c] sm:$0xf]
        %v176 = vld [vmem:[%s143] sm:$0x1]
        %v177 = vld [vmem:[%s143 + $0x40] sm:$0x1]
        %v178 = vld [vmem:[%s143 + $0x80] sm:$0x1]
        %v179 = vld [vmem:[%s143 + $0xc0] sm:$0x1]
        %v180 = vmul.f32 %v176, -0.09375
        %v181 = vmul.f32 %v177, -0.09375
        %v182 = vmul.f32 %v178, -0.09375
        %v183 = vmul.f32 %v179, -0.09375
        %v184 = vmul.f32 %v176, 0.59375
        %v185 = vmul.f32 %v177, 0.59375
        %v186 = vmul.f32 %v178, 0.59375
        %v187 = vmul.f32 %v179, 0.59375
        %v188 = vadd.f32 %v180, %v184
        %v189 = vadd.f32 %v181, %v185
        %v190 = vadd.f32 %v182, %v186
        %v191 = vadd.f32 %v183, %v187
        %v192 = vld [vmem:[%s143 + $0x1] sm:$0x1]
        %v193 = vld [vmem:[%s143 + $0x41] sm:$0x1]
        %v194 = vld [vmem:[%s143 + $0x81] sm:$0x1]
        %v195 = vld [vmem:[%s143 + $0xc1] sm:$0x1]
        %v196 = vmul.f32 %v192, 0.59375
        %v197 = vmul.f32 %v193, 0.59375
        %v198 = vmul.f32 %v194, 0.59375
        %v199 = vmul.f32 %v195, 0.59375
        %v200 = vadd.f32 %v188, %v196
        %v201 = vadd.f32 %v189, %v197
        %v202 = vadd.f32 %v190, %v198
        %v203 = vadd.f32 %v191, %v199
        %v204 = vld [vmem:[%s143 + $0x2] sm:$0x1]
        %v205 = vld [vmem:[%s143 + $0x42] sm:$0x1]
        %v206 = vld [vmem:[%s143 + $0x82] sm:$0x1]
        %v207 = vld [vmem:[%s143 + $0xc2] sm:$0x1]
        %v208 = vmul.f32 %v204, -0.09375
        %v209 = vmul.f32 %v205, -0.09375
        %v210 = vmul.f32 %v206, -0.09375
        %v211 = vmul.f32 %v207, -0.09375
        %v212 = vadd.f32 %v200, %v208
        %v213 = vadd.f32 %v201, %v209
        %v214 = vadd.f32 %v202, %v210
        %v215 = vadd.f32 %v203, %v211
        %v216 = vpack.c.bf16 %v212, %v212
        %v217 = vpack.c.bf16 %v213, %v213
        %v218 = vpack.c.bf16 %v214, %v214
        %v219 = vpack.c.bf16 %v215, %v215
        %v224 = vunpack.c.l.b16 %v216
        %v225 = vunpack.c.l.b16 %v217
        %v226 = vunpack.c.l.b16 %v218
        %v227 = vunpack.c.l.b16 %v219
        %v228 = vrot.slane %v225, 7
        %vm229 = vcmask 1041409
        %v230 = vsel %vm229, %v228, %v224
        %v231 = vrot.slane %v226, 6
        %vm232 = vcmask 1042434
        %v233 = vsel %vm232, %v231, %v230
        %v234 = vrot.slane %v227, 5
        %vm235 = vcmask 1043459
        %v236 = vsel %vm235, %v234, %v233
        %v237 = vpack.c.b16 %v236, %v236
        %v246 = vunpack.c.l.b16 %v168
        %v247 = vunpack.c.l.b16 %v169
        %v248 = vunpack.c.l.b16 %v170
        %v249 = vunpack.c.l.b16 %v171
        %v250 = vunpack.c.l.b16 %v172
        %v251 = vunpack.c.l.b16 %v173
        %v252 = vunpack.c.l.b16 %v174
        %v253 = vunpack.c.l.b16 %v175
        %v254 = vpack.c.b16 %v247, %v246
        %v255 = vpack.c.b16 %v249, %v248
        %v256 = vpack.c.b16 %v251, %v250
        %v257 = vpack.c.b16 %v253, %v252
        %vm262 = vcmask 523264
        %v264 = vsel %vm262, %v237, 0
        %266 = vmatpush.bf16.msra.mxu0 0
        %267 = vmatpush.bf16.msra.mxu0 0
        %268 = vmatpush.bf16.msra.mxu0 0
        %269 = vmatpush.bf16.msra.mxu0 0
        %270 = vmatpush.bf16.msra.mxu0 %v257
        %271 = vmatpush.bf16.msra.mxu0 %v256
        %272 = vmatpush.bf16.msra.mxu0 %v255
        %273 = vmatpush.bf16.msra.mxu0 %v254
        %274 = vmatmul.bf16.gmra.mxu0 %v264
        %v275 = vpop.f32.mrf.mxu0
        %v276 = vadd.f32 0.0, %v275
        %v277 = vpop.f32.mrf.mxu0
        %278 = vdwg.mxu0
        %v280 = vrot.slane %v276, 1
        %v281 = vrot.slane %v276, 2
        %v282 = vrot.slane %v276, 3
        %vm286 = vcmask 253952
        %287 = vst.msk [vmem:[%s164] sm:$0x1] %vm286, %v276
        %288 = vst.msk [vmem:[%s164 + $0x8] sm:$0x1] %vm286, %v280
        %289 = vst.msk [vmem:[%s164 + $0x10] sm:$0x1] %vm286, %v281
        %290 = vst.msk [vmem:[%s164 + $0x18] sm:$0x1] %vm286, %v282
        %v291 = vld [vmem:[%s143 + $0x1] sm:$0x1]
        %v292 = vld [vmem:[%s143 + $0x41] sm:$0x1]
        %v293 = vld [vmem:[%s143 + $0x81] sm:$0x1]
        %v294 = vld [vmem:[%s143 + $0xc1] sm:$0x1]
        %v295 = vmul.f32 %v291, -0.09375
        %v296 = vmul.f32 %v292, -0.09375
        %v297 = vmul.f32 %v293, -0.09375
        %v298 = vmul.f32 %v294, -0.09375
        %v299 = vld [vmem:[%s143 + $0x2] sm:$0x1]
        %v300 = vld [vmem:[%s143 + $0x42] sm:$0x1]
        %v301 = vld [vmem:[%s143 + $0x82] sm:$0x1]
        %v302 = vld [vmem:[%s143 + $0xc2] sm:$0x1]
        %v303 = vmul.f32 %v299, 0.59375
        %v304 = vmul.f32 %v300, 0.59375
        %v305 = vmul.f32 %v301, 0.59375
        %v306 = vmul.f32 %v302, 0.59375
        %v307 = vadd.f32 %v295, %v303
        %v308 = vadd.f32 %v296, %v304
        %v309 = vadd.f32 %v297, %v305
        %v310 = vadd.f32 %v298, %v306
        %v311 = vld [vmem:[%s143 + $0x3] sm:$0x1]
        %v312 = vld [vmem:[%s143 + $0x43] sm:$0x1]
        %v313 = vld [vmem:[%s143 + $0x83] sm:$0x1]
        %v314 = vld [vmem:[%s143 + $0xc3] sm:$0x1]
        %v315 = vmul.f32 %v311, 0.59375
        %v316 = vmul.f32 %v312, 0.59375
        %v317 = vmul.f32 %v313, 0.59375
        %v318 = vmul.f32 %v314, 0.59375
        %v319 = vadd.f32 %v307, %v315
        %v320 = vadd.f32 %v308, %v316
        %v321 = vadd.f32 %v309, %v317
        %v322 = vadd.f32 %v310, %v318
        %v323 = vld [vmem:[%s143 + $0x4] sm:$0x1]
        %v324 = vld [vmem:[%s143 + $0x44] sm:$0x1]
        %v325 = vld [vmem:[%s143 + $0x84] sm:$0x1]
        %v326 = vld [vmem:[%s143 + $0xc4] sm:$0x1]
        %v327 = vmul.f32 %v323, -0.09375
        %v328 = vmul.f32 %v324, -0.09375
        %v329 = vmul.f32 %v325, -0.09375
        %v330 = vmul.f32 %v326, -0.09375
        %v331 = vadd.f32 %v319, %v327
        %v332 = vadd.f32 %v320, %v328
        %v333 = vadd.f32 %v321, %v329
        %v334 = vadd.f32 %v322, %v330
        %v335 = vpack.c.bf16 %v331, %v331
        %v336 = vpack.c.bf16 %v332, %v332
        %v337 = vpack.c.bf16 %v333, %v333
        %v338 = vpack.c.bf16 %v334, %v334
        %v343 = vunpack.c.l.b16 %v335
        %v344 = vunpack.c.l.b16 %v336
        %v345 = vunpack.c.l.b16 %v337
        %v346 = vunpack.c.l.b16 %v338
        %v347 = vrot.slane %v344, 7
        %v348 = vsel %vm229, %v347, %v343
        %v349 = vrot.slane %v345, 6
        %v350 = vsel %vm232, %v349, %v348
        %v351 = vrot.slane %v346, 5
        %v352 = vsel %vm235, %v351, %v350
        %v353 = vpack.c.b16 %v352, %v352
        %v355 = vsel %vm262, %v353, 0
        %357 = vmatpush.bf16.msra.mxu0 0
        %358 = vmatpush.bf16.msra.mxu0 0
        %359 = vmatpush.bf16.msra.mxu0 0
        %360 = vmatpush.bf16.msra.mxu0 0
        %361 = vmatpush.bf16.msra.mxu0 %v257
        %362 = vmatpush.bf16.msra.mxu0 %v256
        %363 = vmatpush.bf16.msra.mxu0 %v255
        %364 = vmatpush.bf16.msra.mxu0 %v254
        %365 = vmatmul.bf16.gmra.mxu0 %v355
        %v366 = vpop.f32.mrf.mxu0
        %v367 = vadd.f32 0.0, %v366
        %v368 = vpop.f32.mrf.mxu0
        %369 = vdwg.mxu0
        %v371 = vrot.slane %v367, 1
        %v372 = vrot.slane %v367, 2
        %v373 = vrot.slane %v367, 3
        %v374 = vperm.slane %v367, 0
        %v375 = vperm.slane %v371, 0
        %v376 = vperm.slane %v372, 0
        %v377 = vperm.slane %v373, 0
        %378 = vrot.lane.b32.xlu0 %v374, 32
        %v379 = vpop.permute.xlu0 %378
        %380 = vrot.lane.b32.xlu0 %v375, 32
        %v381 = vpop.permute.xlu0 %380
        %382 = vrot.lane.b32.xlu0 %v376, 32
        %v383 = vpop.permute.xlu0 %382
        %384 = vrot.lane.b32.xlu0 %v377, 32
        %v385 = vpop.permute.xlu0 %384
        %vm390 = vcmask 516352
        %391 = vst.msk [vmem:[%s164] sm:$0x1] %vm390, %v379
        %392 = vst.msk [vmem:[%s164 + $0x8] sm:$0x1] %vm390, %v381
        %393 = vst.msk [vmem:[%s164 + $0x10] sm:$0x1] %vm390, %v383
        %394 = vst.msk [vmem:[%s164 + $0x18] sm:$0x1] %vm390, %v385
        %v395 = vld [vmem:[%s143 + $0x3] sm:$0x1]
        %v396 = vld [vmem:[%s143 + $0x43] sm:$0x1]
        %v397 = vld [vmem:[%s143 + $0x83] sm:$0x1]
        %v398 = vld [vmem:[%s143 + $0xc3] sm:$0x1]
        %v399 = vmul.f32 %v395, -0.09375
        %v400 = vmul.f32 %v396, -0.09375
        %v401 = vmul.f32 %v397, -0.09375
        %v402 = vmul.f32 %v398, -0.09375
        %v403 = vld [vmem:[%s143 + $0x4] sm:$0x1]
        %v404 = vld [vmem:[%s143 + $0x44] sm:$0x1]
        %v405 = vld [vmem:[%s143 + $0x84] sm:$0x1]
        %v406 = vld [vmem:[%s143 + $0xc4] sm:$0x1]
        %v407 = vmul.f32 %v403, 0.59375
        %v408 = vmul.f32 %v404, 0.59375
        %v409 = vmul.f32 %v405, 0.59375
        %v410 = vmul.f32 %v406, 0.59375
        %v411 = vadd.f32 %v399, %v407
        %v412 = vadd.f32 %v400, %v408
        %v413 = vadd.f32 %v401, %v409
        %v414 = vadd.f32 %v402, %v410
        %v415 = vld [vmem:[%s143 + $0x5] sm:$0x1]
        %v416 = vld [vmem:[%s143 + $0x45] sm:$0x1]
        %v417 = vld [vmem:[%s143 + $0x85] sm:$0x1]
        %v418 = vld [vmem:[%s143 + $0xc5] sm:$0x1]
        %v419 = vmul.f32 %v415, 0.59375
        %v420 = vmul.f32 %v416, 0.59375
        %v421 = vmul.f32 %v417, 0.59375
        %v422 = vmul.f32 %v418, 0.59375
        %v423 = vadd.f32 %v411, %v419
        %v424 = vadd.f32 %v412, %v420
        %v425 = vadd.f32 %v413, %v421
        %v426 = vadd.f32 %v414, %v422
        %v427 = vld [vmem:[%s143 + $0x6] sm:$0x1]
        %v428 = vld [vmem:[%s143 + $0x46] sm:$0x1]
        %v429 = vld [vmem:[%s143 + $0x86] sm:$0x1]
        %v430 = vld [vmem:[%s143 + $0xc6] sm:$0x1]
        %v431 = vmul.f32 %v427, -0.09375
        %v432 = vmul.f32 %v428, -0.09375
        %v433 = vmul.f32 %v429, -0.09375
        %v434 = vmul.f32 %v430, -0.09375
        %v435 = vadd.f32 %v423, %v431
        %v436 = vadd.f32 %v424, %v432
        %v437 = vadd.f32 %v425, %v433
        %v438 = vadd.f32 %v426, %v434
        %v439 = vpack.c.bf16 %v435, %v435
        %v440 = vpack.c.bf16 %v436, %v436
        %v441 = vpack.c.bf16 %v437, %v437
        %v442 = vpack.c.bf16 %v438, %v438
        %v447 = vunpack.c.l.b16 %v439
        %v448 = vunpack.c.l.b16 %v440
        %v449 = vunpack.c.l.b16 %v441
        %v450 = vunpack.c.l.b16 %v442
        %v451 = vrot.slane %v448, 7
        %v452 = vsel %vm229, %v451, %v447
        %v453 = vrot.slane %v449, 6
        %v454 = vsel %vm232, %v453, %v452
        %v455 = vrot.slane %v450, 5
        %v456 = vsel %vm235, %v455, %v454
        %v457 = vpack.c.b16 %v456, %v456
        %v459 = vsel %vm262, %v457, 0
        %461 = vmatpush.bf16.msra.mxu0 0
        %462 = vmatpush.bf16.msra.mxu0 0
        %463 = vmatpush.bf16.msra.mxu0 0
        %464 = vmatpush.bf16.msra.mxu0 0
        %465 = vmatpush.bf16.msra.mxu0 %v257
        %466 = vmatpush.bf16.msra.mxu0 %v256
        %467 = vmatpush.bf16.msra.mxu0 %v255
        %468 = vmatpush.bf16.msra.mxu0 %v254
        %469 = vmatmul.bf16.gmra.mxu0 %v459
        %v470 = vpop.f32.mrf.mxu0
        %v471 = vadd.f32 0.0, %v470
        %v472 = vpop.f32.mrf.mxu0
        %473 = vdwg.mxu0
        %v475 = vrot.slane %v471, 1
        %v476 = vrot.slane %v471, 2
        %v477 = vrot.slane %v471, 3
        %v478 = vperm.slane %v471, 0
        %v479 = vperm.slane %v475, 0
        %v480 = vperm.slane %v476, 0
        %v481 = vperm.slane %v477, 0
        %482 = vrot.lane.b32.xlu0 %v478, 64
        %v483 = vpop.permute.xlu0 %482
        %484 = vrot.lane.b32.xlu0 %v479, 64
        %v485 = vpop.permute.xlu0 %484
        %486 = vrot.lane.b32.xlu0 %v480, 64
        %v487 = vpop.permute.xlu0 %486
        %488 = vrot.lane.b32.xlu0 %v481, 64
        %v489 = vpop.permute.xlu0 %488
        %vm494 = vcmask 778752
        %495 = vst.msk [vmem:[%s164] sm:$0x1] %vm494, %v483
        %496 = vst.msk [vmem:[%s164 + $0x8] sm:$0x1] %vm494, %v485
        %497 = vst.msk [vmem:[%s164 + $0x10] sm:$0x1] %vm494, %v487
        %498 = vst.msk [vmem:[%s164 + $0x18] sm:$0x1] %vm494, %v489
        %v499 = vld [vmem:[%s143 + $0x5] sm:$0x1]
        %v500 = vld [vmem:[%s143 + $0x45] sm:$0x1]
        %v501 = vld [vmem:[%s143 + $0x85] sm:$0x1]
        %v502 = vld [vmem:[%s143 + $0xc5] sm:$0x1]
        %v503 = vmul.f32 %v499, -0.09375
        %v504 = vmul.f32 %v500, -0.09375
        %v505 = vmul.f32 %v501, -0.09375
        %v506 = vmul.f32 %v502, -0.09375
        %v507 = vld [vmem:[%s143 + $0x6] sm:$0x1]
        %v508 = vld [vmem:[%s143 + $0x46] sm:$0x1]
        %v509 = vld [vmem:[%s143 + $0x86] sm:$0x1]
        %v510 = vld [vmem:[%s143 + $0xc6] sm:$0x1]
        %v511 = vmul.f32 %v507, 0.59375
        %v512 = vmul.f32 %v508, 0.59375
        %v513 = vmul.f32 %v509, 0.59375
        %v514 = vmul.f32 %v510, 0.59375
        %v515 = vadd.f32 %v503, %v511
        %v516 = vadd.f32 %v504, %v512
        %v517 = vadd.f32 %v505, %v513
        %v518 = vadd.f32 %v506, %v514
        %v519 = vld [vmem:[%s143 + $0x7] sm:$0x1]
        %v520 = vld [vmem:[%s143 + $0x47] sm:$0x1]
        %v521 = vld [vmem:[%s143 + $0x87] sm:$0x1]
        %v522 = vld [vmem:[%s143 + $0xc7] sm:$0x1]
        %v523 = vmul.f32 %v519, 0.59375
        %v524 = vmul.f32 %v520, 0.59375
        %v525 = vmul.f32 %v521, 0.59375
        %v526 = vmul.f32 %v522, 0.59375
        %v527 = vadd.f32 %v515, %v523
        %v528 = vadd.f32 %v516, %v524
        %v529 = vadd.f32 %v517, %v525
        %v530 = vadd.f32 %v518, %v526
        %v531 = vld [vmem:[%s143 + $0x8] sm:$0x1]
        %v532 = vld [vmem:[%s143 + $0x48] sm:$0x1]
        %v533 = vld [vmem:[%s143 + $0x88] sm:$0x1]
        %v534 = vld [vmem:[%s143 + $0xc8] sm:$0x1]
        %v535 = vmul.f32 %v531, -0.09375
        %v536 = vmul.f32 %v532, -0.09375
        %v537 = vmul.f32 %v533, -0.09375
        %v538 = vmul.f32 %v534, -0.09375
        %v539 = vadd.f32 %v527, %v535
        %v540 = vadd.f32 %v528, %v536
        %v541 = vadd.f32 %v529, %v537
        %v542 = vadd.f32 %v530, %v538
        %v543 = vpack.c.bf16 %v539, %v539
        %v544 = vpack.c.bf16 %v540, %v540
        %v545 = vpack.c.bf16 %v541, %v541
        %v546 = vpack.c.bf16 %v542, %v542
        %v551 = vunpack.c.l.b16 %v543
        %v552 = vunpack.c.l.b16 %v544
        %v553 = vunpack.c.l.b16 %v545
        %v554 = vunpack.c.l.b16 %v546
        %v555 = vrot.slane %v552, 7
        %v556 = vsel %vm229, %v555, %v551
        %v557 = vrot.slane %v553, 6
        %v558 = vsel %vm232, %v557, %v556
        %v559 = vrot.slane %v554, 5
        %v560 = vsel %vm235, %v559, %v558
        %v561 = vpack.c.b16 %v560, %v560
        %v563 = vsel %vm262, %v561, 0
        %565 = vmatpush.bf16.msra.mxu0 0
        %566 = vmatpush.bf16.msra.mxu0 0
        %567 = vmatpush.bf16.msra.mxu0 0
        %568 = vmatpush.bf16.msra.mxu0 0
        %569 = vmatpush.bf16.msra.mxu0 %v257
        %570 = vmatpush.bf16.msra.mxu0 %v256
        %571 = vmatpush.bf16.msra.mxu0 %v255
        %572 = vmatpush.bf16.msra.mxu0 %v254
        %573 = vmatmul.bf16.gmra.mxu0 %v563
        %v574 = vpop.f32.mrf.mxu0
        %v575 = vadd.f32 0.0, %v574
        %v576 = vpop.f32.mrf.mxu0
        %577 = vdwg.mxu0
        %v579 = vrot.slane %v575, 1
        %v580 = vrot.slane %v575, 2
        %v581 = vrot.slane %v575, 3
        %v582 = vperm.slane %v575, 0
        %v583 = vperm.slane %v579, 0
        %v584 = vperm.slane %v580, 0
        %v585 = vperm.slane %v581, 0
        %586 = vrot.lane.b32.xlu0 %v582, 96
        %v587 = vpop.permute.xlu0 %586
        %588 = vrot.lane.b32.xlu0 %v583, 96
        %v589 = vpop.permute.xlu0 %588
        %590 = vrot.lane.b32.xlu0 %v584, 96
        %v591 = vpop.permute.xlu0 %590
        %592 = vrot.lane.b32.xlu0 %v585, 96
        %v593 = vpop.permute.xlu0 %592
        %vm598 = vcmask 1041152
        %599 = vst.msk [vmem:[%s164] sm:$0x1] %vm598, %v587
        %600 = vst.msk [vmem:[%s164 + $0x8] sm:$0x1] %vm598, %v589
        %601 = vst.msk [vmem:[%s164 + $0x10] sm:$0x1] %vm598, %v591
        %602 = vst.msk [vmem:[%s164 + $0x18] sm:$0x1] %vm598, %v593
        %v603 = vld [vmem:[%s143 + $0x7] sm:$0x1]
        %v604 = vld [vmem:[%s143 + $0x47] sm:$0x1]
        %v605 = vld [vmem:[%s143 + $0x87] sm:$0x1]
        %v606 = vld [vmem:[%s143 + $0xc7] sm:$0x1]
        %v607 = vmul.f32 %v603, -0.09375
        %v608 = vmul.f32 %v604, -0.09375
        %v609 = vmul.f32 %v605, -0.09375
        %v610 = vmul.f32 %v606, -0.09375
        %v611 = vld [vmem:[%s143 + $0x8] sm:$0x1]
        %v612 = vld [vmem:[%s143 + $0x48] sm:$0x1]
        %v613 = vld [vmem:[%s143 + $0x88] sm:$0x1]
        %v614 = vld [vmem:[%s143 + $0xc8] sm:$0x1]
        %v615 = vmul.f32 %v611, 0.59375
        %v616 = vmul.f32 %v612, 0.59375
        %v617 = vmul.f32 %v613, 0.59375
        %v618 = vmul.f32 %v614, 0.59375
        %v619 = vadd.f32 %v607, %v615
        %v620 = vadd.f32 %v608, %v616
        %v621 = vadd.f32 %v609, %v617
        %v622 = vadd.f32 %v610, %v618
        %v623 = vld [vmem:[%s143 + $0x9] sm:$0x1]
        %v624 = vld [vmem:[%s143 + $0x49] sm:$0x1]
        %v625 = vld [vmem:[%s143 + $0x89] sm:$0x1]
        %v626 = vld [vmem:[%s143 + $0xc9] sm:$0x1]
        %v627 = vmul.f32 %v623, 0.59375
        %v628 = vmul.f32 %v624, 0.59375
        %v629 = vmul.f32 %v625, 0.59375
        %v630 = vmul.f32 %v626, 0.59375
        %v631 = vadd.f32 %v619, %v627
        %v632 = vadd.f32 %v620, %v628
        %v633 = vadd.f32 %v621, %v629
        %v634 = vadd.f32 %v622, %v630
        %v635 = vld [vmem:[%s143 + $0xa] sm:$0x1]
        %v636 = vld [vmem:[%s143 + $0x4a] sm:$0x1]
        %v637 = vld [vmem:[%s143 + $0x8a] sm:$0x1]
        %v638 = vld [vmem:[%s143 + $0xca] sm:$0x1]
        %v639 = vmul.f32 %v635, -0.09375
        %v640 = vmul.f32 %v636, -0.09375
        %v641 = vmul.f32 %v637, -0.09375
        %v642 = vmul.f32 %v638, -0.09375
        %v643 = vadd.f32 %v631, %v639
        %v644 = vadd.f32 %v632, %v640
        %v645 = vadd.f32 %v633, %v641
        %v646 = vadd.f32 %v634, %v642
        %v647 = vpack.c.bf16 %v643, %v643
        %v648 = vpack.c.bf16 %v644, %v644
        %v649 = vpack.c.bf16 %v645, %v645
        %v650 = vpack.c.bf16 %v646, %v646
        %v655 = vunpack.c.l.b16 %v647
        %v656 = vunpack.c.l.b16 %v648
        %v657 = vunpack.c.l.b16 %v649
        %v658 = vunpack.c.l.b16 %v650
        %v659 = vrot.slane %v656, 7
        %v660 = vsel %vm229, %v659, %v655
        %v661 = vrot.slane %v657, 6
        %v662 = vsel %vm232, %v661, %v660
        %v663 = vrot.slane %v658, 5
        %v664 = vsel %vm235, %v663, %v662
        %v665 = vpack.c.b16 %v664, %v664
        %v667 = vsel %vm262, %v665, 0
        %669 = vmatpush.bf16.msra.mxu0 0
        %670 = vmatpush.bf16.msra.mxu0 0
        %671 = vmatpush.bf16.msra.mxu0 0
        %672 = vmatpush.bf16.msra.mxu0 0
        %673 = vmatpush.bf16.msra.mxu0 %v257
        %674 = vmatpush.bf16.msra.mxu0 %v256
        %675 = vmatpush.bf16.msra.mxu0 %v255
        %676 = vmatpush.bf16.msra.mxu0 %v254
        %677 = vmatmul.bf16.gmra.mxu0 %v667
        %v678 = vpop.f32.mrf.mxu0
        %v679 = vadd.f32 0.0, %v678
        %v680 = vpop.f32.mrf.mxu0
        %681 = vdwg.mxu0
        %v683 = vrot.slane %v679, 1
        %v684 = vrot.slane %v679, 2
        %v685 = vrot.slane %v679, 3
        %689 = vst.msk [vmem:[%s164 + $0x1] sm:$0x1] %vm286, %v679
        %690 = vst.msk [vmem:[%s164 + $0x9] sm:$0x1] %vm286, %v683
        %691 = vst.msk [vmem:[%s164 + $0x11] sm:$0x1] %vm286, %v684
        %692 = vst.msk [vmem:[%s164 + $0x19] sm:$0x1] %vm286, %v685
        %v693 = vld [vmem:[%s143 + $0x9] sm:$0x1]
        %v694 = vld [vmem:[%s143 + $0x49] sm:$0x1]
        %v695 = vld [vmem:[%s143 + $0x89] sm:$0x1]
        %v696 = vld [vmem:[%s143 + $0xc9] sm:$0x1]
        %v697 = vmul.f32 %v693, -0.09375
        %v698 = vmul.f32 %v694, -0.09375
        %v699 = vmul.f32 %v695, -0.09375
        %v700 = vmul.f32 %v696, -0.09375
        %v701 = vld [vmem:[%s143 + $0xa] sm:$0x1]
        %v702 = vld [vmem:[%s143 + $0x4a] sm:$0x1]
        %v703 = vld [vmem:[%s143 + $0x8a] sm:$0x1]
        %v704 = vld [vmem:[%s143 + $0xca] sm:$0x1]
        %v705 = vmul.f32 %v701, 0.59375
        %v706 = vmul.f32 %v702, 0.59375
        %v707 = vmul.f32 %v703, 0.59375
        %v708 = vmul.f32 %v704, 0.59375
        %v709 = vadd.f32 %v697, %v705
        %v710 = vadd.f32 %v698, %v706
        %v711 = vadd.f32 %v699, %v707
        %v712 = vadd.f32 %v700, %v708
        %v713 = vld [vmem:[%s143 + $0xb] sm:$0x1]
        %v714 = vld [vmem:[%s143 + $0x4b] sm:$0x1]
        %v715 = vld [vmem:[%s143 + $0x8b] sm:$0x1]
        %v716 = vld [vmem:[%s143 + $0xcb] sm:$0x1]
        %v717 = vmul.f32 %v713, 0.59375
        %v718 = vmul.f32 %v714, 0.59375
        %v719 = vmul.f32 %v715, 0.59375
        %v720 = vmul.f32 %v716, 0.59375
        %v721 = vadd.f32 %v709, %v717
        %v722 = vadd.f32 %v710, %v718
        %v723 = vadd.f32 %v711, %v719
        %v724 = vadd.f32 %v712, %v720
        %v725 = vld [vmem:[%s143 + $0xc] sm:$0x1]
        %v726 = vld [vmem:[%s143 + $0x4c] sm:$0x1]
        %v727 = vld [vmem:[%s143 + $0x8c] sm:$0x1]
        %v728 = vld [vmem:[%s143 + $0xcc] sm:$0x1]
        %v729 = vmul.f32 %v725, -0.09375
        %v730 = vmul.f32 %v726, -0.09375
        %v731 = vmul.f32 %v727, -0.09375
        %v732 = vmul.f32 %v728, -0.09375
        %v733 = vadd.f32 %v721, %v729
        %v734 = vadd.f32 %v722, %v730
        %v735 = vadd.f32 %v723, %v731
        %v736 = vadd.f32 %v724, %v732
        %v737 = vpack.c.bf16 %v733, %v733
        %v738 = vpack.c.bf16 %v734, %v734
        %v739 = vpack.c.bf16 %v735, %v735
        %v740 = vpack.c.bf16 %v736, %v736
        %v745 = vunpack.c.l.b16 %v737
        %v746 = vunpack.c.l.b16 %v738
        %v747 = vunpack.c.l.b16 %v739
        %v748 = vunpack.c.l.b16 %v740
        %v749 = vrot.slane %v746, 7
        %v750 = vsel %vm229, %v749, %v745
        %v751 = vrot.slane %v747, 6
        %v752 = vsel %vm232, %v751, %v750
        %v753 = vrot.slane %v748, 5
        %v754 = vsel %vm235, %v753, %v752
        %v755 = vpack.c.b16 %v754, %v754
        %v757 = vsel %vm262, %v755, 0
        %759 = vmatpush.bf16.msra.mxu0 0
        %760 = vmatpush.bf16.msra.mxu0 0
        %761 = vmatpush.bf16.msra.mxu0 0
        %762 = vmatpush.bf16.msra.mxu0 0
        %763 = vmatpush.bf16.msra.mxu0 %v257
        %764 = vmatpush.bf16.msra.mxu0 %v256
        %765 = vmatpush.bf16.msra.mxu0 %v255
        %766 = vmatpush.bf16.msra.mxu0 %v254
        %767 = vmatmul.bf16.gmra.mxu0 %v757
        %v768 = vpop.f32.mrf.mxu0
        %v769 = vadd.f32 0.0, %v768
        %v770 = vpop.f32.mrf.mxu0
        %771 = vdwg.mxu0
        %v773 = vrot.slane %v769, 1
        %v774 = vrot.slane %v769, 2
        %v775 = vrot.slane %v769, 3
        %v776 = vperm.slane %v769, 0
        %v777 = vperm.slane %v773, 0
        %v778 = vperm.slane %v774, 0
        %v779 = vperm.slane %v775, 0
        %780 = vrot.lane.b32.xlu0 %v776, 32
        %v781 = vpop.permute.xlu0 %780
        %782 = vrot.lane.b32.xlu0 %v777, 32
        %v783 = vpop.permute.xlu0 %782
        %784 = vrot.lane.b32.xlu0 %v778, 32
        %v785 = vpop.permute.xlu0 %784
        %786 = vrot.lane.b32.xlu0 %v779, 32
        %v787 = vpop.permute.xlu0 %786
        %792 = vst.msk [vmem:[%s164 + $0x1] sm:$0x1] %vm390, %v781
        %793 = vst.msk [vmem:[%s164 + $0x9] sm:$0x1] %vm390, %v783
        %794 = vst.msk [vmem:[%s164 + $0x11] sm:$0x1] %vm390, %v785
        %795 = vst.msk [vmem:[%s164 + $0x19] sm:$0x1] %vm390, %v787
        %v796 = vld [vmem:[%s143 + $0xb] sm:$0x1]
        %v797 = vld [vmem:[%s143 + $0x4b] sm:$0x1]
        %v798 = vld [vmem:[%s143 + $0x8b] sm:$0x1]
        %v799 = vld [vmem:[%s143 + $0xcb] sm:$0x1]
        %v800 = vmul.f32 %v796, -0.09375
        %v801 = vmul.f32 %v797, -0.09375
        %v802 = vmul.f32 %v798, -0.09375
        %v803 = vmul.f32 %v799, -0.09375
        %v804 = vld [vmem:[%s143 + $0xc] sm:$0x1]
        %v805 = vld [vmem:[%s143 + $0x4c] sm:$0x1]
        %v806 = vld [vmem:[%s143 + $0x8c] sm:$0x1]
        %v807 = vld [vmem:[%s143 + $0xcc] sm:$0x1]
        %v808 = vmul.f32 %v804, 0.59375
        %v809 = vmul.f32 %v805, 0.59375
        %v810 = vmul.f32 %v806, 0.59375
        %v811 = vmul.f32 %v807, 0.59375
        %v812 = vadd.f32 %v800, %v808
        %v813 = vadd.f32 %v801, %v809
        %v814 = vadd.f32 %v802, %v810
        %v815 = vadd.f32 %v803, %v811
        %v816 = vld [vmem:[%s143 + $0xd] sm:$0x1]
        %v817 = vld [vmem:[%s143 + $0x4d] sm:$0x1]
        %v818 = vld [vmem:[%s143 + $0x8d] sm:$0x1]
        %v819 = vld [vmem:[%s143 + $0xcd] sm:$0x1]
        %v820 = vmul.f32 %v816, 0.59375
        %v821 = vmul.f32 %v817, 0.59375
        %v822 = vmul.f32 %v818, 0.59375
        %v823 = vmul.f32 %v819, 0.59375
        %v824 = vadd.f32 %v812, %v820
        %v825 = vadd.f32 %v813, %v821
        %v826 = vadd.f32 %v814, %v822
        %v827 = vadd.f32 %v815, %v823
        %v828 = vld [vmem:[%s143 + $0xe] sm:$0x1]
        %v829 = vld [vmem:[%s143 + $0x4e] sm:$0x1]
        %v830 = vld [vmem:[%s143 + $0x8e] sm:$0x1]
        %v831 = vld [vmem:[%s143 + $0xce] sm:$0x1]
        %v832 = vmul.f32 %v828, -0.09375
        %v833 = vmul.f32 %v829, -0.09375
        %v834 = vmul.f32 %v830, -0.09375
        %v835 = vmul.f32 %v831, -0.09375
        %v836 = vadd.f32 %v824, %v832
        %v837 = vadd.f32 %v825, %v833
        %v838 = vadd.f32 %v826, %v834
        %v839 = vadd.f32 %v827, %v835
        %v840 = vpack.c.bf16 %v836, %v836
        %v841 = vpack.c.bf16 %v837, %v837
        %v842 = vpack.c.bf16 %v838, %v838
        %v843 = vpack.c.bf16 %v839, %v839
        %v848 = vunpack.c.l.b16 %v840
        %v849 = vunpack.c.l.b16 %v841
        %v850 = vunpack.c.l.b16 %v842
        %v851 = vunpack.c.l.b16 %v843
        %v852 = vrot.slane %v849, 7
        %v853 = vsel %vm229, %v852, %v848
        %v854 = vrot.slane %v850, 6
        %v855 = vsel %vm232, %v854, %v853
        %v856 = vrot.slane %v851, 5
        %v857 = vsel %vm235, %v856, %v855
        %v858 = vpack.c.b16 %v857, %v857
        %v860 = vsel %vm262, %v858, 0
        %862 = vmatpush.bf16.msra.mxu0 0
        %863 = vmatpush.bf16.msra.mxu0 0
        %864 = vmatpush.bf16.msra.mxu0 0
        %865 = vmatpush.bf16.msra.mxu0 0
        %866 = vmatpush.bf16.msra.mxu0 %v257
        %867 = vmatpush.bf16.msra.mxu0 %v256
        %868 = vmatpush.bf16.msra.mxu0 %v255
        %869 = vmatpush.bf16.msra.mxu0 %v254
        %870 = vmatmul.bf16.gmra.mxu0 %v860
        %v871 = vpop.f32.mrf.mxu0
        %v872 = vadd.f32 0.0, %v871
        %v873 = vpop.f32.mrf.mxu0
        %874 = vdwg.mxu0
        %v876 = vrot.slane %v872, 1
        %v877 = vrot.slane %v872, 2
        %v878 = vrot.slane %v872, 3
        %v879 = vperm.slane %v872, 0
        %v880 = vperm.slane %v876, 0
        %v881 = vperm.slane %v877, 0
        %v882 = vperm.slane %v878, 0
        %883 = vrot.lane.b32.xlu0 %v879, 64
        %v884 = vpop.permute.xlu0 %883
        %885 = vrot.lane.b32.xlu0 %v880, 64
        %v886 = vpop.permute.xlu0 %885
        %887 = vrot.lane.b32.xlu0 %v881, 64
        %v888 = vpop.permute.xlu0 %887
        %889 = vrot.lane.b32.xlu0 %v882, 64
        %v890 = vpop.permute.xlu0 %889
        %895 = vst.msk [vmem:[%s164 + $0x1] sm:$0x1] %vm494, %v884
        %896 = vst.msk [vmem:[%s164 + $0x9] sm:$0x1] %vm494, %v886
        %897 = vst.msk [vmem:[%s164 + $0x11] sm:$0x1] %vm494, %v888
        %898 = vst.msk [vmem:[%s164 + $0x19] sm:$0x1] %vm494, %v890
        %v899 = vld [vmem:[%s143 + $0xd] sm:$0x1]
        %v900 = vld [vmem:[%s143 + $0x4d] sm:$0x1]
        %v901 = vld [vmem:[%s143 + $0x8d] sm:$0x1]
        %v902 = vld [vmem:[%s143 + $0xcd] sm:$0x1]
        %v903 = vmul.f32 %v899, -0.09375
        %v904 = vmul.f32 %v900, -0.09375
        %v905 = vmul.f32 %v901, -0.09375
        %v906 = vmul.f32 %v902, -0.09375
        %v907 = vld [vmem:[%s143 + $0xe] sm:$0x1]
        %v908 = vld [vmem:[%s143 + $0x4e] sm:$0x1]
        %v909 = vld [vmem:[%s143 + $0x8e] sm:$0x1]
        %v910 = vld [vmem:[%s143 + $0xce] sm:$0x1]
        %v911 = vmul.f32 %v907, 0.59375
        %v912 = vmul.f32 %v908, 0.59375
        %v913 = vmul.f32 %v909, 0.59375
        %v914 = vmul.f32 %v910, 0.59375
        %v915 = vadd.f32 %v903, %v911
        %v916 = vadd.f32 %v904, %v912
        %v917 = vadd.f32 %v905, %v913
        %v918 = vadd.f32 %v906, %v914
        %v919 = vld [vmem:[%s143 + $0xf] sm:$0x1]
        %v920 = vld [vmem:[%s143 + $0x4f] sm:$0x1]
        %v921 = vld [vmem:[%s143 + $0x8f] sm:$0x1]
        %v922 = vld [vmem:[%s143 + $0xcf] sm:$0x1]
        %v923 = vmul.f32 %v919, 0.59375
        %v924 = vmul.f32 %v920, 0.59375
        %v925 = vmul.f32 %v921, 0.59375
        %v926 = vmul.f32 %v922, 0.59375
        %v927 = vadd.f32 %v915, %v923
        %v928 = vadd.f32 %v916, %v924
        %v929 = vadd.f32 %v917, %v925
        %v930 = vadd.f32 %v918, %v926
        %v931 = vld [vmem:[%s143 + $0x10] sm:$0x1]
        %v932 = vld [vmem:[%s143 + $0x50] sm:$0x1]
        %v933 = vld [vmem:[%s143 + $0x90] sm:$0x1]
        %v934 = vld [vmem:[%s143 + $0xd0] sm:$0x1]
        %v935 = vmul.f32 %v931, -0.09375
        %v936 = vmul.f32 %v932, -0.09375
        %v937 = vmul.f32 %v933, -0.09375
        %v938 = vmul.f32 %v934, -0.09375
        %v939 = vadd.f32 %v927, %v935
        %v940 = vadd.f32 %v928, %v936
        %v941 = vadd.f32 %v929, %v937
        %v942 = vadd.f32 %v930, %v938
        %v943 = vpack.c.bf16 %v939, %v939
        %v944 = vpack.c.bf16 %v940, %v940
        %v945 = vpack.c.bf16 %v941, %v941
        %v946 = vpack.c.bf16 %v942, %v942
        %v951 = vunpack.c.l.b16 %v943
        %v952 = vunpack.c.l.b16 %v944
        %v953 = vunpack.c.l.b16 %v945
        %v954 = vunpack.c.l.b16 %v946
        %v955 = vrot.slane %v952, 7
        %v956 = vsel %vm229, %v955, %v951
        %v957 = vrot.slane %v953, 6
        %v958 = vsel %vm232, %v957, %v956
        %v959 = vrot.slane %v954, 5
        %v960 = vsel %vm235, %v959, %v958
        %v961 = vpack.c.b16 %v960, %v960
        %v963 = vsel %vm262, %v961, 0
        %965 = vmatpush.bf16.msra.mxu0 0
        %966 = vmatpush.bf16.msra.mxu0 0
        %967 = vmatpush.bf16.msra.mxu0 0
        %968 = vmatpush.bf16.msra.mxu0 0
        %969 = vmatpush.bf16.msra.mxu0 %v257
        %970 = vmatpush.bf16.msra.mxu0 %v256
        %971 = vmatpush.bf16.msra.mxu0 %v255
        %972 = vmatpush.bf16.msra.mxu0 %v254
        %973 = vmatmul.bf16.gmra.mxu0 %v963
        %v974 = vpop.f32.mrf.mxu0
        %v975 = vadd.f32 0.0, %v974
        %v976 = vpop.f32.mrf.mxu0
        %977 = vdwg.mxu0
        %v979 = vrot.slane %v975, 1
        %v980 = vrot.slane %v975, 2
        %v981 = vrot.slane %v975, 3
        %v982 = vperm.slane %v975, 0
        %v983 = vperm.slane %v979, 0
        %v984 = vperm.slane %v980, 0
        %v985 = vperm.slane %v981, 0
        %986 = vrot.lane.b32.xlu0 %v982, 96
        %v987 = vpop.permute.xlu0 %986
        %988 = vrot.lane.b32.xlu0 %v983, 96
        %v989 = vpop.permute.xlu0 %988
        %990 = vrot.lane.b32.xlu0 %v984, 96
        %v991 = vpop.permute.xlu0 %990
        %992 = vrot.lane.b32.xlu0 %v985, 96
        %v993 = vpop.permute.xlu0 %992
        %998 = vst.msk [vmem:[%s164 + $0x1] sm:$0x1] %vm598, %v987
        %999 = vst.msk [vmem:[%s164 + $0x9] sm:$0x1] %vm598, %v989
        %1000 = vst.msk [vmem:[%s164 + $0x11] sm:$0x1] %vm598, %v991
        %1001 = vst.msk [vmem:[%s164 + $0x19] sm:$0x1] %vm598, %v993
        %v1002 = vld [vmem:[%s143 + $0xf] sm:$0x1]
        %v1003 = vld [vmem:[%s143 + $0x4f] sm:$0x1]
        %v1004 = vld [vmem:[%s143 + $0x8f] sm:$0x1]
        %v1005 = vld [vmem:[%s143 + $0xcf] sm:$0x1]
        %v1006 = vmul.f32 %v1002, -0.09375
        %v1007 = vmul.f32 %v1003, -0.09375
        %v1008 = vmul.f32 %v1004, -0.09375
        %v1009 = vmul.f32 %v1005, -0.09375
        %v1010 = vld [vmem:[%s143 + $0x10] sm:$0x1]
        %v1011 = vld [vmem:[%s143 + $0x50] sm:$0x1]
        %v1012 = vld [vmem:[%s143 + $0x90] sm:$0x1]
        %v1013 = vld [vmem:[%s143 + $0xd0] sm:$0x1]
        %v1014 = vmul.f32 %v1010, 0.59375
        %v1015 = vmul.f32 %v1011, 0.59375
        %v1016 = vmul.f32 %v1012, 0.59375
        %v1017 = vmul.f32 %v1013, 0.59375
        %v1018 = vadd.f32 %v1006, %v1014
        %v1019 = vadd.f32 %v1007, %v1015
        %v1020 = vadd.f32 %v1008, %v1016
        %v1021 = vadd.f32 %v1009, %v1017
        %v1022 = vld [vmem:[%s143 + $0x11] sm:$0x1]
        %v1023 = vld [vmem:[%s143 + $0x51] sm:$0x1]
        %v1024 = vld [vmem:[%s143 + $0x91] sm:$0x1]
        %v1025 = vld [vmem:[%s143 + $0xd1] sm:$0x1]
        %v1026 = vmul.f32 %v1022, 0.59375
        %v1027 = vmul.f32 %v1023, 0.59375
        %v1028 = vmul.f32 %v1024, 0.59375
        %v1029 = vmul.f32 %v1025, 0.59375
        %v1030 = vadd.f32 %v1018, %v1026
        %v1031 = vadd.f32 %v1019, %v1027
        %v1032 = vadd.f32 %v1020, %v1028
        %v1033 = vadd.f32 %v1021, %v1029
        %v1034 = vld [vmem:[%s143 + $0x12] sm:$0x1]
        %v1035 = vld [vmem:[%s143 + $0x52] sm:$0x1]
        %v1036 = vld [vmem:[%s143 + $0x92] sm:$0x1]
        %v1037 = vld [vmem:[%s143 + $0xd2] sm:$0x1]
        %v1038 = vmul.f32 %v1034, -0.09375
        %v1039 = vmul.f32 %v1035, -0.09375
        %v1040 = vmul.f32 %v1036, -0.09375
        %v1041 = vmul.f32 %v1037, -0.09375
        %v1042 = vadd.f32 %v1030, %v1038
        %v1043 = vadd.f32 %v1031, %v1039
        %v1044 = vadd.f32 %v1032, %v1040
        %v1045 = vadd.f32 %v1033, %v1041
        %v1046 = vpack.c.bf16 %v1042, %v1042
        %v1047 = vpack.c.bf16 %v1043, %v1043
        %v1048 = vpack.c.bf16 %v1044, %v1044
        %v1049 = vpack.c.bf16 %v1045, %v1045
        %v1054 = vunpack.c.l.b16 %v1046
        %v1055 = vunpack.c.l.b16 %v1047
        %v1056 = vunpack.c.l.b16 %v1048
        %v1057 = vunpack.c.l.b16 %v1049
        %v1058 = vrot.slane %v1055, 7
        %v1059 = vsel %vm229, %v1058, %v1054
        %v1060 = vrot.slane %v1056, 6
        %v1061 = vsel %vm232, %v1060, %v1059
        %v1062 = vrot.slane %v1057, 5
        %v1063 = vsel %vm235, %v1062, %v1061
        %v1064 = vpack.c.b16 %v1063, %v1063
        %v1066 = vsel %vm262, %v1064, 0
        %1068 = vmatpush.bf16.msra.mxu0 0
        %1069 = vmatpush.bf16.msra.mxu0 0
        %1070 = vmatpush.bf16.msra.mxu0 0
        %1071 = vmatpush.bf16.msra.mxu0 0
        %1072 = vmatpush.bf16.msra.mxu0 %v257
        %1073 = vmatpush.bf16.msra.mxu0 %v256
        %1074 = vmatpush.bf16.msra.mxu0 %v255
        %1075 = vmatpush.bf16.msra.mxu0 %v254
        %1076 = vmatmul.bf16.gmra.mxu0 %v1066
        %v1077 = vpop.f32.mrf.mxu0
        %v1078 = vadd.f32 0.0, %v1077
        %v1079 = vpop.f32.mrf.mxu0
        %1080 = vdwg.mxu0
        %v1082 = vrot.slane %v1078, 1
        %v1083 = vrot.slane %v1078, 2
        %v1084 = vrot.slane %v1078, 3
        %1088 = vst.msk [vmem:[%s164 + $0x2] sm:$0x1] %vm286, %v1078
        %1089 = vst.msk [vmem:[%s164 + $0xa] sm:$0x1] %vm286, %v1082
        %1090 = vst.msk [vmem:[%s164 + $0x12] sm:$0x1] %vm286, %v1083
        %1091 = vst.msk [vmem:[%s164 + $0x1a] sm:$0x1] %vm286, %v1084
        %v1092 = vld [vmem:[%s143 + $0x11] sm:$0x1]
        %v1093 = vld [vmem:[%s143 + $0x51] sm:$0x1]
        %v1094 = vld [vmem:[%s143 + $0x91] sm:$0x1]
        %v1095 = vld [vmem:[%s143 + $0xd1] sm:$0x1]
        %v1096 = vmul.f32 %v1092, -0.09375
        %v1097 = vmul.f32 %v1093, -0.09375
        %v1098 = vmul.f32 %v1094, -0.09375
        %v1099 = vmul.f32 %v1095, -0.09375
        %v1100 = vld [vmem:[%s143 + $0x12] sm:$0x1]
        %v1101 = vld [vmem:[%s143 + $0x52] sm:$0x1]
        %v1102 = vld [vmem:[%s143 + $0x92] sm:$0x1]
        %v1103 = vld [vmem:[%s143 + $0xd2] sm:$0x1]
        %v1104 = vmul.f32 %v1100, 0.59375
        %v1105 = vmul.f32 %v1101, 0.59375
        %v1106 = vmul.f32 %v1102, 0.59375
        %v1107 = vmul.f32 %v1103, 0.59375
        %v1108 = vadd.f32 %v1096, %v1104
        %v1109 = vadd.f32 %v1097, %v1105
        %v1110 = vadd.f32 %v1098, %v1106
        %v1111 = vadd.f32 %v1099, %v1107
        %v1112 = vld [vmem:[%s143 + $0x13] sm:$0x1]
        %v1113 = vld [vmem:[%s143 + $0x53] sm:$0x1]
        %v1114 = vld [vmem:[%s143 + $0x93] sm:$0x1]
        %v1115 = vld [vmem:[%s143 + $0xd3] sm:$0x1]
        %v1116 = vmul.f32 %v1112, 0.59375
        %v1117 = vmul.f32 %v1113, 0.59375
        %v1118 = vmul.f32 %v1114, 0.59375
        %v1119 = vmul.f32 %v1115, 0.59375
        %v1120 = vadd.f32 %v1108, %v1116
        %v1121 = vadd.f32 %v1109, %v1117
        %v1122 = vadd.f32 %v1110, %v1118
        %v1123 = vadd.f32 %v1111, %v1119
        %v1124 = vld [vmem:[%s143 + $0x14] sm:$0x1]
        %v1125 = vld [vmem:[%s143 + $0x54] sm:$0x1]
        %v1126 = vld [vmem:[%s143 + $0x94] sm:$0x1]
        %v1127 = vld [vmem:[%s143 + $0xd4] sm:$0x1]
        %v1128 = vmul.f32 %v1124, -0.09375
        %v1129 = vmul.f32 %v1125, -0.09375
        %v1130 = vmul.f32 %v1126, -0.09375
        %v1131 = vmul.f32 %v1127, -0.09375
        %v1132 = vadd.f32 %v1120, %v1128
        %v1133 = vadd.f32 %v1121, %v1129
        %v1134 = vadd.f32 %v1122, %v1130
        %v1135 = vadd.f32 %v1123, %v1131
        %v1136 = vpack.c.bf16 %v1132, %v1132
        %v1137 = vpack.c.bf16 %v1133, %v1133
        %v1138 = vpack.c.bf16 %v1134, %v1134
        %v1139 = vpack.c.bf16 %v1135, %v1135
        %v1144 = vunpack.c.l.b16 %v1136
        %v1145 = vunpack.c.l.b16 %v1137
        %v1146 = vunpack.c.l.b16 %v1138
        %v1147 = vunpack.c.l.b16 %v1139
        %v1148 = vrot.slane %v1145, 7
        %v1149 = vsel %vm229, %v1148, %v1144
        %v1150 = vrot.slane %v1146, 6
        %v1151 = vsel %vm232, %v1150, %v1149
        %v1152 = vrot.slane %v1147, 5
        %v1153 = vsel %vm235, %v1152, %v1151
        %v1154 = vpack.c.b16 %v1153, %v1153
        %v1156 = vsel %vm262, %v1154, 0
        %1158 = vmatpush.bf16.msra.mxu0 0
        %1159 = vmatpush.bf16.msra.mxu0 0
        %1160 = vmatpush.bf16.msra.mxu0 0
        %1161 = vmatpush.bf16.msra.mxu0 0
        %1162 = vmatpush.bf16.msra.mxu0 %v257
        %1163 = vmatpush.bf16.msra.mxu0 %v256
        %1164 = vmatpush.bf16.msra.mxu0 %v255
        %1165 = vmatpush.bf16.msra.mxu0 %v254
        %1166 = vmatmul.bf16.gmra.mxu0 %v1156
        %v1167 = vpop.f32.mrf.mxu0
        %v1168 = vadd.f32 0.0, %v1167
        %v1169 = vpop.f32.mrf.mxu0
        %1170 = vdwg.mxu0
        %v1172 = vrot.slane %v1168, 1
        %v1173 = vrot.slane %v1168, 2
        %v1174 = vrot.slane %v1168, 3
        %v1175 = vperm.slane %v1168, 0
        %v1176 = vperm.slane %v1172, 0
        %v1177 = vperm.slane %v1173, 0
        %v1178 = vperm.slane %v1174, 0
        %1179 = vrot.lane.b32.xlu0 %v1175, 32
        %v1180 = vpop.permute.xlu0 %1179
        %1181 = vrot.lane.b32.xlu0 %v1176, 32
        %v1182 = vpop.permute.xlu0 %1181
        %1183 = vrot.lane.b32.xlu0 %v1177, 32
        %v1184 = vpop.permute.xlu0 %1183
        %1185 = vrot.lane.b32.xlu0 %v1178, 32
        %v1186 = vpop.permute.xlu0 %1185
        %1191 = vst.msk [vmem:[%s164 + $0x2] sm:$0x1] %vm390, %v1180
        %1192 = vst.msk [vmem:[%s164 + $0xa] sm:$0x1] %vm390, %v1182
        %1193 = vst.msk [vmem:[%s164 + $0x12] sm:$0x1] %vm390, %v1184
        %1194 = vst.msk [vmem:[%s164 + $0x1a] sm:$0x1] %vm390, %v1186
        %v1195 = vld [vmem:[%s143 + $0x13] sm:$0x1]
        %v1196 = vld [vmem:[%s143 + $0x53] sm:$0x1]
        %v1197 = vld [vmem:[%s143 + $0x93] sm:$0x1]
        %v1198 = vld [vmem:[%s143 + $0xd3] sm:$0x1]
        %v1199 = vmul.f32 %v1195, -0.09375
        %v1200 = vmul.f32 %v1196, -0.09375
        %v1201 = vmul.f32 %v1197, -0.09375
        %v1202 = vmul.f32 %v1198, -0.09375
        %v1203 = vld [vmem:[%s143 + $0x14] sm:$0x1]
        %v1204 = vld [vmem:[%s143 + $0x54] sm:$0x1]
        %v1205 = vld [vmem:[%s143 + $0x94] sm:$0x1]
        %v1206 = vld [vmem:[%s143 + $0xd4] sm:$0x1]
        %v1207 = vmul.f32 %v1203, 0.59375
        %v1208 = vmul.f32 %v1204, 0.59375
        %v1209 = vmul.f32 %v1205, 0.59375
        %v1210 = vmul.f32 %v1206, 0.59375
        %v1211 = vadd.f32 %v1199, %v1207
        %v1212 = vadd.f32 %v1200, %v1208
        %v1213 = vadd.f32 %v1201, %v1209
        %v1214 = vadd.f32 %v1202, %v1210
        %v1215 = vld [vmem:[%s143 + $0x15] sm:$0x1]
        %v1216 = vld [vmem:[%s143 + $0x55] sm:$0x1]
        %v1217 = vld [vmem:[%s143 + $0x95] sm:$0x1]
        %v1218 = vld [vmem:[%s143 + $0xd5] sm:$0x1]
        %v1219 = vmul.f32 %v1215, 0.59375
        %v1220 = vmul.f32 %v1216, 0.59375
        %v1221 = vmul.f32 %v1217, 0.59375
        %v1222 = vmul.f32 %v1218, 0.59375
        %v1223 = vadd.f32 %v1211, %v1219
        %v1224 = vadd.f32 %v1212, %v1220
        %v1225 = vadd.f32 %v1213, %v1221
        %v1226 = vadd.f32 %v1214, %v1222
        %v1227 = vld [vmem:[%s143 + $0x16] sm:$0x1]
        %v1228 = vld [vmem:[%s143 + $0x56] sm:$0x1]
        %v1229 = vld [vmem:[%s143 + $0x96] sm:$0x1]
        %v1230 = vld [vmem:[%s143 + $0xd6] sm:$0x1]
        %v1231 = vmul.f32 %v1227, -0.09375
        %v1232 = vmul.f32 %v1228, -0.09375
        %v1233 = vmul.f32 %v1229, -0.09375
        %v1234 = vmul.f32 %v1230, -0.09375
        %v1235 = vadd.f32 %v1223, %v1231
        %v1236 = vadd.f32 %v1224, %v1232
        %v1237 = vadd.f32 %v1225, %v1233
        %v1238 = vadd.f32 %v1226, %v1234
        %v1239 = vpack.c.bf16 %v1235, %v1235
        %v1240 = vpack.c.bf16 %v1236, %v1236
        %v1241 = vpack.c.bf16 %v1237, %v1237
        %v1242 = vpack.c.bf16 %v1238, %v1238
        %v1247 = vunpack.c.l.b16 %v1239
        %v1248 = vunpack.c.l.b16 %v1240
        %v1249 = vunpack.c.l.b16 %v1241
        %v1250 = vunpack.c.l.b16 %v1242
        %v1251 = vrot.slane %v1248, 7
        %v1252 = vsel %vm229, %v1251, %v1247
        %v1253 = vrot.slane %v1249, 6
        %v1254 = vsel %vm232, %v1253, %v1252
        %v1255 = vrot.slane %v1250, 5
        %v1256 = vsel %vm235, %v1255, %v1254
        %v1257 = vpack.c.b16 %v1256, %v1256
        %v1259 = vsel %vm262, %v1257, 0
        %1261 = vmatpush.bf16.msra.mxu0 0
        %1262 = vmatpush.bf16.msra.mxu0 0
        %1263 = vmatpush.bf16.msra.mxu0 0
        %1264 = vmatpush.bf16.msra.mxu0 0
        %1265 = vmatpush.bf16.msra.mxu0 %v257
        %1266 = vmatpush.bf16.msra.mxu0 %v256
        %1267 = vmatpush.bf16.msra.mxu0 %v255
        %1268 = vmatpush.bf16.msra.mxu0 %v254
        %1269 = vmatmul.bf16.gmra.mxu0 %v1259
        %v1270 = vpop.f32.mrf.mxu0
        %v1271 = vadd.f32 0.0, %v1270
        %v1272 = vpop.f32.mrf.mxu0
        %1273 = vdwg.mxu0
        %v1275 = vrot.slane %v1271, 1
        %v1276 = vrot.slane %v1271, 2
        %v1277 = vrot.slane %v1271, 3
        %v1278 = vperm.slane %v1271, 0
        %v1279 = vperm.slane %v1275, 0
        %v1280 = vperm.slane %v1276, 0
        %v1281 = vperm.slane %v1277, 0
        %1282 = vrot.lane.b32.xlu0 %v1278, 64
        %v1283 = vpop.permute.xlu0 %1282
        %1284 = vrot.lane.b32.xlu0 %v1279, 64
        %v1285 = vpop.permute.xlu0 %1284
        %1286 = vrot.lane.b32.xlu0 %v1280, 64
        %v1287 = vpop.permute.xlu0 %1286
        %1288 = vrot.lane.b32.xlu0 %v1281, 64
        %v1289 = vpop.permute.xlu0 %1288
        %1294 = vst.msk [vmem:[%s164 + $0x2] sm:$0x1] %vm494, %v1283
        %1295 = vst.msk [vmem:[%s164 + $0xa] sm:$0x1] %vm494, %v1285
        %1296 = vst.msk [vmem:[%s164 + $0x12] sm:$0x1] %vm494, %v1287
        %1297 = vst.msk [vmem:[%s164 + $0x1a] sm:$0x1] %vm494, %v1289
        %v1298 = vld [vmem:[%s143 + $0x15] sm:$0x1]
        %v1299 = vld [vmem:[%s143 + $0x55] sm:$0x1]
        %v1300 = vld [vmem:[%s143 + $0x95] sm:$0x1]
        %v1301 = vld [vmem:[%s143 + $0xd5] sm:$0x1]
        %v1302 = vmul.f32 %v1298, -0.09375
        %v1303 = vmul.f32 %v1299, -0.09375
        %v1304 = vmul.f32 %v1300, -0.09375
        %v1305 = vmul.f32 %v1301, -0.09375
        %v1306 = vld [vmem:[%s143 + $0x16] sm:$0x1]
        %v1307 = vld [vmem:[%s143 + $0x56] sm:$0x1]
        %v1308 = vld [vmem:[%s143 + $0x96] sm:$0x1]
        %v1309 = vld [vmem:[%s143 + $0xd6] sm:$0x1]
        %v1310 = vmul.f32 %v1306, 0.59375
        %v1311 = vmul.f32 %v1307, 0.59375
        %v1312 = vmul.f32 %v1308, 0.59375
        %v1313 = vmul.f32 %v1309, 0.59375
        %v1314 = vadd.f32 %v1302, %v1310
        %v1315 = vadd.f32 %v1303, %v1311
        %v1316 = vadd.f32 %v1304, %v1312
        %v1317 = vadd.f32 %v1305, %v1313
        %v1318 = vld [vmem:[%s143 + $0x17] sm:$0x1]
        %v1319 = vld [vmem:[%s143 + $0x57] sm:$0x1]
        %v1320 = vld [vmem:[%s143 + $0x97] sm:$0x1]
        %v1321 = vld [vmem:[%s143 + $0xd7] sm:$0x1]
        %v1322 = vmul.f32 %v1318, 0.59375
        %v1323 = vmul.f32 %v1319, 0.59375
        %v1324 = vmul.f32 %v1320, 0.59375
        %v1325 = vmul.f32 %v1321, 0.59375
        %v1326 = vadd.f32 %v1314, %v1322
        %v1327 = vadd.f32 %v1315, %v1323
        %v1328 = vadd.f32 %v1316, %v1324
        %v1329 = vadd.f32 %v1317, %v1325
        %v1330 = vld [vmem:[%s143 + $0x18] sm:$0x1]
        %v1331 = vld [vmem:[%s143 + $0x58] sm:$0x1]
        %v1332 = vld [vmem:[%s143 + $0x98] sm:$0x1]
        %v1333 = vld [vmem:[%s143 + $0xd8] sm:$0x1]
        %v1334 = vmul.f32 %v1330, -0.09375
        %v1335 = vmul.f32 %v1331, -0.09375
        %v1336 = vmul.f32 %v1332, -0.09375
        %v1337 = vmul.f32 %v1333, -0.09375
        %v1338 = vadd.f32 %v1326, %v1334
        %v1339 = vadd.f32 %v1327, %v1335
        %v1340 = vadd.f32 %v1328, %v1336
        %v1341 = vadd.f32 %v1329, %v1337
        %v1342 = vpack.c.bf16 %v1338, %v1338
        %v1343 = vpack.c.bf16 %v1339, %v1339
        %v1344 = vpack.c.bf16 %v1340, %v1340
        %v1345 = vpack.c.bf16 %v1341, %v1341
        %v1350 = vunpack.c.l.b16 %v1342
        %v1351 = vunpack.c.l.b16 %v1343
        %v1352 = vunpack.c.l.b16 %v1344
        %v1353 = vunpack.c.l.b16 %v1345
        %v1354 = vrot.slane %v1351, 7
        %v1355 = vsel %vm229, %v1354, %v1350
        %v1356 = vrot.slane %v1352, 6
        %v1357 = vsel %vm232, %v1356, %v1355
        %v1358 = vrot.slane %v1353, 5
        %v1359 = vsel %vm235, %v1358, %v1357
        %v1360 = vpack.c.b16 %v1359, %v1359
        %v1362 = vsel %vm262, %v1360, 0
        %1364 = vmatpush.bf16.msra.mxu0 0
        %1365 = vmatpush.bf16.msra.mxu0 0
        %1366 = vmatpush.bf16.msra.mxu0 0
        %1367 = vmatpush.bf16.msra.mxu0 0
        %1368 = vmatpush.bf16.msra.mxu0 %v257
        %1369 = vmatpush.bf16.msra.mxu0 %v256
        %1370 = vmatpush.bf16.msra.mxu0 %v255
        %1371 = vmatpush.bf16.msra.mxu0 %v254
        %1372 = vmatmul.bf16.gmra.mxu0 %v1362
        %v1373 = vpop.f32.mrf.mxu0
        %v1374 = vadd.f32 0.0, %v1373
        %v1375 = vpop.f32.mrf.mxu0
        %1376 = vdwg.mxu0
        %v1378 = vrot.slane %v1374, 1
        %v1379 = vrot.slane %v1374, 2
        %v1380 = vrot.slane %v1374, 3
        %v1381 = vperm.slane %v1374, 0
        %v1382 = vperm.slane %v1378, 0
        %v1383 = vperm.slane %v1379, 0
        %v1384 = vperm.slane %v1380, 0
        %1385 = vrot.lane.b32.xlu0 %v1381, 96
        %v1386 = vpop.permute.xlu0 %1385
        %1387 = vrot.lane.b32.xlu0 %v1382, 96
        %v1388 = vpop.permute.xlu0 %1387
        %1389 = vrot.lane.b32.xlu0 %v1383, 96
        %v1390 = vpop.permute.xlu0 %1389
        %1391 = vrot.lane.b32.xlu0 %v1384, 96
        %v1392 = vpop.permute.xlu0 %1391
        %1397 = vst.msk [vmem:[%s164 + $0x2] sm:$0x1] %vm598, %v1386
        %1398 = vst.msk [vmem:[%s164 + $0xa] sm:$0x1] %vm598, %v1388
        %1399 = vst.msk [vmem:[%s164 + $0x12] sm:$0x1] %vm598, %v1390
        %1400 = vst.msk [vmem:[%s164 + $0x1a] sm:$0x1] %vm598, %v1392
        %v1401 = vld [vmem:[%s143 + $0x17] sm:$0x1]
        %v1402 = vld [vmem:[%s143 + $0x57] sm:$0x1]
        %v1403 = vld [vmem:[%s143 + $0x97] sm:$0x1]
        %v1404 = vld [vmem:[%s143 + $0xd7] sm:$0x1]
        %v1405 = vmul.f32 %v1401, -0.09375
        %v1406 = vmul.f32 %v1402, -0.09375
        %v1407 = vmul.f32 %v1403, -0.09375
        %v1408 = vmul.f32 %v1404, -0.09375
        %v1409 = vld [vmem:[%s143 + $0x18] sm:$0x1]
        %v1410 = vld [vmem:[%s143 + $0x58] sm:$0x1]
        %v1411 = vld [vmem:[%s143 + $0x98] sm:$0x1]
        %v1412 = vld [vmem:[%s143 + $0xd8] sm:$0x1]
        %v1413 = vmul.f32 %v1409, 0.59375
        %v1414 = vmul.f32 %v1410, 0.59375
        %v1415 = vmul.f32 %v1411, 0.59375
        %v1416 = vmul.f32 %v1412, 0.59375
        %v1417 = vadd.f32 %v1405, %v1413
        %v1418 = vadd.f32 %v1406, %v1414
        %v1419 = vadd.f32 %v1407, %v1415
        %v1420 = vadd.f32 %v1408, %v1416
        %v1421 = vld [vmem:[%s143 + $0x19] sm:$0x1]
        %v1422 = vld [vmem:[%s143 + $0x59] sm:$0x1]
        %v1423 = vld [vmem:[%s143 + $0x99] sm:$0x1]
        %v1424 = vld [vmem:[%s143 + $0xd9] sm:$0x1]
        %v1425 = vmul.f32 %v1421, 0.59375
        %v1426 = vmul.f32 %v1422, 0.59375
        %v1427 = vmul.f32 %v1423, 0.59375
        %v1428 = vmul.f32 %v1424, 0.59375
        %v1429 = vadd.f32 %v1417, %v1425
        %v1430 = vadd.f32 %v1418, %v1426
        %v1431 = vadd.f32 %v1419, %v1427
        %v1432 = vadd.f32 %v1420, %v1428
        %v1433 = vld [vmem:[%s143 + $0x1a] sm:$0x1]
        %v1434 = vld [vmem:[%s143 + $0x5a] sm:$0x1]
        %v1435 = vld [vmem:[%s143 + $0x9a] sm:$0x1]
        %v1436 = vld [vmem:[%s143 + $0xda] sm:$0x1]
        %v1437 = vmul.f32 %v1433, -0.09375
        %v1438 = vmul.f32 %v1434, -0.09375
        %v1439 = vmul.f32 %v1435, -0.09375
        %v1440 = vmul.f32 %v1436, -0.09375
        %v1441 = vadd.f32 %v1429, %v1437
        %v1442 = vadd.f32 %v1430, %v1438
        %v1443 = vadd.f32 %v1431, %v1439
        %v1444 = vadd.f32 %v1432, %v1440
        %v1445 = vpack.c.bf16 %v1441, %v1441
        %v1446 = vpack.c.bf16 %v1442, %v1442
        %v1447 = vpack.c.bf16 %v1443, %v1443
        %v1448 = vpack.c.bf16 %v1444, %v1444
        %v1453 = vunpack.c.l.b16 %v1445
        %v1454 = vunpack.c.l.b16 %v1446
        %v1455 = vunpack.c.l.b16 %v1447
        %v1456 = vunpack.c.l.b16 %v1448
        %v1457 = vrot.slane %v1454, 7
        %v1458 = vsel %vm229, %v1457, %v1453
        %v1459 = vrot.slane %v1455, 6
        %v1460 = vsel %vm232, %v1459, %v1458
        %v1461 = vrot.slane %v1456, 5
        %v1462 = vsel %vm235, %v1461, %v1460
        %v1463 = vpack.c.b16 %v1462, %v1462
        %v1465 = vsel %vm262, %v1463, 0
        %1467 = vmatpush.bf16.msra.mxu0 0
        %1468 = vmatpush.bf16.msra.mxu0 0
        %1469 = vmatpush.bf16.msra.mxu0 0
        %1470 = vmatpush.bf16.msra.mxu0 0
        %1471 = vmatpush.bf16.msra.mxu0 %v257
        %1472 = vmatpush.bf16.msra.mxu0 %v256
        %1473 = vmatpush.bf16.msra.mxu0 %v255
        %1474 = vmatpush.bf16.msra.mxu0 %v254
        %1475 = vmatmul.bf16.gmra.mxu0 %v1465
        %v1476 = vpop.f32.mrf.mxu0
        %v1477 = vadd.f32 0.0, %v1476
        %v1478 = vpop.f32.mrf.mxu0
        %1479 = vdwg.mxu0
        %v1481 = vrot.slane %v1477, 1
        %v1482 = vrot.slane %v1477, 2
        %v1483 = vrot.slane %v1477, 3
        %1487 = vst.msk [vmem:[%s164 + $0x3] sm:$0x1] %vm286, %v1477
        %1488 = vst.msk [vmem:[%s164 + $0xb] sm:$0x1] %vm286, %v1481
        %1489 = vst.msk [vmem:[%s164 + $0x13] sm:$0x1] %vm286, %v1482
        %1490 = vst.msk [vmem:[%s164 + $0x1b] sm:$0x1] %vm286, %v1483
        %v1491 = vld [vmem:[%s143 + $0x19] sm:$0x1]
        %v1492 = vld [vmem:[%s143 + $0x59] sm:$0x1]
        %v1493 = vld [vmem:[%s143 + $0x99] sm:$0x1]
        %v1494 = vld [vmem:[%s143 + $0xd9] sm:$0x1]
        %v1495 = vmul.f32 %v1491, -0.09375
        %v1496 = vmul.f32 %v1492, -0.09375
        %v1497 = vmul.f32 %v1493, -0.09375
        %v1498 = vmul.f32 %v1494, -0.09375
        %v1499 = vld [vmem:[%s143 + $0x1a] sm:$0x1]
        %v1500 = vld [vmem:[%s143 + $0x5a] sm:$0x1]
        %v1501 = vld [vmem:[%s143 + $0x9a] sm:$0x1]
        %v1502 = vld [vmem:[%s143 + $0xda] sm:$0x1]
        %v1503 = vmul.f32 %v1499, 0.59375
        %v1504 = vmul.f32 %v1500, 0.59375
        %v1505 = vmul.f32 %v1501, 0.59375
        %v1506 = vmul.f32 %v1502, 0.59375
        %v1507 = vadd.f32 %v1495, %v1503
        %v1508 = vadd.f32 %v1496, %v1504
        %v1509 = vadd.f32 %v1497, %v1505
        %v1510 = vadd.f32 %v1498, %v1506
        %v1511 = vld [vmem:[%s143 + $0x1b] sm:$0x1]
        %v1512 = vld [vmem:[%s143 + $0x5b] sm:$0x1]
        %v1513 = vld [vmem:[%s143 + $0x9b] sm:$0x1]
        %v1514 = vld [vmem:[%s143 + $0xdb] sm:$0x1]
        %v1515 = vmul.f32 %v1511, 0.59375
        %v1516 = vmul.f32 %v1512, 0.59375
        %v1517 = vmul.f32 %v1513, 0.59375
        %v1518 = vmul.f32 %v1514, 0.59375
        %v1519 = vadd.f32 %v1507, %v1515
        %v1520 = vadd.f32 %v1508, %v1516
        %v1521 = vadd.f32 %v1509, %v1517
        %v1522 = vadd.f32 %v1510, %v1518
        %v1523 = vld [vmem:[%s143 + $0x1c] sm:$0x1]
        %v1524 = vld [vmem:[%s143 + $0x5c] sm:$0x1]
        %v1525 = vld [vmem:[%s143 + $0x9c] sm:$0x1]
        %v1526 = vld [vmem:[%s143 + $0xdc] sm:$0x1]
        %v1527 = vmul.f32 %v1523, -0.09375
        %v1528 = vmul.f32 %v1524, -0.09375
        %v1529 = vmul.f32 %v1525, -0.09375
        %v1530 = vmul.f32 %v1526, -0.09375
        %v1531 = vadd.f32 %v1519, %v1527
        %v1532 = vadd.f32 %v1520, %v1528
        %v1533 = vadd.f32 %v1521, %v1529
        %v1534 = vadd.f32 %v1522, %v1530
        %v1535 = vpack.c.bf16 %v1531, %v1531
        %v1536 = vpack.c.bf16 %v1532, %v1532
        %v1537 = vpack.c.bf16 %v1533, %v1533
        %v1538 = vpack.c.bf16 %v1534, %v1534
        %v1543 = vunpack.c.l.b16 %v1535
        %v1544 = vunpack.c.l.b16 %v1536
        %v1545 = vunpack.c.l.b16 %v1537
        %v1546 = vunpack.c.l.b16 %v1538
        %v1547 = vrot.slane %v1544, 7
        %v1548 = vsel %vm229, %v1547, %v1543
        %v1549 = vrot.slane %v1545, 6
        %v1550 = vsel %vm232, %v1549, %v1548
        %v1551 = vrot.slane %v1546, 5
        %v1552 = vsel %vm235, %v1551, %v1550
        %v1553 = vpack.c.b16 %v1552, %v1552
        %v1555 = vsel %vm262, %v1553, 0
        %1557 = vmatpush.bf16.msra.mxu0 0
        %1558 = vmatpush.bf16.msra.mxu0 0
        %1559 = vmatpush.bf16.msra.mxu0 0
        %1560 = vmatpush.bf16.msra.mxu0 0
        %1561 = vmatpush.bf16.msra.mxu0 %v257
        %1562 = vmatpush.bf16.msra.mxu0 %v256
        %1563 = vmatpush.bf16.msra.mxu0 %v255
        %1564 = vmatpush.bf16.msra.mxu0 %v254
        %1565 = vmatmul.bf16.gmra.mxu0 %v1555
        %v1566 = vpop.f32.mrf.mxu0
        %v1567 = vadd.f32 0.0, %v1566
        %v1568 = vpop.f32.mrf.mxu0
        %1569 = vdwg.mxu0
        %v1571 = vrot.slane %v1567, 1
        %v1572 = vrot.slane %v1567, 2
        %v1573 = vrot.slane %v1567, 3
        %v1574 = vperm.slane %v1567, 0
        %v1575 = vperm.slane %v1571, 0
        %v1576 = vperm.slane %v1572, 0
        %v1577 = vperm.slane %v1573, 0
        %1578 = vrot.lane.b32.xlu0 %v1574, 32
        %v1579 = vpop.permute.xlu0 %1578
        %1580 = vrot.lane.b32.xlu0 %v1575, 32
        %v1581 = vpop.permute.xlu0 %1580
        %1582 = vrot.lane.b32.xlu0 %v1576, 32
        %v1583 = vpop.permute.xlu0 %1582
        %1584 = vrot.lane.b32.xlu0 %v1577, 32
        %v1585 = vpop.permute.xlu0 %1584
        %1590 = vst.msk [vmem:[%s164 + $0x3] sm:$0x1] %vm390, %v1579
        %1591 = vst.msk [vmem:[%s164 + $0xb] sm:$0x1] %vm390, %v1581
        %1592 = vst.msk [vmem:[%s164 + $0x13] sm:$0x1] %vm390, %v1583
        %1593 = vst.msk [vmem:[%s164 + $0x1b] sm:$0x1] %vm390, %v1585
        %v1594 = vld [vmem:[%s143 + $0x1b] sm:$0x1]
        %v1595 = vld [vmem:[%s143 + $0x5b] sm:$0x1]
        %v1596 = vld [vmem:[%s143 + $0x9b] sm:$0x1]
        %v1597 = vld [vmem:[%s143 + $0xdb] sm:$0x1]
        %v1598 = vmul.f32 %v1594, -0.09375
        %v1599 = vmul.f32 %v1595, -0.09375
        %v1600 = vmul.f32 %v1596, -0.09375
        %v1601 = vmul.f32 %v1597, -0.09375
        %v1602 = vld [vmem:[%s143 + $0x1c] sm:$0x1]
        %v1603 = vld [vmem:[%s143 + $0x5c] sm:$0x1]
        %v1604 = vld [vmem:[%s143 + $0x9c] sm:$0x1]
        %v1605 = vld [vmem:[%s143 + $0xdc] sm:$0x1]
        %v1606 = vmul.f32 %v1602, 0.59375
        %v1607 = vmul.f32 %v1603, 0.59375
        %v1608 = vmul.f32 %v1604, 0.59375
        %v1609 = vmul.f32 %v1605, 0.59375
        %v1610 = vadd.f32 %v1598, %v1606
        %v1611 = vadd.f32 %v1599, %v1607
        %v1612 = vadd.f32 %v1600, %v1608
        %v1613 = vadd.f32 %v1601, %v1609
        %v1614 = vld [vmem:[%s143 + $0x1d] sm:$0x1]
        %v1615 = vld [vmem:[%s143 + $0x5d] sm:$0x1]
        %v1616 = vld [vmem:[%s143 + $0x9d] sm:$0x1]
        %v1617 = vld [vmem:[%s143 + $0xdd] sm:$0x1]
        %v1618 = vmul.f32 %v1614, 0.59375
        %v1619 = vmul.f32 %v1615, 0.59375
        %v1620 = vmul.f32 %v1616, 0.59375
        %v1621 = vmul.f32 %v1617, 0.59375
        %v1622 = vadd.f32 %v1610, %v1618
        %v1623 = vadd.f32 %v1611, %v1619
        %v1624 = vadd.f32 %v1612, %v1620
        %v1625 = vadd.f32 %v1613, %v1621
        %v1626 = vld [vmem:[%s143 + $0x1e] sm:$0x1]
        %v1627 = vld [vmem:[%s143 + $0x5e] sm:$0x1]
        %v1628 = vld [vmem:[%s143 + $0x9e] sm:$0x1]
        %v1629 = vld [vmem:[%s143 + $0xde] sm:$0x1]
        %v1630 = vmul.f32 %v1626, -0.09375
        %v1631 = vmul.f32 %v1627, -0.09375
        %v1632 = vmul.f32 %v1628, -0.09375
        %v1633 = vmul.f32 %v1629, -0.09375
        %v1634 = vadd.f32 %v1622, %v1630
        %v1635 = vadd.f32 %v1623, %v1631
        %v1636 = vadd.f32 %v1624, %v1632
        %v1637 = vadd.f32 %v1625, %v1633
        %v1638 = vpack.c.bf16 %v1634, %v1634
        %v1639 = vpack.c.bf16 %v1635, %v1635
        %v1640 = vpack.c.bf16 %v1636, %v1636
        %v1641 = vpack.c.bf16 %v1637, %v1637
        %v1646 = vunpack.c.l.b16 %v1638
        %v1647 = vunpack.c.l.b16 %v1639
        %v1648 = vunpack.c.l.b16 %v1640
        %v1649 = vunpack.c.l.b16 %v1641
        %v1650 = vrot.slane %v1647, 7
        %v1651 = vsel %vm229, %v1650, %v1646
        %v1652 = vrot.slane %v1648, 6
        %v1653 = vsel %vm232, %v1652, %v1651
        %v1654 = vrot.slane %v1649, 5
        %v1655 = vsel %vm235, %v1654, %v1653
        %v1656 = vpack.c.b16 %v1655, %v1655
        %v1658 = vsel %vm262, %v1656, 0
        %1660 = vmatpush.bf16.msra.mxu0 0
        %1661 = vmatpush.bf16.msra.mxu0 0
        %1662 = vmatpush.bf16.msra.mxu0 0
        %1663 = vmatpush.bf16.msra.mxu0 0
        %1664 = vmatpush.bf16.msra.mxu0 %v257
        %1665 = vmatpush.bf16.msra.mxu0 %v256
        %1666 = vmatpush.bf16.msra.mxu0 %v255
        %1667 = vmatpush.bf16.msra.mxu0 %v254
        %1668 = vmatmul.bf16.gmra.mxu0 %v1658
        %v1669 = vpop.f32.mrf.mxu0
        %v1670 = vadd.f32 0.0, %v1669
        %v1671 = vpop.f32.mrf.mxu0
        %1672 = vdwg.mxu0
        %v1674 = vrot.slane %v1670, 1
        %v1675 = vrot.slane %v1670, 2
        %v1676 = vrot.slane %v1670, 3
        %v1677 = vperm.slane %v1670, 0
        %v1678 = vperm.slane %v1674, 0
        %v1679 = vperm.slane %v1675, 0
        %v1680 = vperm.slane %v1676, 0
        %1681 = vrot.lane.b32.xlu0 %v1677, 64
        %v1682 = vpop.permute.xlu0 %1681
        %1683 = vrot.lane.b32.xlu0 %v1678, 64
        %v1684 = vpop.permute.xlu0 %1683
        %1685 = vrot.lane.b32.xlu0 %v1679, 64
        %v1686 = vpop.permute.xlu0 %1685
        %1687 = vrot.lane.b32.xlu0 %v1680, 64
        %v1688 = vpop.permute.xlu0 %1687
        %1693 = vst.msk [vmem:[%s164 + $0x3] sm:$0x1] %vm494, %v1682
        %1694 = vst.msk [vmem:[%s164 + $0xb] sm:$0x1] %vm494, %v1684
        %1695 = vst.msk [vmem:[%s164 + $0x13] sm:$0x1] %vm494, %v1686
        %1696 = vst.msk [vmem:[%s164 + $0x1b] sm:$0x1] %vm494, %v1688
        %v1697 = vld [vmem:[%s143 + $0x1d] sm:$0x1]
        %v1698 = vld [vmem:[%s143 + $0x5d] sm:$0x1]
        %v1699 = vld [vmem:[%s143 + $0x9d] sm:$0x1]
        %v1700 = vld [vmem:[%s143 + $0xdd] sm:$0x1]
        %v1701 = vmul.f32 %v1697, -0.09375
        %v1702 = vmul.f32 %v1698, -0.09375
        %v1703 = vmul.f32 %v1699, -0.09375
        %v1704 = vmul.f32 %v1700, -0.09375
        %v1705 = vld [vmem:[%s143 + $0x1e] sm:$0x1]
        %v1706 = vld [vmem:[%s143 + $0x5e] sm:$0x1]
        %v1707 = vld [vmem:[%s143 + $0x9e] sm:$0x1]
        %v1708 = vld [vmem:[%s143 + $0xde] sm:$0x1]
        %v1709 = vmul.f32 %v1705, 0.59375
        %v1710 = vmul.f32 %v1706, 0.59375
        %v1711 = vmul.f32 %v1707, 0.59375
        %v1712 = vmul.f32 %v1708, 0.59375
        %v1713 = vadd.f32 %v1701, %v1709
        %v1714 = vadd.f32 %v1702, %v1710
        %v1715 = vadd.f32 %v1703, %v1711
        %v1716 = vadd.f32 %v1704, %v1712
        %v1717 = vld [vmem:[%s143 + $0x1f] sm:$0x1]
        %v1718 = vld [vmem:[%s143 + $0x5f] sm:$0x1]
        %v1719 = vld [vmem:[%s143 + $0x9f] sm:$0x1]
        %v1720 = vld [vmem:[%s143 + $0xdf] sm:$0x1]
        %v1721 = vmul.f32 %v1717, 0.59375
        %v1722 = vmul.f32 %v1718, 0.59375
        %v1723 = vmul.f32 %v1719, 0.59375
        %v1724 = vmul.f32 %v1720, 0.59375
        %v1725 = vadd.f32 %v1713, %v1721
        %v1726 = vadd.f32 %v1714, %v1722
        %v1727 = vadd.f32 %v1715, %v1723
        %v1728 = vadd.f32 %v1716, %v1724
        %v1729 = vld [vmem:[%s143 + $0x20] sm:$0x1]
        %v1730 = vld [vmem:[%s143 + $0x60] sm:$0x1]
        %v1731 = vld [vmem:[%s143 + $0xa0] sm:$0x1]
        %v1732 = vld [vmem:[%s143 + $0xe0] sm:$0x1]
        %v1733 = vmul.f32 %v1729, -0.09375
        %v1734 = vmul.f32 %v1730, -0.09375
        %v1735 = vmul.f32 %v1731, -0.09375
        %v1736 = vmul.f32 %v1732, -0.09375
        %v1737 = vadd.f32 %v1725, %v1733
        %v1738 = vadd.f32 %v1726, %v1734
        %v1739 = vadd.f32 %v1727, %v1735
        %v1740 = vadd.f32 %v1728, %v1736
        %v1741 = vpack.c.bf16 %v1737, %v1737
        %v1742 = vpack.c.bf16 %v1738, %v1738
        %v1743 = vpack.c.bf16 %v1739, %v1739
        %v1744 = vpack.c.bf16 %v1740, %v1740
        %v1749 = vunpack.c.l.b16 %v1741
        %v1750 = vunpack.c.l.b16 %v1742
        %v1751 = vunpack.c.l.b16 %v1743
        %v1752 = vunpack.c.l.b16 %v1744
        %v1753 = vrot.slane %v1750, 7
        %v1754 = vsel %vm229, %v1753, %v1749
        %v1755 = vrot.slane %v1751, 6
        %v1756 = vsel %vm232, %v1755, %v1754
        %v1757 = vrot.slane %v1752, 5
        %v1758 = vsel %vm235, %v1757, %v1756
        %v1759 = vpack.c.b16 %v1758, %v1758
        %v1761 = vsel %vm262, %v1759, 0
        %1763 = vmatpush.bf16.msra.mxu0 0
        %1764 = vmatpush.bf16.msra.mxu0 0
        %1765 = vmatpush.bf16.msra.mxu0 0
        %1766 = vmatpush.bf16.msra.mxu0 0
        %1767 = vmatpush.bf16.msra.mxu0 %v257
        %1768 = vmatpush.bf16.msra.mxu0 %v256
        %1769 = vmatpush.bf16.msra.mxu0 %v255
        %1770 = vmatpush.bf16.msra.mxu0 %v254
        %1771 = vmatmul.bf16.gmra.mxu0 %v1761
        %v1772 = vpop.f32.mrf.mxu0
        %v1773 = vadd.f32 0.0, %v1772
        %v1774 = vpop.f32.mrf.mxu0
        %1775 = vdwg.mxu0
        %v1777 = vrot.slane %v1773, 1
        %v1778 = vrot.slane %v1773, 2
        %v1779 = vrot.slane %v1773, 3
        %v1780 = vperm.slane %v1773, 0
        %v1781 = vperm.slane %v1777, 0
        %v1782 = vperm.slane %v1778, 0
        %v1783 = vperm.slane %v1779, 0
        %1784 = vrot.lane.b32.xlu0 %v1780, 96
        %v1785 = vpop.permute.xlu0 %1784
        %1786 = vrot.lane.b32.xlu0 %v1781, 96
        %v1787 = vpop.permute.xlu0 %1786
        %1788 = vrot.lane.b32.xlu0 %v1782, 96
        %v1789 = vpop.permute.xlu0 %1788
        %1790 = vrot.lane.b32.xlu0 %v1783, 96
        %v1791 = vpop.permute.xlu0 %1790
        %1796 = vst.msk [vmem:[%s164 + $0x3] sm:$0x1] %vm598, %v1785
        %1797 = vst.msk [vmem:[%s164 + $0xb] sm:$0x1] %vm598, %v1787
        %1798 = vst.msk [vmem:[%s164 + $0x13] sm:$0x1] %vm598, %v1789
        %1799 = vst.msk [vmem:[%s164 + $0x1b] sm:$0x1] %vm598, %v1791
        %v1800 = vld [vmem:[%s143 + $0x1f] sm:$0x1]
        %v1801 = vld [vmem:[%s143 + $0x5f] sm:$0x1]
        %v1802 = vld [vmem:[%s143 + $0x9f] sm:$0x1]
        %v1803 = vld [vmem:[%s143 + $0xdf] sm:$0x1]
        %v1804 = vmul.f32 %v1800, -0.09375
        %v1805 = vmul.f32 %v1801, -0.09375
        %v1806 = vmul.f32 %v1802, -0.09375
        %v1807 = vmul.f32 %v1803, -0.09375
        %v1808 = vld [vmem:[%s143 + $0x20] sm:$0x1]
        %v1809 = vld [vmem:[%s143 + $0x60] sm:$0x1]
        %v1810 = vld [vmem:[%s143 + $0xa0] sm:$0x1]
        %v1811 = vld [vmem:[%s143 + $0xe0] sm:$0x1]
        %v1812 = vmul.f32 %v1808, 0.59375
        %v1813 = vmul.f32 %v1809, 0.59375
        %v1814 = vmul.f32 %v1810, 0.59375
        %v1815 = vmul.f32 %v1811, 0.59375
        %v1816 = vadd.f32 %v1804, %v1812
        %v1817 = vadd.f32 %v1805, %v1813
        %v1818 = vadd.f32 %v1806, %v1814
        %v1819 = vadd.f32 %v1807, %v1815
        %v1820 = vld [vmem:[%s143 + $0x21] sm:$0x1]
        %v1821 = vld [vmem:[%s143 + $0x61] sm:$0x1]
        %v1822 = vld [vmem:[%s143 + $0xa1] sm:$0x1]
        %v1823 = vld [vmem:[%s143 + $0xe1] sm:$0x1]
        %v1824 = vmul.f32 %v1820, 0.59375
        %v1825 = vmul.f32 %v1821, 0.59375
        %v1826 = vmul.f32 %v1822, 0.59375
        %v1827 = vmul.f32 %v1823, 0.59375
        %v1828 = vadd.f32 %v1816, %v1824
        %v1829 = vadd.f32 %v1817, %v1825
        %v1830 = vadd.f32 %v1818, %v1826
        %v1831 = vadd.f32 %v1819, %v1827
        %v1832 = vld [vmem:[%s143 + $0x22] sm:$0x1]
        %v1833 = vld [vmem:[%s143 + $0x62] sm:$0x1]
        %v1834 = vld [vmem:[%s143 + $0xa2] sm:$0x1]
        %v1835 = vld [vmem:[%s143 + $0xe2] sm:$0x1]
        %v1836 = vmul.f32 %v1832, -0.09375
        %v1837 = vmul.f32 %v1833, -0.09375
        %v1838 = vmul.f32 %v1834, -0.09375
        %v1839 = vmul.f32 %v1835, -0.09375
        %v1840 = vadd.f32 %v1828, %v1836
        %v1841 = vadd.f32 %v1829, %v1837
        %v1842 = vadd.f32 %v1830, %v1838
        %v1843 = vadd.f32 %v1831, %v1839
        %v1844 = vpack.c.bf16 %v1840, %v1840
        %v1845 = vpack.c.bf16 %v1841, %v1841
        %v1846 = vpack.c.bf16 %v1842, %v1842
        %v1847 = vpack.c.bf16 %v1843, %v1843
        %v1852 = vunpack.c.l.b16 %v1844
        %v1853 = vunpack.c.l.b16 %v1845
        %v1854 = vunpack.c.l.b16 %v1846
        %v1855 = vunpack.c.l.b16 %v1847
        %v1856 = vrot.slane %v1853, 7
        %v1857 = vsel %vm229, %v1856, %v1852
        %v1858 = vrot.slane %v1854, 6
        %v1859 = vsel %vm232, %v1858, %v1857
        %v1860 = vrot.slane %v1855, 5
        %v1861 = vsel %vm235, %v1860, %v1859
        %v1862 = vpack.c.b16 %v1861, %v1861
        %v1864 = vsel %vm262, %v1862, 0
        %1866 = vmatpush.bf16.msra.mxu0 0
        %1867 = vmatpush.bf16.msra.mxu0 0
        %1868 = vmatpush.bf16.msra.mxu0 0
        %1869 = vmatpush.bf16.msra.mxu0 0
        %1870 = vmatpush.bf16.msra.mxu0 %v257
        %1871 = vmatpush.bf16.msra.mxu0 %v256
        %1872 = vmatpush.bf16.msra.mxu0 %v255
        %1873 = vmatpush.bf16.msra.mxu0 %v254
        %1874 = vmatmul.bf16.gmra.mxu0 %v1864
        %v1875 = vpop.f32.mrf.mxu0
        %v1876 = vadd.f32 0.0, %v1875
        %v1877 = vpop.f32.mrf.mxu0
        %1878 = vdwg.mxu0
        %v1880 = vrot.slane %v1876, 1
        %v1881 = vrot.slane %v1876, 2
        %v1882 = vrot.slane %v1876, 3
        %1886 = vst.msk [vmem:[%s164 + $0x4] sm:$0x1] %vm286, %v1876
        %1887 = vst.msk [vmem:[%s164 + $0xc] sm:$0x1] %vm286, %v1880
        %1888 = vst.msk [vmem:[%s164 + $0x14] sm:$0x1] %vm286, %v1881
        %1889 = vst.msk [vmem:[%s164 + $0x1c] sm:$0x1] %vm286, %v1882
        %v1890 = vld [vmem:[%s143 + $0x21] sm:$0x1]
        %v1891 = vld [vmem:[%s143 + $0x61] sm:$0x1]
        %v1892 = vld [vmem:[%s143 + $0xa1] sm:$0x1]
        %v1893 = vld [vmem:[%s143 + $0xe1] sm:$0x1]
        %v1894 = vmul.f32 %v1890, -0.09375
        %v1895 = vmul.f32 %v1891, -0.09375
        %v1896 = vmul.f32 %v1892, -0.09375
        %v1897 = vmul.f32 %v1893, -0.09375
        %v1898 = vld [vmem:[%s143 + $0x22] sm:$0x1]
        %v1899 = vld [vmem:[%s143 + $0x62] sm:$0x1]
        %v1900 = vld [vmem:[%s143 + $0xa2] sm:$0x1]
        %v1901 = vld [vmem:[%s143 + $0xe2] sm:$0x1]
        %v1902 = vmul.f32 %v1898, 0.59375
        %v1903 = vmul.f32 %v1899, 0.59375
        %v1904 = vmul.f32 %v1900, 0.59375
        %v1905 = vmul.f32 %v1901, 0.59375
        %v1906 = vadd.f32 %v1894, %v1902
        %v1907 = vadd.f32 %v1895, %v1903
        %v1908 = vadd.f32 %v1896, %v1904
        %v1909 = vadd.f32 %v1897, %v1905
        %v1910 = vld [vmem:[%s143 + $0x23] sm:$0x1]
        %v1911 = vld [vmem:[%s143 + $0x63] sm:$0x1]
        %v1912 = vld [vmem:[%s143 + $0xa3] sm:$0x1]
        %v1913 = vld [vmem:[%s143 + $0xe3] sm:$0x1]
        %v1914 = vmul.f32 %v1910, 0.59375
        %v1915 = vmul.f32 %v1911, 0.59375
        %v1916 = vmul.f32 %v1912, 0.59375
        %v1917 = vmul.f32 %v1913, 0.59375
        %v1918 = vadd.f32 %v1906, %v1914
        %v1919 = vadd.f32 %v1907, %v1915
        %v1920 = vadd.f32 %v1908, %v1916
        %v1921 = vadd.f32 %v1909, %v1917
        %v1922 = vld [vmem:[%s143 + $0x24] sm:$0x1]
        %v1923 = vld [vmem:[%s143 + $0x64] sm:$0x1]
        %v1924 = vld [vmem:[%s143 + $0xa4] sm:$0x1]
        %v1925 = vld [vmem:[%s143 + $0xe4] sm:$0x1]
        %v1926 = vmul.f32 %v1922, -0.09375
        %v1927 = vmul.f32 %v1923, -0.09375
        %v1928 = vmul.f32 %v1924, -0.09375
        %v1929 = vmul.f32 %v1925, -0.09375
        %v1930 = vadd.f32 %v1918, %v1926
        %v1931 = vadd.f32 %v1919, %v1927
        %v1932 = vadd.f32 %v1920, %v1928
        %v1933 = vadd.f32 %v1921, %v1929
        %v1934 = vpack.c.bf16 %v1930, %v1930
        %v1935 = vpack.c.bf16 %v1931, %v1931
        %v1936 = vpack.c.bf16 %v1932, %v1932
        %v1937 = vpack.c.bf16 %v1933, %v1933
        %v1942 = vunpack.c.l.b16 %v1934
        %v1943 = vunpack.c.l.b16 %v1935
        %v1944 = vunpack.c.l.b16 %v1936
        %v1945 = vunpack.c.l.b16 %v1937
        %v1946 = vrot.slane %v1943, 7
        %v1947 = vsel %vm229, %v1946, %v1942
        %v1948 = vrot.slane %v1944, 6
        %v1949 = vsel %vm232, %v1948, %v1947
        %v1950 = vrot.slane %v1945, 5
        %v1951 = vsel %vm235, %v1950, %v1949
        %v1952 = vpack.c.b16 %v1951, %v1951
        %v1954 = vsel %vm262, %v1952, 0
        %1956 = vmatpush.bf16.msra.mxu0 0
        %1957 = vmatpush.bf16.msra.mxu0 0
        %1958 = vmatpush.bf16.msra.mxu0 0
        %1959 = vmatpush.bf16.msra.mxu0 0
        %1960 = vmatpush.bf16.msra.mxu0 %v257
        %1961 = vmatpush.bf16.msra.mxu0 %v256
        %1962 = vmatpush.bf16.msra.mxu0 %v255
        %1963 = vmatpush.bf16.msra.mxu0 %v254
        %1964 = vmatmul.bf16.gmra.mxu0 %v1954
        %v1965 = vpop.f32.mrf.mxu0
        %v1966 = vadd.f32 0.0, %v1965
        %v1967 = vpop.f32.mrf.mxu0
        %1968 = vdwg.mxu0
        %v1970 = vrot.slane %v1966, 1
        %v1971 = vrot.slane %v1966, 2
        %v1972 = vrot.slane %v1966, 3
        %v1973 = vperm.slane %v1966, 0
        %v1974 = vperm.slane %v1970, 0
        %v1975 = vperm.slane %v1971, 0
        %v1976 = vperm.slane %v1972, 0
        %1977 = vrot.lane.b32.xlu0 %v1973, 32
        %v1978 = vpop.permute.xlu0 %1977
        %1979 = vrot.lane.b32.xlu0 %v1974, 32
        %v1980 = vpop.permute.xlu0 %1979
        %1981 = vrot.lane.b32.xlu0 %v1975, 32
        %v1982 = vpop.permute.xlu0 %1981
        %1983 = vrot.lane.b32.xlu0 %v1976, 32
        %v1984 = vpop.permute.xlu0 %1983
        %1989 = vst.msk [vmem:[%s164 + $0x4] sm:$0x1] %vm390, %v1978
        %1990 = vst.msk [vmem:[%s164 + $0xc] sm:$0x1] %vm390, %v1980
        %1991 = vst.msk [vmem:[%s164 + $0x14] sm:$0x1] %vm390, %v1982
        %1992 = vst.msk [vmem:[%s164 + $0x1c] sm:$0x1] %vm390, %v1984
        %v1993 = vld [vmem:[%s143 + $0x23] sm:$0x1]
        %v1994 = vld [vmem:[%s143 + $0x63] sm:$0x1]
        %v1995 = vld [vmem:[%s143 + $0xa3] sm:$0x1]
        %v1996 = vld [vmem:[%s143 + $0xe3] sm:$0x1]
        %v1997 = vmul.f32 %v1993, -0.09375
        %v1998 = vmul.f32 %v1994, -0.09375
        %v1999 = vmul.f32 %v1995, -0.09375
        %v2000 = vmul.f32 %v1996, -0.09375
        %v2001 = vld [vmem:[%s143 + $0x24] sm:$0x1]
        %v2002 = vld [vmem:[%s143 + $0x64] sm:$0x1]
        %v2003 = vld [vmem:[%s143 + $0xa4] sm:$0x1]
        %v2004 = vld [vmem:[%s143 + $0xe4] sm:$0x1]
        %v2005 = vmul.f32 %v2001, 0.59375
        %v2006 = vmul.f32 %v2002, 0.59375
        %v2007 = vmul.f32 %v2003, 0.59375
        %v2008 = vmul.f32 %v2004, 0.59375
        %v2009 = vadd.f32 %v1997, %v2005
        %v2010 = vadd.f32 %v1998, %v2006
        %v2011 = vadd.f32 %v1999, %v2007
        %v2012 = vadd.f32 %v2000, %v2008
        %v2013 = vld [vmem:[%s143 + $0x25] sm:$0x1]
        %v2014 = vld [vmem:[%s143 + $0x65] sm:$0x1]
        %v2015 = vld [vmem:[%s143 + $0xa5] sm:$0x1]
        %v2016 = vld [vmem:[%s143 + $0xe5] sm:$0x1]
        %v2017 = vmul.f32 %v2013, 0.59375
        %v2018 = vmul.f32 %v2014, 0.59375
        %v2019 = vmul.f32 %v2015, 0.59375
        %v2020 = vmul.f32 %v2016, 0.59375
        %v2021 = vadd.f32 %v2009, %v2017
        %v2022 = vadd.f32 %v2010, %v2018
        %v2023 = vadd.f32 %v2011, %v2019
        %v2024 = vadd.f32 %v2012, %v2020
        %v2025 = vld [vmem:[%s143 + $0x26] sm:$0x1]
        %v2026 = vld [vmem:[%s143 + $0x66] sm:$0x1]
        %v2027 = vld [vmem:[%s143 + $0xa6] sm:$0x1]
        %v2028 = vld [vmem:[%s143 + $0xe6] sm:$0x1]
        %v2029 = vmul.f32 %v2025, -0.09375
        %v2030 = vmul.f32 %v2026, -0.09375
        %v2031 = vmul.f32 %v2027, -0.09375
        %v2032 = vmul.f32 %v2028, -0.09375
        %v2033 = vadd.f32 %v2021, %v2029
        %v2034 = vadd.f32 %v2022, %v2030
        %v2035 = vadd.f32 %v2023, %v2031
        %v2036 = vadd.f32 %v2024, %v2032
        %v2037 = vpack.c.bf16 %v2033, %v2033
        %v2038 = vpack.c.bf16 %v2034, %v2034
        %v2039 = vpack.c.bf16 %v2035, %v2035
        %v2040 = vpack.c.bf16 %v2036, %v2036
        %v2045 = vunpack.c.l.b16 %v2037
        %v2046 = vunpack.c.l.b16 %v2038
        %v2047 = vunpack.c.l.b16 %v2039
        %v2048 = vunpack.c.l.b16 %v2040
        %v2049 = vrot.slane %v2046, 7
        %v2050 = vsel %vm229, %v2049, %v2045
        %v2051 = vrot.slane %v2047, 6
        %v2052 = vsel %vm232, %v2051, %v2050
        %v2053 = vrot.slane %v2048, 5
        %v2054 = vsel %vm235, %v2053, %v2052
        %v2055 = vpack.c.b16 %v2054, %v2054
        %v2057 = vsel %vm262, %v2055, 0
        %2059 = vmatpush.bf16.msra.mxu0 0
        %2060 = vmatpush.bf16.msra.mxu0 0
        %2061 = vmatpush.bf16.msra.mxu0 0
        %2062 = vmatpush.bf16.msra.mxu0 0
        %2063 = vmatpush.bf16.msra.mxu0 %v257
        %2064 = vmatpush.bf16.msra.mxu0 %v256
        %2065 = vmatpush.bf16.msra.mxu0 %v255
        %2066 = vmatpush.bf16.msra.mxu0 %v254
        %2067 = vmatmul.bf16.gmra.mxu0 %v2057
        %v2068 = vpop.f32.mrf.mxu0
        %v2069 = vadd.f32 0.0, %v2068
        %v2070 = vpop.f32.mrf.mxu0
        %2071 = vdwg.mxu0
        %v2073 = vrot.slane %v2069, 1
        %v2074 = vrot.slane %v2069, 2
        %v2075 = vrot.slane %v2069, 3
        %v2076 = vperm.slane %v2069, 0
        %v2077 = vperm.slane %v2073, 0
        %v2078 = vperm.slane %v2074, 0
        %v2079 = vperm.slane %v2075, 0
        %2080 = vrot.lane.b32.xlu0 %v2076, 64
        %v2081 = vpop.permute.xlu0 %2080
        %2082 = vrot.lane.b32.xlu0 %v2077, 64
        %v2083 = vpop.permute.xlu0 %2082
        %2084 = vrot.lane.b32.xlu0 %v2078, 64
        %v2085 = vpop.permute.xlu0 %2084
        %2086 = vrot.lane.b32.xlu0 %v2079, 64
        %v2087 = vpop.permute.xlu0 %2086
        %2092 = vst.msk [vmem:[%s164 + $0x4] sm:$0x1] %vm494, %v2081
        %2093 = vst.msk [vmem:[%s164 + $0xc] sm:$0x1] %vm494, %v2083
        %2094 = vst.msk [vmem:[%s164 + $0x14] sm:$0x1] %vm494, %v2085
        %2095 = vst.msk [vmem:[%s164 + $0x1c] sm:$0x1] %vm494, %v2087
        %v2096 = vld [vmem:[%s143 + $0x25] sm:$0x1]
        %v2097 = vld [vmem:[%s143 + $0x65] sm:$0x1]
        %v2098 = vld [vmem:[%s143 + $0xa5] sm:$0x1]
        %v2099 = vld [vmem:[%s143 + $0xe5] sm:$0x1]
        %v2100 = vmul.f32 %v2096, -0.09375
        %v2101 = vmul.f32 %v2097, -0.09375
        %v2102 = vmul.f32 %v2098, -0.09375
        %v2103 = vmul.f32 %v2099, -0.09375
        %v2104 = vld [vmem:[%s143 + $0x26] sm:$0x1]
        %v2105 = vld [vmem:[%s143 + $0x66] sm:$0x1]
        %v2106 = vld [vmem:[%s143 + $0xa6] sm:$0x1]
        %v2107 = vld [vmem:[%s143 + $0xe6] sm:$0x1]
        %v2108 = vmul.f32 %v2104, 0.59375
        %v2109 = vmul.f32 %v2105, 0.59375
        %v2110 = vmul.f32 %v2106, 0.59375
        %v2111 = vmul.f32 %v2107, 0.59375
        %v2112 = vadd.f32 %v2100, %v2108
        %v2113 = vadd.f32 %v2101, %v2109
        %v2114 = vadd.f32 %v2102, %v2110
        %v2115 = vadd.f32 %v2103, %v2111
        %v2116 = vld [vmem:[%s143 + $0x27] sm:$0x1]
        %v2117 = vld [vmem:[%s143 + $0x67] sm:$0x1]
        %v2118 = vld [vmem:[%s143 + $0xa7] sm:$0x1]
        %v2119 = vld [vmem:[%s143 + $0xe7] sm:$0x1]
        %v2120 = vmul.f32 %v2116, 0.59375
        %v2121 = vmul.f32 %v2117, 0.59375
        %v2122 = vmul.f32 %v2118, 0.59375
        %v2123 = vmul.f32 %v2119, 0.59375
        %v2124 = vadd.f32 %v2112, %v2120
        %v2125 = vadd.f32 %v2113, %v2121
        %v2126 = vadd.f32 %v2114, %v2122
        %v2127 = vadd.f32 %v2115, %v2123
        %v2128 = vld [vmem:[%s143 + $0x28] sm:$0x1]
        %v2129 = vld [vmem:[%s143 + $0x68] sm:$0x1]
        %v2130 = vld [vmem:[%s143 + $0xa8] sm:$0x1]
        %v2131 = vld [vmem:[%s143 + $0xe8] sm:$0x1]
        %v2132 = vmul.f32 %v2128, -0.09375
        %v2133 = vmul.f32 %v2129, -0.09375
        %v2134 = vmul.f32 %v2130, -0.09375
        %v2135 = vmul.f32 %v2131, -0.09375
        %v2136 = vadd.f32 %v2124, %v2132
        %v2137 = vadd.f32 %v2125, %v2133
        %v2138 = vadd.f32 %v2126, %v2134
        %v2139 = vadd.f32 %v2127, %v2135
        %v2140 = vpack.c.bf16 %v2136, %v2136
        %v2141 = vpack.c.bf16 %v2137, %v2137
        %v2142 = vpack.c.bf16 %v2138, %v2138
        %v2143 = vpack.c.bf16 %v2139, %v2139
        %v2148 = vunpack.c.l.b16 %v2140
        %v2149 = vunpack.c.l.b16 %v2141
        %v2150 = vunpack.c.l.b16 %v2142
        %v2151 = vunpack.c.l.b16 %v2143
        %v2152 = vrot.slane %v2149, 7
        %v2153 = vsel %vm229, %v2152, %v2148
        %v2154 = vrot.slane %v2150, 6
        %v2155 = vsel %vm232, %v2154, %v2153
        %v2156 = vrot.slane %v2151, 5
        %v2157 = vsel %vm235, %v2156, %v2155
        %v2158 = vpack.c.b16 %v2157, %v2157
        %v2160 = vsel %vm262, %v2158, 0
        %2162 = vmatpush.bf16.msra.mxu0 0
        %2163 = vmatpush.bf16.msra.mxu0 0
        %2164 = vmatpush.bf16.msra.mxu0 0
        %2165 = vmatpush.bf16.msra.mxu0 0
        %2166 = vmatpush.bf16.msra.mxu0 %v257
        %2167 = vmatpush.bf16.msra.mxu0 %v256
        %2168 = vmatpush.bf16.msra.mxu0 %v255
        %2169 = vmatpush.bf16.msra.mxu0 %v254
        %2170 = vmatmul.bf16.gmra.mxu0 %v2160
        %v2171 = vpop.f32.mrf.mxu0
        %v2172 = vadd.f32 0.0, %v2171
        %v2173 = vpop.f32.mrf.mxu0
        %2174 = vdwg.mxu0
        %v2176 = vrot.slane %v2172, 1
        %v2177 = vrot.slane %v2172, 2
        %v2178 = vrot.slane %v2172, 3
        %v2179 = vperm.slane %v2172, 0
        %v2180 = vperm.slane %v2176, 0
        %v2181 = vperm.slane %v2177, 0
        %v2182 = vperm.slane %v2178, 0
        %2183 = vrot.lane.b32.xlu0 %v2179, 96
        %v2184 = vpop.permute.xlu0 %2183
        %2185 = vrot.lane.b32.xlu0 %v2180, 96
        %v2186 = vpop.permute.xlu0 %2185
        %2187 = vrot.lane.b32.xlu0 %v2181, 96
        %v2188 = vpop.permute.xlu0 %2187
        %2189 = vrot.lane.b32.xlu0 %v2182, 96
        %v2190 = vpop.permute.xlu0 %2189
        %2195 = vst.msk [vmem:[%s164 + $0x4] sm:$0x1] %vm598, %v2184
        %2196 = vst.msk [vmem:[%s164 + $0xc] sm:$0x1] %vm598, %v2186
        %2197 = vst.msk [vmem:[%s164 + $0x14] sm:$0x1] %vm598, %v2188
        %2198 = vst.msk [vmem:[%s164 + $0x1c] sm:$0x1] %vm598, %v2190
        %v2199 = vld [vmem:[%s143 + $0x27] sm:$0x1]
        %v2200 = vld [vmem:[%s143 + $0x67] sm:$0x1]
        %v2201 = vld [vmem:[%s143 + $0xa7] sm:$0x1]
        %v2202 = vld [vmem:[%s143 + $0xe7] sm:$0x1]
        %v2203 = vmul.f32 %v2199, -0.09375
        %v2204 = vmul.f32 %v2200, -0.09375
        %v2205 = vmul.f32 %v2201, -0.09375
        %v2206 = vmul.f32 %v2202, -0.09375
        %v2207 = vld [vmem:[%s143 + $0x28] sm:$0x1]
        %v2208 = vld [vmem:[%s143 + $0x68] sm:$0x1]
        %v2209 = vld [vmem:[%s143 + $0xa8] sm:$0x1]
        %v2210 = vld [vmem:[%s143 + $0xe8] sm:$0x1]
        %v2211 = vmul.f32 %v2207, 0.59375
        %v2212 = vmul.f32 %v2208, 0.59375
        %v2213 = vmul.f32 %v2209, 0.59375
        %v2214 = vmul.f32 %v2210, 0.59375
        %v2215 = vadd.f32 %v2203, %v2211
        %v2216 = vadd.f32 %v2204, %v2212
        %v2217 = vadd.f32 %v2205, %v2213
        %v2218 = vadd.f32 %v2206, %v2214
        %v2219 = vld [vmem:[%s143 + $0x29] sm:$0x1]
        %v2220 = vld [vmem:[%s143 + $0x69] sm:$0x1]
        %v2221 = vld [vmem:[%s143 + $0xa9] sm:$0x1]
        %v2222 = vld [vmem:[%s143 + $0xe9] sm:$0x1]
        %v2223 = vmul.f32 %v2219, 0.59375
        %v2224 = vmul.f32 %v2220, 0.59375
        %v2225 = vmul.f32 %v2221, 0.59375
        %v2226 = vmul.f32 %v2222, 0.59375
        %v2227 = vadd.f32 %v2215, %v2223
        %v2228 = vadd.f32 %v2216, %v2224
        %v2229 = vadd.f32 %v2217, %v2225
        %v2230 = vadd.f32 %v2218, %v2226
        %v2231 = vld [vmem:[%s143 + $0x2a] sm:$0x1]
        %v2232 = vld [vmem:[%s143 + $0x6a] sm:$0x1]
        %v2233 = vld [vmem:[%s143 + $0xaa] sm:$0x1]
        %v2234 = vld [vmem:[%s143 + $0xea] sm:$0x1]
        %v2235 = vmul.f32 %v2231, -0.09375
        %v2236 = vmul.f32 %v2232, -0.09375
        %v2237 = vmul.f32 %v2233, -0.09375
        %v2238 = vmul.f32 %v2234, -0.09375
        %v2239 = vadd.f32 %v2227, %v2235
        %v2240 = vadd.f32 %v2228, %v2236
        %v2241 = vadd.f32 %v2229, %v2237
        %v2242 = vadd.f32 %v2230, %v2238
        %v2243 = vpack.c.bf16 %v2239, %v2239
        %v2244 = vpack.c.bf16 %v2240, %v2240
        %v2245 = vpack.c.bf16 %v2241, %v2241
        %v2246 = vpack.c.bf16 %v2242, %v2242
        %v2251 = vunpack.c.l.b16 %v2243
        %v2252 = vunpack.c.l.b16 %v2244
        %v2253 = vunpack.c.l.b16 %v2245
        %v2254 = vunpack.c.l.b16 %v2246
        %v2255 = vrot.slane %v2252, 7
        %v2256 = vsel %vm229, %v2255, %v2251
        %v2257 = vrot.slane %v2253, 6
        %v2258 = vsel %vm232, %v2257, %v2256
        %v2259 = vrot.slane %v2254, 5
        %v2260 = vsel %vm235, %v2259, %v2258
        %v2261 = vpack.c.b16 %v2260, %v2260
        %v2263 = vsel %vm262, %v2261, 0
        %2265 = vmatpush.bf16.msra.mxu0 0
        %2266 = vmatpush.bf16.msra.mxu0 0
        %2267 = vmatpush.bf16.msra.mxu0 0
        %2268 = vmatpush.bf16.msra.mxu0 0
        %2269 = vmatpush.bf16.msra.mxu0 %v257
        %2270 = vmatpush.bf16.msra.mxu0 %v256
        %2271 = vmatpush.bf16.msra.mxu0 %v255
        %2272 = vmatpush.bf16.msra.mxu0 %v254
        %2273 = vmatmul.bf16.gmra.mxu0 %v2263
        %v2274 = vpop.f32.mrf.mxu0
        %v2275 = vadd.f32 0.0, %v2274
        %v2276 = vpop.f32.mrf.mxu0
        %2277 = vdwg.mxu0
        %v2279 = vrot.slane %v2275, 1
        %v2280 = vrot.slane %v2275, 2
        %v2281 = vrot.slane %v2275, 3
        %2285 = vst.msk [vmem:[%s164 + $0x5] sm:$0x1] %vm286, %v2275
        %2286 = vst.msk [vmem:[%s164 + $0xd] sm:$0x1] %vm286, %v2279
        %2287 = vst.msk [vmem:[%s164 + $0x15] sm:$0x1] %vm286, %v2280
        %2288 = vst.msk [vmem:[%s164 + $0x1d] sm:$0x1] %vm286, %v2281
        %v2289 = vld [vmem:[%s143 + $0x29] sm:$0x1]
        %v2290 = vld [vmem:[%s143 + $0x69] sm:$0x1]
        %v2291 = vld [vmem:[%s143 + $0xa9] sm:$0x1]
        %v2292 = vld [vmem:[%s143 + $0xe9] sm:$0x1]
        %v2293 = vmul.f32 %v2289, -0.09375
        %v2294 = vmul.f32 %v2290, -0.09375
        %v2295 = vmul.f32 %v2291, -0.09375
        %v2296 = vmul.f32 %v2292, -0.09375
        %v2297 = vld [vmem:[%s143 + $0x2a] sm:$0x1]
        %v2298 = vld [vmem:[%s143 + $0x6a] sm:$0x1]
        %v2299 = vld [vmem:[%s143 + $0xaa] sm:$0x1]
        %v2300 = vld [vmem:[%s143 + $0xea] sm:$0x1]
        %v2301 = vmul.f32 %v2297, 0.59375
        %v2302 = vmul.f32 %v2298, 0.59375
        %v2303 = vmul.f32 %v2299, 0.59375
        %v2304 = vmul.f32 %v2300, 0.59375
        %v2305 = vadd.f32 %v2293, %v2301
        %v2306 = vadd.f32 %v2294, %v2302
        %v2307 = vadd.f32 %v2295, %v2303
        %v2308 = vadd.f32 %v2296, %v2304
        %v2309 = vld [vmem:[%s143 + $0x2b] sm:$0x1]
        %v2310 = vld [vmem:[%s143 + $0x6b] sm:$0x1]
        %v2311 = vld [vmem:[%s143 + $0xab] sm:$0x1]
        %v2312 = vld [vmem:[%s143 + $0xeb] sm:$0x1]
        %v2313 = vmul.f32 %v2309, 0.59375
        %v2314 = vmul.f32 %v2310, 0.59375
        %v2315 = vmul.f32 %v2311, 0.59375
        %v2316 = vmul.f32 %v2312, 0.59375
        %v2317 = vadd.f32 %v2305, %v2313
        %v2318 = vadd.f32 %v2306, %v2314
        %v2319 = vadd.f32 %v2307, %v2315
        %v2320 = vadd.f32 %v2308, %v2316
        %v2321 = vld [vmem:[%s143 + $0x2c] sm:$0x1]
        %v2322 = vld [vmem:[%s143 + $0x6c] sm:$0x1]
        %v2323 = vld [vmem:[%s143 + $0xac] sm:$0x1]
        %v2324 = vld [vmem:[%s143 + $0xec] sm:$0x1]
        %v2325 = vmul.f32 %v2321, -0.09375
        %v2326 = vmul.f32 %v2322, -0.09375
        %v2327 = vmul.f32 %v2323, -0.09375
        %v2328 = vmul.f32 %v2324, -0.09375
        %v2329 = vadd.f32 %v2317, %v2325
        %v2330 = vadd.f32 %v2318, %v2326
        %v2331 = vadd.f32 %v2319, %v2327
        %v2332 = vadd.f32 %v2320, %v2328
        %v2333 = vpack.c.bf16 %v2329, %v2329
        %v2334 = vpack.c.bf16 %v2330, %v2330
        %v2335 = vpack.c.bf16 %v2331, %v2331
        %v2336 = vpack.c.bf16 %v2332, %v2332
        %v2341 = vunpack.c.l.b16 %v2333
        %v2342 = vunpack.c.l.b16 %v2334
        %v2343 = vunpack.c.l.b16 %v2335
        %v2344 = vunpack.c.l.b16 %v2336
        %v2345 = vrot.slane %v2342, 7
        %v2346 = vsel %vm229, %v2345, %v2341
        %v2347 = vrot.slane %v2343, 6
        %v2348 = vsel %vm232, %v2347, %v2346
        %v2349 = vrot.slane %v2344, 5
        %v2350 = vsel %vm235, %v2349, %v2348
        %v2351 = vpack.c.b16 %v2350, %v2350
        %v2353 = vsel %vm262, %v2351, 0
        %2355 = vmatpush.bf16.msra.mxu0 0
        %2356 = vmatpush.bf16.msra.mxu0 0
        %2357 = vmatpush.bf16.msra.mxu0 0
        %2358 = vmatpush.bf16.msra.mxu0 0
        %2359 = vmatpush.bf16.msra.mxu0 %v257
        %2360 = vmatpush.bf16.msra.mxu0 %v256
        %2361 = vmatpush.bf16.msra.mxu0 %v255
        %2362 = vmatpush.bf16.msra.mxu0 %v254
        %2363 = vmatmul.bf16.gmra.mxu0 %v2353
        %v2364 = vpop.f32.mrf.mxu0
        %v2365 = vadd.f32 0.0, %v2364
        %v2366 = vpop.f32.mrf.mxu0
        %2367 = vdwg.mxu0
        %v2369 = vrot.slane %v2365, 1
        %v2370 = vrot.slane %v2365, 2
        %v2371 = vrot.slane %v2365, 3
        %v2372 = vperm.slane %v2365, 0
        %v2373 = vperm.slane %v2369, 0
        %v2374 = vperm.slane %v2370, 0
        %v2375 = vperm.slane %v2371, 0
        %2376 = vrot.lane.b32.xlu0 %v2372, 32
        %v2377 = vpop.permute.xlu0 %2376
        %2378 = vrot.lane.b32.xlu0 %v2373, 32
        %v2379 = vpop.permute.xlu0 %2378
        %2380 = vrot.lane.b32.xlu0 %v2374, 32
        %v2381 = vpop.permute.xlu0 %2380
        %2382 = vrot.lane.b32.xlu0 %v2375, 32
        %v2383 = vpop.permute.xlu0 %2382
        %2388 = vst.msk [vmem:[%s164 + $0x5] sm:$0x1] %vm390, %v2377
        %2389 = vst.msk [vmem:[%s164 + $0xd] sm:$0x1] %vm390, %v2379
        %2390 = vst.msk [vmem:[%s164 + $0x15] sm:$0x1] %vm390, %v2381
        %2391 = vst.msk [vmem:[%s164 + $0x1d] sm:$0x1] %vm390, %v2383
        %v2392 = vld [vmem:[%s143 + $0x2b] sm:$0x1]
        %v2393 = vld [vmem:[%s143 + $0x6b] sm:$0x1]
        %v2394 = vld [vmem:[%s143 + $0xab] sm:$0x1]
        %v2395 = vld [vmem:[%s143 + $0xeb] sm:$0x1]
        %v2396 = vmul.f32 %v2392, -0.09375
        %v2397 = vmul.f32 %v2393, -0.09375
        %v2398 = vmul.f32 %v2394, -0.09375
        %v2399 = vmul.f32 %v2395, -0.09375
        %v2400 = vld [vmem:[%s143 + $0x2c] sm:$0x1]
        %v2401 = vld [vmem:[%s143 + $0x6c] sm:$0x1]
        %v2402 = vld [vmem:[%s143 + $0xac] sm:$0x1]
        %v2403 = vld [vmem:[%s143 + $0xec] sm:$0x1]
        %v2404 = vmul.f32 %v2400, 0.59375
        %v2405 = vmul.f32 %v2401, 0.59375
        %v2406 = vmul.f32 %v2402, 0.59375
        %v2407 = vmul.f32 %v2403, 0.59375
        %v2408 = vadd.f32 %v2396, %v2404
        %v2409 = vadd.f32 %v2397, %v2405
        %v2410 = vadd.f32 %v2398, %v2406
        %v2411 = vadd.f32 %v2399, %v2407
        %v2412 = vld [vmem:[%s143 + $0x2d] sm:$0x1]
        %v2413 = vld [vmem:[%s143 + $0x6d] sm:$0x1]
        %v2414 = vld [vmem:[%s143 + $0xad] sm:$0x1]
        %v2415 = vld [vmem:[%s143 + $0xed] sm:$0x1]
        %v2416 = vmul.f32 %v2412, 0.59375
        %v2417 = vmul.f32 %v2413, 0.59375
        %v2418 = vmul.f32 %v2414, 0.59375
        %v2419 = vmul.f32 %v2415, 0.59375
        %v2420 = vadd.f32 %v2408, %v2416
        %v2421 = vadd.f32 %v2409, %v2417
        %v2422 = vadd.f32 %v2410, %v2418
        %v2423 = vadd.f32 %v2411, %v2419
        %v2424 = vld [vmem:[%s143 + $0x2e] sm:$0x1]
        %v2425 = vld [vmem:[%s143 + $0x6e] sm:$0x1]
        %v2426 = vld [vmem:[%s143 + $0xae] sm:$0x1]
        %v2427 = vld [vmem:[%s143 + $0xee] sm:$0x1]
        %v2428 = vmul.f32 %v2424, -0.09375
        %v2429 = vmul.f32 %v2425, -0.09375
        %v2430 = vmul.f32 %v2426, -0.09375
        %v2431 = vmul.f32 %v2427, -0.09375
        %v2432 = vadd.f32 %v2420, %v2428
        %v2433 = vadd.f32 %v2421, %v2429
        %v2434 = vadd.f32 %v2422, %v2430
        %v2435 = vadd.f32 %v2423, %v2431
        %v2436 = vpack.c.bf16 %v2432, %v2432
        %v2437 = vpack.c.bf16 %v2433, %v2433
        %v2438 = vpack.c.bf16 %v2434, %v2434
        %v2439 = vpack.c.bf16 %v2435, %v2435
        %v2444 = vunpack.c.l.b16 %v2436
        %v2445 = vunpack.c.l.b16 %v2437
        %v2446 = vunpack.c.l.b16 %v2438
        %v2447 = vunpack.c.l.b16 %v2439
        %v2448 = vrot.slane %v2445, 7
        %v2449 = vsel %vm229, %v2448, %v2444
        %v2450 = vrot.slane %v2446, 6
        %v2451 = vsel %vm232, %v2450, %v2449
        %v2452 = vrot.slane %v2447, 5
        %v2453 = vsel %vm235, %v2452, %v2451
        %v2454 = vpack.c.b16 %v2453, %v2453
        %v2456 = vsel %vm262, %v2454, 0
        %2458 = vmatpush.bf16.msra.mxu0 0
        %2459 = vmatpush.bf16.msra.mxu0 0
        %2460 = vmatpush.bf16.msra.mxu0 0
        %2461 = vmatpush.bf16.msra.mxu0 0
        %2462 = vmatpush.bf16.msra.mxu0 %v257
        %2463 = vmatpush.bf16.msra.mxu0 %v256
        %2464 = vmatpush.bf16.msra.mxu0 %v255
        %2465 = vmatpush.bf16.msra.mxu0 %v254
        %2466 = vmatmul.bf16.gmra.mxu0 %v2456
        %v2467 = vpop.f32.mrf.mxu0
        %v2468 = vadd.f32 0.0, %v2467
        %v2469 = vpop.f32.mrf.mxu0
        %2470 = vdwg.mxu0
        %v2472 = vrot.slane %v2468, 1
        %v2473 = vrot.slane %v2468, 2
        %v2474 = vrot.slane %v2468, 3
        %v2475 = vperm.slane %v2468, 0
        %v2476 = vperm.slane %v2472, 0
        %v2477 = vperm.slane %v2473, 0
        %v2478 = vperm.slane %v2474, 0
        %2479 = vrot.lane.b32.xlu0 %v2475, 64
        %v2480 = vpop.permute.xlu0 %2479
        %2481 = vrot.lane.b32.xlu0 %v2476, 64
        %v2482 = vpop.permute.xlu0 %2481
        %2483 = vrot.lane.b32.xlu0 %v2477, 64
        %v2484 = vpop.permute.xlu0 %2483
        %2485 = vrot.lane.b32.xlu0 %v2478, 64
        %v2486 = vpop.permute.xlu0 %2485
        %2491 = vst.msk [vmem:[%s164 + $0x5] sm:$0x1] %vm494, %v2480
        %2492 = vst.msk [vmem:[%s164 + $0xd] sm:$0x1] %vm494, %v2482
        %2493 = vst.msk [vmem:[%s164 + $0x15] sm:$0x1] %vm494, %v2484
        %2494 = vst.msk [vmem:[%s164 + $0x1d] sm:$0x1] %vm494, %v2486
        %v2495 = vld [vmem:[%s143 + $0x2d] sm:$0x1]
        %v2496 = vld [vmem:[%s143 + $0x6d] sm:$0x1]
        %v2497 = vld [vmem:[%s143 + $0xad] sm:$0x1]
        %v2498 = vld [vmem:[%s143 + $0xed] sm:$0x1]
        %v2499 = vmul.f32 %v2495, -0.09375
        %v2500 = vmul.f32 %v2496, -0.09375
        %v2501 = vmul.f32 %v2497, -0.09375
        %v2502 = vmul.f32 %v2498, -0.09375
        %v2503 = vld [vmem:[%s143 + $0x2e] sm:$0x1]
        %v2504 = vld [vmem:[%s143 + $0x6e] sm:$0x1]
        %v2505 = vld [vmem:[%s143 + $0xae] sm:$0x1]
        %v2506 = vld [vmem:[%s143 + $0xee] sm:$0x1]
        %v2507 = vmul.f32 %v2503, 0.59375
        %v2508 = vmul.f32 %v2504, 0.59375
        %v2509 = vmul.f32 %v2505, 0.59375
        %v2510 = vmul.f32 %v2506, 0.59375
        %v2511 = vadd.f32 %v2499, %v2507
        %v2512 = vadd.f32 %v2500, %v2508
        %v2513 = vadd.f32 %v2501, %v2509
        %v2514 = vadd.f32 %v2502, %v2510
        %v2515 = vld [vmem:[%s143 + $0x2f] sm:$0x1]
        %v2516 = vld [vmem:[%s143 + $0x6f] sm:$0x1]
        %v2517 = vld [vmem:[%s143 + $0xaf] sm:$0x1]
        %v2518 = vld [vmem:[%s143 + $0xef] sm:$0x1]
        %v2519 = vmul.f32 %v2515, 0.59375
        %v2520 = vmul.f32 %v2516, 0.59375
        %v2521 = vmul.f32 %v2517, 0.59375
        %v2522 = vmul.f32 %v2518, 0.59375
        %v2523 = vadd.f32 %v2511, %v2519
        %v2524 = vadd.f32 %v2512, %v2520
        %v2525 = vadd.f32 %v2513, %v2521
        %v2526 = vadd.f32 %v2514, %v2522
        %v2527 = vld [vmem:[%s143 + $0x30] sm:$0x1]
        %v2528 = vld [vmem:[%s143 + $0x70] sm:$0x1]
        %v2529 = vld [vmem:[%s143 + $0xb0] sm:$0x1]
        %v2530 = vld [vmem:[%s143 + $0xf0] sm:$0x1]
        %v2531 = vmul.f32 %v2527, -0.09375
        %v2532 = vmul.f32 %v2528, -0.09375
        %v2533 = vmul.f32 %v2529, -0.09375
        %v2534 = vmul.f32 %v2530, -0.09375
        %v2535 = vadd.f32 %v2523, %v2531
        %v2536 = vadd.f32 %v2524, %v2532
        %v2537 = vadd.f32 %v2525, %v2533
        %v2538 = vadd.f32 %v2526, %v2534
        %v2539 = vpack.c.bf16 %v2535, %v2535
        %v2540 = vpack.c.bf16 %v2536, %v2536
        %v2541 = vpack.c.bf16 %v2537, %v2537
        %v2542 = vpack.c.bf16 %v2538, %v2538
        %v2547 = vunpack.c.l.b16 %v2539
        %v2548 = vunpack.c.l.b16 %v2540
        %v2549 = vunpack.c.l.b16 %v2541
        %v2550 = vunpack.c.l.b16 %v2542
        %v2551 = vrot.slane %v2548, 7
        %v2552 = vsel %vm229, %v2551, %v2547
        %v2553 = vrot.slane %v2549, 6
        %v2554 = vsel %vm232, %v2553, %v2552
        %v2555 = vrot.slane %v2550, 5
        %v2556 = vsel %vm235, %v2555, %v2554
        %v2557 = vpack.c.b16 %v2556, %v2556
        %v2559 = vsel %vm262, %v2557, 0
        %2561 = vmatpush.bf16.msra.mxu0 0
        %2562 = vmatpush.bf16.msra.mxu0 0
        %2563 = vmatpush.bf16.msra.mxu0 0
        %2564 = vmatpush.bf16.msra.mxu0 0
        %2565 = vmatpush.bf16.msra.mxu0 %v257
        %2566 = vmatpush.bf16.msra.mxu0 %v256
        %2567 = vmatpush.bf16.msra.mxu0 %v255
        %2568 = vmatpush.bf16.msra.mxu0 %v254
        %2569 = vmatmul.bf16.gmra.mxu0 %v2559
        %v2570 = vpop.f32.mrf.mxu0
        %v2571 = vadd.f32 0.0, %v2570
        %v2572 = vpop.f32.mrf.mxu0
        %2573 = vdwg.mxu0
        %v2575 = vrot.slane %v2571, 1
        %v2576 = vrot.slane %v2571, 2
        %v2577 = vrot.slane %v2571, 3
        %v2578 = vperm.slane %v2571, 0
        %v2579 = vperm.slane %v2575, 0
        %v2580 = vperm.slane %v2576, 0
        %v2581 = vperm.slane %v2577, 0
        %2582 = vrot.lane.b32.xlu0 %v2578, 96
        %v2583 = vpop.permute.xlu0 %2582
        %2584 = vrot.lane.b32.xlu0 %v2579, 96
        %v2585 = vpop.permute.xlu0 %2584
        %2586 = vrot.lane.b32.xlu0 %v2580, 96
        %v2587 = vpop.permute.xlu0 %2586
        %2588 = vrot.lane.b32.xlu0 %v2581, 96
        %v2589 = vpop.permute.xlu0 %2588
        %2594 = vst.msk [vmem:[%s164 + $0x5] sm:$0x1] %vm598, %v2583
        %2595 = vst.msk [vmem:[%s164 + $0xd] sm:$0x1] %vm598, %v2585
        %2596 = vst.msk [vmem:[%s164 + $0x15] sm:$0x1] %vm598, %v2587
        %2597 = vst.msk [vmem:[%s164 + $0x1d] sm:$0x1] %vm598, %v2589
        %v2598 = vld [vmem:[%s143 + $0x2f] sm:$0x1]
        %v2599 = vld [vmem:[%s143 + $0x6f] sm:$0x1]
        %v2600 = vld [vmem:[%s143 + $0xaf] sm:$0x1]
        %v2601 = vld [vmem:[%s143 + $0xef] sm:$0x1]
        %v2602 = vmul.f32 %v2598, -0.09375
        %v2603 = vmul.f32 %v2599, -0.09375
        %v2604 = vmul.f32 %v2600, -0.09375
        %v2605 = vmul.f32 %v2601, -0.09375
        %v2606 = vld [vmem:[%s143 + $0x30] sm:$0x1]
        %v2607 = vld [vmem:[%s143 + $0x70] sm:$0x1]
        %v2608 = vld [vmem:[%s143 + $0xb0] sm:$0x1]
        %v2609 = vld [vmem:[%s143 + $0xf0] sm:$0x1]
        %v2610 = vmul.f32 %v2606, 0.59375
        %v2611 = vmul.f32 %v2607, 0.59375
        %v2612 = vmul.f32 %v2608, 0.59375
        %v2613 = vmul.f32 %v2609, 0.59375
        %v2614 = vadd.f32 %v2602, %v2610
        %v2615 = vadd.f32 %v2603, %v2611
        %v2616 = vadd.f32 %v2604, %v2612
        %v2617 = vadd.f32 %v2605, %v2613
        %v2618 = vld [vmem:[%s143 + $0x31] sm:$0x1]
        %v2619 = vld [vmem:[%s143 + $0x71] sm:$0x1]
        %v2620 = vld [vmem:[%s143 + $0xb1] sm:$0x1]
        %v2621 = vld [vmem:[%s143 + $0xf1] sm:$0x1]
        %v2622 = vmul.f32 %v2618, 0.59375
        %v2623 = vmul.f32 %v2619, 0.59375
        %v2624 = vmul.f32 %v2620, 0.59375
        %v2625 = vmul.f32 %v2621, 0.59375
        %v2626 = vadd.f32 %v2614, %v2622
        %v2627 = vadd.f32 %v2615, %v2623
        %v2628 = vadd.f32 %v2616, %v2624
        %v2629 = vadd.f32 %v2617, %v2625
        %v2630 = vld [vmem:[%s143 + $0x32] sm:$0x1]
        %v2631 = vld [vmem:[%s143 + $0x72] sm:$0x1]
        %v2632 = vld [vmem:[%s143 + $0xb2] sm:$0x1]
        %v2633 = vld [vmem:[%s143 + $0xf2] sm:$0x1]
        %v2634 = vmul.f32 %v2630, -0.09375
        %v2635 = vmul.f32 %v2631, -0.09375
        %v2636 = vmul.f32 %v2632, -0.09375
        %v2637 = vmul.f32 %v2633, -0.09375
        %v2638 = vadd.f32 %v2626, %v2634
        %v2639 = vadd.f32 %v2627, %v2635
        %v2640 = vadd.f32 %v2628, %v2636
        %v2641 = vadd.f32 %v2629, %v2637
        %v2642 = vpack.c.bf16 %v2638, %v2638
        %v2643 = vpack.c.bf16 %v2639, %v2639
        %v2644 = vpack.c.bf16 %v2640, %v2640
        %v2645 = vpack.c.bf16 %v2641, %v2641
        %v2650 = vunpack.c.l.b16 %v2642
        %v2651 = vunpack.c.l.b16 %v2643
        %v2652 = vunpack.c.l.b16 %v2644
        %v2653 = vunpack.c.l.b16 %v2645
        %v2654 = vrot.slane %v2651, 7
        %v2655 = vsel %vm229, %v2654, %v2650
        %v2656 = vrot.slane %v2652, 6
        %v2657 = vsel %vm232, %v2656, %v2655
        %v2658 = vrot.slane %v2653, 5
        %v2659 = vsel %vm235, %v2658, %v2657
        %v2660 = vpack.c.b16 %v2659, %v2659
        %v2662 = vsel %vm262, %v2660, 0
        %2664 = vmatpush.bf16.msra.mxu0 0
        %2665 = vmatpush.bf16.msra.mxu0 0
        %2666 = vmatpush.bf16.msra.mxu0 0
        %2667 = vmatpush.bf16.msra.mxu0 0
        %2668 = vmatpush.bf16.msra.mxu0 %v257
        %2669 = vmatpush.bf16.msra.mxu0 %v256
        %2670 = vmatpush.bf16.msra.mxu0 %v255
        %2671 = vmatpush.bf16.msra.mxu0 %v254
        %2672 = vmatmul.bf16.gmra.mxu0 %v2662
        %v2673 = vpop.f32.mrf.mxu0
        %v2674 = vadd.f32 0.0, %v2673
        %v2675 = vpop.f32.mrf.mxu0
        %2676 = vdwg.mxu0
        %v2678 = vrot.slane %v2674, 1
        %v2679 = vrot.slane %v2674, 2
        %v2680 = vrot.slane %v2674, 3
        %2684 = vst.msk [vmem:[%s164 + $0x6] sm:$0x1] %vm286, %v2674
        %2685 = vst.msk [vmem:[%s164 + $0xe] sm:$0x1] %vm286, %v2678
        %2686 = vst.msk [vmem:[%s164 + $0x16] sm:$0x1] %vm286, %v2679
        %2687 = vst.msk [vmem:[%s164 + $0x1e] sm:$0x1] %vm286, %v2680
        %v2688 = vld [vmem:[%s143 + $0x31] sm:$0x1]
        %v2689 = vld [vmem:[%s143 + $0x71] sm:$0x1]
        %v2690 = vld [vmem:[%s143 + $0xb1] sm:$0x1]
        %v2691 = vld [vmem:[%s143 + $0xf1] sm:$0x1]
        %v2692 = vmul.f32 %v2688, -0.09375
        %v2693 = vmul.f32 %v2689, -0.09375
        %v2694 = vmul.f32 %v2690, -0.09375
        %v2695 = vmul.f32 %v2691, -0.09375
        %v2696 = vld [vmem:[%s143 + $0x32] sm:$0x1]
        %v2697 = vld [vmem:[%s143 + $0x72] sm:$0x1]
        %v2698 = vld [vmem:[%s143 + $0xb2] sm:$0x1]
        %v2699 = vld [vmem:[%s143 + $0xf2] sm:$0x1]
        %v2700 = vmul.f32 %v2696, 0.59375
        %v2701 = vmul.f32 %v2697, 0.59375
        %v2702 = vmul.f32 %v2698, 0.59375
        %v2703 = vmul.f32 %v2699, 0.59375
        %v2704 = vadd.f32 %v2692, %v2700
        %v2705 = vadd.f32 %v2693, %v2701
        %v2706 = vadd.f32 %v2694, %v2702
        %v2707 = vadd.f32 %v2695, %v2703
        %v2708 = vld [vmem:[%s143 + $0x33] sm:$0x1]
        %v2709 = vld [vmem:[%s143 + $0x73] sm:$0x1]
        %v2710 = vld [vmem:[%s143 + $0xb3] sm:$0x1]
        %v2711 = vld [vmem:[%s143 + $0xf3] sm:$0x1]
        %v2712 = vmul.f32 %v2708, 0.59375
        %v2713 = vmul.f32 %v2709, 0.59375
        %v2714 = vmul.f32 %v2710, 0.59375
        %v2715 = vmul.f32 %v2711, 0.59375
        %v2716 = vadd.f32 %v2704, %v2712
        %v2717 = vadd.f32 %v2705, %v2713
        %v2718 = vadd.f32 %v2706, %v2714
        %v2719 = vadd.f32 %v2707, %v2715
        %v2720 = vld [vmem:[%s143 + $0x34] sm:$0x1]
        %v2721 = vld [vmem:[%s143 + $0x74] sm:$0x1]
        %v2722 = vld [vmem:[%s143 + $0xb4] sm:$0x1]
        %v2723 = vld [vmem:[%s143 + $0xf4] sm:$0x1]
        %v2724 = vmul.f32 %v2720, -0.09375
        %v2725 = vmul.f32 %v2721, -0.09375
        %v2726 = vmul.f32 %v2722, -0.09375
        %v2727 = vmul.f32 %v2723, -0.09375
        %v2728 = vadd.f32 %v2716, %v2724
        %v2729 = vadd.f32 %v2717, %v2725
        %v2730 = vadd.f32 %v2718, %v2726
        %v2731 = vadd.f32 %v2719, %v2727
        %v2732 = vpack.c.bf16 %v2728, %v2728
        %v2733 = vpack.c.bf16 %v2729, %v2729
        %v2734 = vpack.c.bf16 %v2730, %v2730
        %v2735 = vpack.c.bf16 %v2731, %v2731
        %v2740 = vunpack.c.l.b16 %v2732
        %v2741 = vunpack.c.l.b16 %v2733
        %v2742 = vunpack.c.l.b16 %v2734
        %v2743 = vunpack.c.l.b16 %v2735
        %v2744 = vrot.slane %v2741, 7
        %v2745 = vsel %vm229, %v2744, %v2740
        %v2746 = vrot.slane %v2742, 6
        %v2747 = vsel %vm232, %v2746, %v2745
        %v2748 = vrot.slane %v2743, 5
        %v2749 = vsel %vm235, %v2748, %v2747
        %v2750 = vpack.c.b16 %v2749, %v2749
        %v2752 = vsel %vm262, %v2750, 0
        %2754 = vmatpush.bf16.msra.mxu0 0
        %2755 = vmatpush.bf16.msra.mxu0 0
        %2756 = vmatpush.bf16.msra.mxu0 0
        %2757 = vmatpush.bf16.msra.mxu0 0
        %2758 = vmatpush.bf16.msra.mxu0 %v257
        %2759 = vmatpush.bf16.msra.mxu0 %v256
        %2760 = vmatpush.bf16.msra.mxu0 %v255
        %2761 = vmatpush.bf16.msra.mxu0 %v254
        %2762 = vmatmul.bf16.gmra.mxu0 %v2752
        %v2763 = vpop.f32.mrf.mxu0
        %v2764 = vadd.f32 0.0, %v2763
        %v2765 = vpop.f32.mrf.mxu0
        %2766 = vdwg.mxu0
        %v2768 = vrot.slane %v2764, 1
        %v2769 = vrot.slane %v2764, 2
        %v2770 = vrot.slane %v2764, 3
        %v2771 = vperm.slane %v2764, 0
        %v2772 = vperm.slane %v2768, 0
        %v2773 = vperm.slane %v2769, 0
        %v2774 = vperm.slane %v2770, 0
        %2775 = vrot.lane.b32.xlu0 %v2771, 32
        %v2776 = vpop.permute.xlu0 %2775
        %2777 = vrot.lane.b32.xlu0 %v2772, 32
        %v2778 = vpop.permute.xlu0 %2777
        %2779 = vrot.lane.b32.xlu0 %v2773, 32
        %v2780 = vpop.permute.xlu0 %2779
        %2781 = vrot.lane.b32.xlu0 %v2774, 32
        %v2782 = vpop.permute.xlu0 %2781
        %2787 = vst.msk [vmem:[%s164 + $0x6] sm:$0x1] %vm390, %v2776
        %2788 = vst.msk [vmem:[%s164 + $0xe] sm:$0x1] %vm390, %v2778
        %2789 = vst.msk [vmem:[%s164 + $0x16] sm:$0x1] %vm390, %v2780
        %2790 = vst.msk [vmem:[%s164 + $0x1e] sm:$0x1] %vm390, %v2782
        %v2791 = vld [vmem:[%s143 + $0x33] sm:$0x1]
        %v2792 = vld [vmem:[%s143 + $0x73] sm:$0x1]
        %v2793 = vld [vmem:[%s143 + $0xb3] sm:$0x1]
        %v2794 = vld [vmem:[%s143 + $0xf3] sm:$0x1]
        %v2795 = vmul.f32 %v2791, -0.09375
        %v2796 = vmul.f32 %v2792, -0.09375
        %v2797 = vmul.f32 %v2793, -0.09375
        %v2798 = vmul.f32 %v2794, -0.09375
        %v2799 = vld [vmem:[%s143 + $0x34] sm:$0x1]
        %v2800 = vld [vmem:[%s143 + $0x74] sm:$0x1]
        %v2801 = vld [vmem:[%s143 + $0xb4] sm:$0x1]
        %v2802 = vld [vmem:[%s143 + $0xf4] sm:$0x1]
        %v2803 = vmul.f32 %v2799, 0.59375
        %v2804 = vmul.f32 %v2800, 0.59375
        %v2805 = vmul.f32 %v2801, 0.59375
        %v2806 = vmul.f32 %v2802, 0.59375
        %v2807 = vadd.f32 %v2795, %v2803
        %v2808 = vadd.f32 %v2796, %v2804
        %v2809 = vadd.f32 %v2797, %v2805
        %v2810 = vadd.f32 %v2798, %v2806
        %v2811 = vld [vmem:[%s143 + $0x35] sm:$0x1]
        %v2812 = vld [vmem:[%s143 + $0x75] sm:$0x1]
        %v2813 = vld [vmem:[%s143 + $0xb5] sm:$0x1]
        %v2814 = vld [vmem:[%s143 + $0xf5] sm:$0x1]
        %v2815 = vmul.f32 %v2811, 0.59375
        %v2816 = vmul.f32 %v2812, 0.59375
        %v2817 = vmul.f32 %v2813, 0.59375
        %v2818 = vmul.f32 %v2814, 0.59375
        %v2819 = vadd.f32 %v2807, %v2815
        %v2820 = vadd.f32 %v2808, %v2816
        %v2821 = vadd.f32 %v2809, %v2817
        %v2822 = vadd.f32 %v2810, %v2818
        %v2823 = vld [vmem:[%s143 + $0x36] sm:$0x1]
        %v2824 = vld [vmem:[%s143 + $0x76] sm:$0x1]
        %v2825 = vld [vmem:[%s143 + $0xb6] sm:$0x1]
        %v2826 = vld [vmem:[%s143 + $0xf6] sm:$0x1]
        %v2827 = vmul.f32 %v2823, -0.09375
        %v2828 = vmul.f32 %v2824, -0.09375
        %v2829 = vmul.f32 %v2825, -0.09375
        %v2830 = vmul.f32 %v2826, -0.09375
        %v2831 = vadd.f32 %v2819, %v2827
        %v2832 = vadd.f32 %v2820, %v2828
        %v2833 = vadd.f32 %v2821, %v2829
        %v2834 = vadd.f32 %v2822, %v2830
        %v2835 = vpack.c.bf16 %v2831, %v2831
        %v2836 = vpack.c.bf16 %v2832, %v2832
        %v2837 = vpack.c.bf16 %v2833, %v2833
        %v2838 = vpack.c.bf16 %v2834, %v2834
        %v2843 = vunpack.c.l.b16 %v2835
        %v2844 = vunpack.c.l.b16 %v2836
        %v2845 = vunpack.c.l.b16 %v2837
        %v2846 = vunpack.c.l.b16 %v2838
        %v2847 = vrot.slane %v2844, 7
        %v2848 = vsel %vm229, %v2847, %v2843
        %v2849 = vrot.slane %v2845, 6
        %v2850 = vsel %vm232, %v2849, %v2848
        %v2851 = vrot.slane %v2846, 5
        %v2852 = vsel %vm235, %v2851, %v2850
        %v2853 = vpack.c.b16 %v2852, %v2852
        %v2855 = vsel %vm262, %v2853, 0
        %2857 = vmatpush.bf16.msra.mxu0 0
        %2858 = vmatpush.bf16.msra.mxu0 0
        %2859 = vmatpush.bf16.msra.mxu0 0
        %2860 = vmatpush.bf16.msra.mxu0 0
        %2861 = vmatpush.bf16.msra.mxu0 %v257
        %2862 = vmatpush.bf16.msra.mxu0 %v256
        %2863 = vmatpush.bf16.msra.mxu0 %v255
        %2864 = vmatpush.bf16.msra.mxu0 %v254
        %2865 = vmatmul.bf16.gmra.mxu0 %v2855
        %v2866 = vpop.f32.mrf.mxu0
        %v2867 = vadd.f32 0.0, %v2866
        %v2868 = vpop.f32.mrf.mxu0
        %2869 = vdwg.mxu0
        %v2871 = vrot.slane %v2867, 1
        %v2872 = vrot.slane %v2867, 2
        %v2873 = vrot.slane %v2867, 3
        %v2874 = vperm.slane %v2867, 0
        %v2875 = vperm.slane %v2871, 0
        %v2876 = vperm.slane %v2872, 0
        %v2877 = vperm.slane %v2873, 0
        %2878 = vrot.lane.b32.xlu0 %v2874, 64
        %v2879 = vpop.permute.xlu0 %2878
        %2880 = vrot.lane.b32.xlu0 %v2875, 64
        %v2881 = vpop.permute.xlu0 %2880
        %2882 = vrot.lane.b32.xlu0 %v2876, 64
        %v2883 = vpop.permute.xlu0 %2882
        %2884 = vrot.lane.b32.xlu0 %v2877, 64
        %v2885 = vpop.permute.xlu0 %2884
        %2890 = vst.msk [vmem:[%s164 + $0x6] sm:$0x1] %vm494, %v2879
        %2891 = vst.msk [vmem:[%s164 + $0xe] sm:$0x1] %vm494, %v2881
        %2892 = vst.msk [vmem:[%s164 + $0x16] sm:$0x1] %vm494, %v2883
        %2893 = vst.msk [vmem:[%s164 + $0x1e] sm:$0x1] %vm494, %v2885
        %v2894 = vld [vmem:[%s143 + $0x35] sm:$0x1]
        %v2895 = vld [vmem:[%s143 + $0x75] sm:$0x1]
        %v2896 = vld [vmem:[%s143 + $0xb5] sm:$0x1]
        %v2897 = vld [vmem:[%s143 + $0xf5] sm:$0x1]
        %v2898 = vmul.f32 %v2894, -0.09375
        %v2899 = vmul.f32 %v2895, -0.09375
        %v2900 = vmul.f32 %v2896, -0.09375
        %v2901 = vmul.f32 %v2897, -0.09375
        %v2902 = vld [vmem:[%s143 + $0x36] sm:$0x1]
        %v2903 = vld [vmem:[%s143 + $0x76] sm:$0x1]
        %v2904 = vld [vmem:[%s143 + $0xb6] sm:$0x1]
        %v2905 = vld [vmem:[%s143 + $0xf6] sm:$0x1]
        %v2906 = vmul.f32 %v2902, 0.59375
        %v2907 = vmul.f32 %v2903, 0.59375
        %v2908 = vmul.f32 %v2904, 0.59375
        %v2909 = vmul.f32 %v2905, 0.59375
        %v2910 = vadd.f32 %v2898, %v2906
        %v2911 = vadd.f32 %v2899, %v2907
        %v2912 = vadd.f32 %v2900, %v2908
        %v2913 = vadd.f32 %v2901, %v2909
        %v2914 = vld [vmem:[%s143 + $0x37] sm:$0x1]
        %v2915 = vld [vmem:[%s143 + $0x77] sm:$0x1]
        %v2916 = vld [vmem:[%s143 + $0xb7] sm:$0x1]
        %v2917 = vld [vmem:[%s143 + $0xf7] sm:$0x1]
        %v2918 = vmul.f32 %v2914, 0.59375
        %v2919 = vmul.f32 %v2915, 0.59375
        %v2920 = vmul.f32 %v2916, 0.59375
        %v2921 = vmul.f32 %v2917, 0.59375
        %v2922 = vadd.f32 %v2910, %v2918
        %v2923 = vadd.f32 %v2911, %v2919
        %v2924 = vadd.f32 %v2912, %v2920
        %v2925 = vadd.f32 %v2913, %v2921
        %v2926 = vld [vmem:[%s143 + $0x38] sm:$0x1]
        %v2927 = vld [vmem:[%s143 + $0x78] sm:$0x1]
        %v2928 = vld [vmem:[%s143 + $0xb8] sm:$0x1]
        %v2929 = vld [vmem:[%s143 + $0xf8] sm:$0x1]
        %v2930 = vmul.f32 %v2926, -0.09375
        %v2931 = vmul.f32 %v2927, -0.09375
        %v2932 = vmul.f32 %v2928, -0.09375
        %v2933 = vmul.f32 %v2929, -0.09375
        %v2934 = vadd.f32 %v2922, %v2930
        %v2935 = vadd.f32 %v2923, %v2931
        %v2936 = vadd.f32 %v2924, %v2932
        %v2937 = vadd.f32 %v2925, %v2933
        %v2938 = vpack.c.bf16 %v2934, %v2934
        %v2939 = vpack.c.bf16 %v2935, %v2935
        %v2940 = vpack.c.bf16 %v2936, %v2936
        %v2941 = vpack.c.bf16 %v2937, %v2937
        %v2946 = vunpack.c.l.b16 %v2938
        %v2947 = vunpack.c.l.b16 %v2939
        %v2948 = vunpack.c.l.b16 %v2940
        %v2949 = vunpack.c.l.b16 %v2941
        %v2950 = vrot.slane %v2947, 7
        %v2951 = vsel %vm229, %v2950, %v2946
        %v2952 = vrot.slane %v2948, 6
        %v2953 = vsel %vm232, %v2952, %v2951
        %v2954 = vrot.slane %v2949, 5
        %v2955 = vsel %vm235, %v2954, %v2953
        %v2956 = vpack.c.b16 %v2955, %v2955
        %v2958 = vsel %vm262, %v2956, 0
        %2960 = vmatpush.bf16.msra.mxu0 0
        %2961 = vmatpush.bf16.msra.mxu0 0
        %2962 = vmatpush.bf16.msra.mxu0 0
        %2963 = vmatpush.bf16.msra.mxu0 0
        %2964 = vmatpush.bf16.msra.mxu0 %v257
        %2965 = vmatpush.bf16.msra.mxu0 %v256
        %2966 = vmatpush.bf16.msra.mxu0 %v255
        %2967 = vmatpush.bf16.msra.mxu0 %v254
        %2968 = vmatmul.bf16.gmra.mxu0 %v2958
        %v2969 = vpop.f32.mrf.mxu0
        %v2970 = vadd.f32 0.0, %v2969
        %v2971 = vpop.f32.mrf.mxu0
        %2972 = vdwg.mxu0
        %v2974 = vrot.slane %v2970, 1
        %v2975 = vrot.slane %v2970, 2
        %v2976 = vrot.slane %v2970, 3
        %v2977 = vperm.slane %v2970, 0
        %v2978 = vperm.slane %v2974, 0
        %v2979 = vperm.slane %v2975, 0
        %v2980 = vperm.slane %v2976, 0
        %2981 = vrot.lane.b32.xlu0 %v2977, 96
        %v2982 = vpop.permute.xlu0 %2981
        %2983 = vrot.lane.b32.xlu0 %v2978, 96
        %v2984 = vpop.permute.xlu0 %2983
        %2985 = vrot.lane.b32.xlu0 %v2979, 96
        %v2986 = vpop.permute.xlu0 %2985
        %2987 = vrot.lane.b32.xlu0 %v2980, 96
        %v2988 = vpop.permute.xlu0 %2987
        %2993 = vst.msk [vmem:[%s164 + $0x6] sm:$0x1] %vm598, %v2982
        %2994 = vst.msk [vmem:[%s164 + $0xe] sm:$0x1] %vm598, %v2984
        %2995 = vst.msk [vmem:[%s164 + $0x16] sm:$0x1] %vm598, %v2986
        %2996 = vst.msk [vmem:[%s164 + $0x1e] sm:$0x1] %vm598, %v2988
        %v2997 = vld [vmem:[%s143 + $0x37] sm:$0x1]
        %v2998 = vld [vmem:[%s143 + $0x77] sm:$0x1]
        %v2999 = vld [vmem:[%s143 + $0xb7] sm:$0x1]
        %v3000 = vld [vmem:[%s143 + $0xf7] sm:$0x1]
        %v3001 = vmul.f32 %v2997, -0.09375
        %v3002 = vmul.f32 %v2998, -0.09375
        %v3003 = vmul.f32 %v2999, -0.09375
        %v3004 = vmul.f32 %v3000, -0.09375
        %v3005 = vld [vmem:[%s143 + $0x38] sm:$0x1]
        %v3006 = vld [vmem:[%s143 + $0x78] sm:$0x1]
        %v3007 = vld [vmem:[%s143 + $0xb8] sm:$0x1]
        %v3008 = vld [vmem:[%s143 + $0xf8] sm:$0x1]
        %v3009 = vmul.f32 %v3005, 0.59375
        %v3010 = vmul.f32 %v3006, 0.59375
        %v3011 = vmul.f32 %v3007, 0.59375
        %v3012 = vmul.f32 %v3008, 0.59375
        %v3013 = vadd.f32 %v3001, %v3009
        %v3014 = vadd.f32 %v3002, %v3010
        %v3015 = vadd.f32 %v3003, %v3011
        %v3016 = vadd.f32 %v3004, %v3012
        %v3017 = vld [vmem:[%s143 + $0x39] sm:$0x1]
        %v3018 = vld [vmem:[%s143 + $0x79] sm:$0x1]
        %v3019 = vld [vmem:[%s143 + $0xb9] sm:$0x1]
        %v3020 = vld [vmem:[%s143 + $0xf9] sm:$0x1]
        %v3021 = vmul.f32 %v3017, 0.59375
        %v3022 = vmul.f32 %v3018, 0.59375
        %v3023 = vmul.f32 %v3019, 0.59375
        %v3024 = vmul.f32 %v3020, 0.59375
        %v3025 = vadd.f32 %v3013, %v3021
        %v3026 = vadd.f32 %v3014, %v3022
        %v3027 = vadd.f32 %v3015, %v3023
        %v3028 = vadd.f32 %v3016, %v3024
        %v3029 = vld [vmem:[%s143 + $0x3a] sm:$0x1]
        %v3030 = vld [vmem:[%s143 + $0x7a] sm:$0x1]
        %v3031 = vld [vmem:[%s143 + $0xba] sm:$0x1]
        %v3032 = vld [vmem:[%s143 + $0xfa] sm:$0x1]
        %v3033 = vmul.f32 %v3029, -0.09375
        %v3034 = vmul.f32 %v3030, -0.09375
        %v3035 = vmul.f32 %v3031, -0.09375
        %v3036 = vmul.f32 %v3032, -0.09375
        %v3037 = vadd.f32 %v3025, %v3033
        %v3038 = vadd.f32 %v3026, %v3034
        %v3039 = vadd.f32 %v3027, %v3035
        %v3040 = vadd.f32 %v3028, %v3036
        %v3041 = vpack.c.bf16 %v3037, %v3037
        %v3042 = vpack.c.bf16 %v3038, %v3038
        %v3043 = vpack.c.bf16 %v3039, %v3039
        %v3044 = vpack.c.bf16 %v3040, %v3040
        %v3049 = vunpack.c.l.b16 %v3041
        %v3050 = vunpack.c.l.b16 %v3042
        %v3051 = vunpack.c.l.b16 %v3043
        %v3052 = vunpack.c.l.b16 %v3044
        %v3053 = vrot.slane %v3050, 7
        %v3054 = vsel %vm229, %v3053, %v3049
        %v3055 = vrot.slane %v3051, 6
        %v3056 = vsel %vm232, %v3055, %v3054
        %v3057 = vrot.slane %v3052, 5
        %v3058 = vsel %vm235, %v3057, %v3056
        %v3059 = vpack.c.b16 %v3058, %v3058
        %v3061 = vsel %vm262, %v3059, 0
        %3063 = vmatpush.bf16.msra.mxu0 0
        %3064 = vmatpush.bf16.msra.mxu0 0
        %3065 = vmatpush.bf16.msra.mxu0 0
        %3066 = vmatpush.bf16.msra.mxu0 0
        %3067 = vmatpush.bf16.msra.mxu0 %v257
        %3068 = vmatpush.bf16.msra.mxu0 %v256
        %3069 = vmatpush.bf16.msra.mxu0 %v255
        %3070 = vmatpush.bf16.msra.mxu0 %v254
        %3071 = vmatmul.bf16.gmra.mxu0 %v3061
        %v3072 = vpop.f32.mrf.mxu0
        %v3073 = vadd.f32 0.0, %v3072
        %v3074 = vpop.f32.mrf.mxu0
        %3075 = vdwg.mxu0
        %v3077 = vrot.slane %v3073, 1
        %v3078 = vrot.slane %v3073, 2
        %v3079 = vrot.slane %v3073, 3
        %3083 = vst.msk [vmem:[%s164 + $0x7] sm:$0x1] %vm286, %v3073
        %3084 = vst.msk [vmem:[%s164 + $0xf] sm:$0x1] %vm286, %v3077
        %3085 = vst.msk [vmem:[%s164 + $0x17] sm:$0x1] %vm286, %v3078
        %3086 = vst.msk [vmem:[%s164 + $0x1f] sm:$0x1] %vm286, %v3079
        %v3087 = vld [vmem:[%s143 + $0x39] sm:$0x1]
        %v3088 = vld [vmem:[%s143 + $0x79] sm:$0x1]
        %v3089 = vld [vmem:[%s143 + $0xb9] sm:$0x1]
        %v3090 = vld [vmem:[%s143 + $0xf9] sm:$0x1]
        %v3091 = vmul.f32 %v3087, -0.09375
        %v3092 = vmul.f32 %v3088, -0.09375
        %v3093 = vmul.f32 %v3089, -0.09375
        %v3094 = vmul.f32 %v3090, -0.09375
        %v3095 = vld [vmem:[%s143 + $0x3a] sm:$0x1]
        %v3096 = vld [vmem:[%s143 + $0x7a] sm:$0x1]
        %v3097 = vld [vmem:[%s143 + $0xba] sm:$0x1]
        %v3098 = vld [vmem:[%s143 + $0xfa] sm:$0x1]
        %v3099 = vmul.f32 %v3095, 0.59375
        %v3100 = vmul.f32 %v3096, 0.59375
        %v3101 = vmul.f32 %v3097, 0.59375
        %v3102 = vmul.f32 %v3098, 0.59375
        %v3103 = vadd.f32 %v3091, %v3099
        %v3104 = vadd.f32 %v3092, %v3100
        %v3105 = vadd.f32 %v3093, %v3101
        %v3106 = vadd.f32 %v3094, %v3102
        %v3107 = vld [vmem:[%s143 + $0x3b] sm:$0x1]
        %v3108 = vld [vmem:[%s143 + $0x7b] sm:$0x1]
        %v3109 = vld [vmem:[%s143 + $0xbb] sm:$0x1]
        %v3110 = vld [vmem:[%s143 + $0xfb] sm:$0x1]
        %v3111 = vmul.f32 %v3107, 0.59375
        %v3112 = vmul.f32 %v3108, 0.59375
        %v3113 = vmul.f32 %v3109, 0.59375
        %v3114 = vmul.f32 %v3110, 0.59375
        %v3115 = vadd.f32 %v3103, %v3111
        %v3116 = vadd.f32 %v3104, %v3112
        %v3117 = vadd.f32 %v3105, %v3113
        %v3118 = vadd.f32 %v3106, %v3114
        %v3119 = vld [vmem:[%s143 + $0x3c] sm:$0x1]
        %v3120 = vld [vmem:[%s143 + $0x7c] sm:$0x1]
        %v3121 = vld [vmem:[%s143 + $0xbc] sm:$0x1]
        %v3122 = vld [vmem:[%s143 + $0xfc] sm:$0x1]
        %v3123 = vmul.f32 %v3119, -0.09375
        %v3124 = vmul.f32 %v3120, -0.09375
        %v3125 = vmul.f32 %v3121, -0.09375
        %v3126 = vmul.f32 %v3122, -0.09375
        %v3127 = vadd.f32 %v3115, %v3123
        %v3128 = vadd.f32 %v3116, %v3124
        %v3129 = vadd.f32 %v3117, %v3125
        %v3130 = vadd.f32 %v3118, %v3126
        %v3131 = vpack.c.bf16 %v3127, %v3127
        %v3132 = vpack.c.bf16 %v3128, %v3128
        %v3133 = vpack.c.bf16 %v3129, %v3129
        %v3134 = vpack.c.bf16 %v3130, %v3130
        %v3139 = vunpack.c.l.b16 %v3131
        %v3140 = vunpack.c.l.b16 %v3132
        %v3141 = vunpack.c.l.b16 %v3133
        %v3142 = vunpack.c.l.b16 %v3134
        %v3143 = vrot.slane %v3140, 7
        %v3144 = vsel %vm229, %v3143, %v3139
        %v3145 = vrot.slane %v3141, 6
        %v3146 = vsel %vm232, %v3145, %v3144
        %v3147 = vrot.slane %v3142, 5
        %v3148 = vsel %vm235, %v3147, %v3146
        %v3149 = vpack.c.b16 %v3148, %v3148
        %v3151 = vsel %vm262, %v3149, 0
        %3153 = vmatpush.bf16.msra.mxu0 0
        %3154 = vmatpush.bf16.msra.mxu0 0
        %3155 = vmatpush.bf16.msra.mxu0 0
        %3156 = vmatpush.bf16.msra.mxu0 0
        %3157 = vmatpush.bf16.msra.mxu0 %v257
        %3158 = vmatpush.bf16.msra.mxu0 %v256
        %3159 = vmatpush.bf16.msra.mxu0 %v255
        %3160 = vmatpush.bf16.msra.mxu0 %v254
        %3161 = vmatmul.bf16.gmra.mxu0 %v3151
        %v3162 = vpop.f32.mrf.mxu0
        %v3163 = vadd.f32 0.0, %v3162
        %v3164 = vpop.f32.mrf.mxu0
        %3165 = vdwg.mxu0
        %v3167 = vrot.slane %v3163, 1
        %v3168 = vrot.slane %v3163, 2
        %v3169 = vrot.slane %v3163, 3
        %v3170 = vperm.slane %v3163, 0
        %v3171 = vperm.slane %v3167, 0
        %v3172 = vperm.slane %v3168, 0
        %v3173 = vperm.slane %v3169, 0
        %3174 = vrot.lane.b32.xlu0 %v3170, 32
        %v3175 = vpop.permute.xlu0 %3174
        %3176 = vrot.lane.b32.xlu0 %v3171, 32
        %v3177 = vpop.permute.xlu0 %3176
        %3178 = vrot.lane.b32.xlu0 %v3172, 32
        %v3179 = vpop.permute.xlu0 %3178
        %3180 = vrot.lane.b32.xlu0 %v3173, 32
        %v3181 = vpop.permute.xlu0 %3180
        %3186 = vst.msk [vmem:[%s164 + $0x7] sm:$0x1] %vm390, %v3175
        %3187 = vst.msk [vmem:[%s164 + $0xf] sm:$0x1] %vm390, %v3177
        %3188 = vst.msk [vmem:[%s164 + $0x17] sm:$0x1] %vm390, %v3179
        %3189 = vst.msk [vmem:[%s164 + $0x1f] sm:$0x1] %vm390, %v3181
        %v3190 = vld [vmem:[%s143 + $0x3b] sm:$0x1]
        %v3191 = vld [vmem:[%s143 + $0x7b] sm:$0x1]
        %v3192 = vld [vmem:[%s143 + $0xbb] sm:$0x1]
        %v3193 = vld [vmem:[%s143 + $0xfb] sm:$0x1]
        %v3194 = vmul.f32 %v3190, -0.09375
        %v3195 = vmul.f32 %v3191, -0.09375
        %v3196 = vmul.f32 %v3192, -0.09375
        %v3197 = vmul.f32 %v3193, -0.09375
        %v3198 = vld [vmem:[%s143 + $0x3c] sm:$0x1]
        %v3199 = vld [vmem:[%s143 + $0x7c] sm:$0x1]
        %v3200 = vld [vmem:[%s143 + $0xbc] sm:$0x1]
        %v3201 = vld [vmem:[%s143 + $0xfc] sm:$0x1]
        %v3202 = vmul.f32 %v3198, 0.59375
        %v3203 = vmul.f32 %v3199, 0.59375
        %v3204 = vmul.f32 %v3200, 0.59375
        %v3205 = vmul.f32 %v3201, 0.59375
        %v3206 = vadd.f32 %v3194, %v3202
        %v3207 = vadd.f32 %v3195, %v3203
        %v3208 = vadd.f32 %v3196, %v3204
        %v3209 = vadd.f32 %v3197, %v3205
        %v3210 = vld [vmem:[%s143 + $0x3d] sm:$0x1]
        %v3211 = vld [vmem:[%s143 + $0x7d] sm:$0x1]
        %v3212 = vld [vmem:[%s143 + $0xbd] sm:$0x1]
        %v3213 = vld [vmem:[%s143 + $0xfd] sm:$0x1]
        %v3214 = vmul.f32 %v3210, 0.59375
        %v3215 = vmul.f32 %v3211, 0.59375
        %v3216 = vmul.f32 %v3212, 0.59375
        %v3217 = vmul.f32 %v3213, 0.59375
        %v3218 = vadd.f32 %v3206, %v3214
        %v3219 = vadd.f32 %v3207, %v3215
        %v3220 = vadd.f32 %v3208, %v3216
        %v3221 = vadd.f32 %v3209, %v3217
        %v3222 = vld [vmem:[%s143 + $0x3e] sm:$0x1]
        %v3223 = vld [vmem:[%s143 + $0x7e] sm:$0x1]
        %v3224 = vld [vmem:[%s143 + $0xbe] sm:$0x1]
        %v3225 = vld [vmem:[%s143 + $0xfe] sm:$0x1]
        %v3226 = vmul.f32 %v3222, -0.09375
        %v3227 = vmul.f32 %v3223, -0.09375
        %v3228 = vmul.f32 %v3224, -0.09375
        %v3229 = vmul.f32 %v3225, -0.09375
        %v3230 = vadd.f32 %v3218, %v3226
        %v3231 = vadd.f32 %v3219, %v3227
        %v3232 = vadd.f32 %v3220, %v3228
        %v3233 = vadd.f32 %v3221, %v3229
        %v3234 = vpack.c.bf16 %v3230, %v3230
        %v3235 = vpack.c.bf16 %v3231, %v3231
        %v3236 = vpack.c.bf16 %v3232, %v3232
        %v3237 = vpack.c.bf16 %v3233, %v3233
        %v3242 = vunpack.c.l.b16 %v3234
        %v3243 = vunpack.c.l.b16 %v3235
        %v3244 = vunpack.c.l.b16 %v3236
        %v3245 = vunpack.c.l.b16 %v3237
        %v3246 = vrot.slane %v3243, 7
        %v3247 = vsel %vm229, %v3246, %v3242
        %v3248 = vrot.slane %v3244, 6
        %v3249 = vsel %vm232, %v3248, %v3247
        %v3250 = vrot.slane %v3245, 5
        %v3251 = vsel %vm235, %v3250, %v3249
        %v3252 = vpack.c.b16 %v3251, %v3251
        %v3254 = vsel %vm262, %v3252, 0
        %3256 = vmatpush.bf16.msra.mxu0 0
        %3257 = vmatpush.bf16.msra.mxu0 0
        %3258 = vmatpush.bf16.msra.mxu0 0
        %3259 = vmatpush.bf16.msra.mxu0 0
        %3260 = vmatpush.bf16.msra.mxu0 %v257
        %3261 = vmatpush.bf16.msra.mxu0 %v256
        %3262 = vmatpush.bf16.msra.mxu0 %v255
        %3263 = vmatpush.bf16.msra.mxu0 %v254
        %3264 = vmatmul.bf16.gmra.mxu0 %v3254
        %v3265 = vpop.f32.mrf.mxu0
        %v3266 = vadd.f32 0.0, %v3265
        %v3267 = vpop.f32.mrf.mxu0
        %3268 = vdwg.mxu0
        %v3270 = vrot.slane %v3266, 1
        %v3271 = vrot.slane %v3266, 2
        %v3272 = vrot.slane %v3266, 3
        %v3273 = vperm.slane %v3266, 0
        %v3274 = vperm.slane %v3270, 0
        %v3275 = vperm.slane %v3271, 0
        %v3276 = vperm.slane %v3272, 0
        %3277 = vrot.lane.b32.xlu0 %v3273, 64
        %v3278 = vpop.permute.xlu0 %3277
        %3279 = vrot.lane.b32.xlu0 %v3274, 64
        %v3280 = vpop.permute.xlu0 %3279
        %3281 = vrot.lane.b32.xlu0 %v3275, 64
        %v3282 = vpop.permute.xlu0 %3281
        %3283 = vrot.lane.b32.xlu0 %v3276, 64
        %v3284 = vpop.permute.xlu0 %3283
        %3289 = vst.msk [vmem:[%s164 + $0x7] sm:$0x1] %vm494, %v3278
        %3290 = vst.msk [vmem:[%s164 + $0xf] sm:$0x1] %vm494, %v3280
        %3291 = vst.msk [vmem:[%s164 + $0x17] sm:$0x1] %vm494, %v3282
        %3292 = vst.msk [vmem:[%s164 + $0x1f] sm:$0x1] %vm494, %v3284
        %v3293 = vld [vmem:[%s143 + $0x3d] sm:$0x1]
        %v3294 = vld [vmem:[%s143 + $0x7d] sm:$0x1]
        %v3295 = vld [vmem:[%s143 + $0xbd] sm:$0x1]
        %v3296 = vld [vmem:[%s143 + $0xfd] sm:$0x1]
        %v3297 = vmul.f32 %v3293, -0.09375
        %v3298 = vmul.f32 %v3294, -0.09375
        %v3299 = vmul.f32 %v3295, -0.09375
        %v3300 = vmul.f32 %v3296, -0.09375
        %v3301 = vld [vmem:[%s143 + $0x3e] sm:$0x1]
        %v3302 = vld [vmem:[%s143 + $0x7e] sm:$0x1]
        %v3303 = vld [vmem:[%s143 + $0xbe] sm:$0x1]
        %v3304 = vld [vmem:[%s143 + $0xfe] sm:$0x1]
        %v3305 = vmul.f32 %v3301, 0.59375
        %v3306 = vmul.f32 %v3302, 0.59375
        %v3307 = vmul.f32 %v3303, 0.59375
        %v3308 = vmul.f32 %v3304, 0.59375
        %v3309 = vadd.f32 %v3297, %v3305
        %v3310 = vadd.f32 %v3298, %v3306
        %v3311 = vadd.f32 %v3299, %v3307
        %v3312 = vadd.f32 %v3300, %v3308
        %v3313 = vld [vmem:[%s143 + $0x3f] sm:$0x1]
        %v3314 = vld [vmem:[%s143 + $0x7f] sm:$0x1]
        %v3315 = vld [vmem:[%s143 + $0xbf] sm:$0x1]
        %v3316 = vld [vmem:[%s143 + $0xff] sm:$0x1]
        %v3317 = vmul.f32 %v3313, 0.59375
        %v3318 = vmul.f32 %v3314, 0.59375
        %v3319 = vmul.f32 %v3315, 0.59375
        %v3320 = vmul.f32 %v3316, 0.59375
        %v3321 = vadd.f32 %v3309, %v3317
        %v3322 = vadd.f32 %v3310, %v3318
        %v3323 = vadd.f32 %v3311, %v3319
        %v3324 = vadd.f32 %v3312, %v3320
        %v3325 = vmul.f32 %v3313, -0.09375
        %v3326 = vmul.f32 %v3314, -0.09375
        %v3327 = vmul.f32 %v3315, -0.09375
        %v3328 = vmul.f32 %v3316, -0.09375
        %v3329 = vadd.f32 %v3321, %v3325
        %v3330 = vadd.f32 %v3322, %v3326
        %v3331 = vadd.f32 %v3323, %v3327
        %v3332 = vadd.f32 %v3324, %v3328
        %v3333 = vpack.c.bf16 %v3329, %v3329
        %v3334 = vpack.c.bf16 %v3330, %v3330
        %v3335 = vpack.c.bf16 %v3331, %v3331
        %v3336 = vpack.c.bf16 %v3332, %v3332
        %v3341 = vunpack.c.l.b16 %v3333
        %v3342 = vunpack.c.l.b16 %v3334
        %v3343 = vunpack.c.l.b16 %v3335
        %v3344 = vunpack.c.l.b16 %v3336
        %v3345 = vrot.slane %v3342, 7
        %v3346 = vsel %vm229, %v3345, %v3341
        %v3347 = vrot.slane %v3343, 6
        %v3348 = vsel %vm232, %v3347, %v3346
        %v3349 = vrot.slane %v3344, 5
        %v3350 = vsel %vm235, %v3349, %v3348
        %v3351 = vpack.c.b16 %v3350, %v3350
        %v3353 = vsel %vm262, %v3351, 0
        %3355 = vmatpush.bf16.msra.mxu0 0
        %3356 = vmatpush.bf16.msra.mxu0 0
        %3357 = vmatpush.bf16.msra.mxu0 0
        %3358 = vmatpush.bf16.msra.mxu0 0
        %3359 = vmatpush.bf16.msra.mxu0 %v257
        %3360 = vmatpush.bf16.msra.mxu0 %v256
        %3361 = vmatpush.bf16.msra.mxu0 %v255
        %3362 = vmatpush.bf16.msra.mxu0 %v254
        %3363 = vmatmul.bf16.gmra.mxu0 %v3353
        %v3364 = vpop.f32.mrf.mxu0
        %v3365 = vadd.f32 0.0, %v3364
        %v3366 = vpop.f32.mrf.mxu0
        %3367 = vdwg.mxu0
        %v3369 = vrot.slane %v3365, 1
        %v3370 = vrot.slane %v3365, 2
        %v3371 = vrot.slane %v3365, 3
        %v3372 = vperm.slane %v3365, 0
        %v3373 = vperm.slane %v3369, 0
        %v3374 = vperm.slane %v3370, 0
        %v3375 = vperm.slane %v3371, 0
        %3376 = vrot.lane.b32.xlu0 %v3372, 96
        %v3377 = vpop.permute.xlu0 %3376
        %3378 = vrot.lane.b32.xlu0 %v3373, 96
        %v3379 = vpop.permute.xlu0 %3378
        %3380 = vrot.lane.b32.xlu0 %v3374, 96
        %v3381 = vpop.permute.xlu0 %3380
        %3382 = vrot.lane.b32.xlu0 %v3375, 96
        %v3383 = vpop.permute.xlu0 %3382
        %3388 = vst.msk [vmem:[%s164 + $0x7] sm:$0x1] %vm598, %v3377
        %3389 = vst.msk [vmem:[%s164 + $0xf] sm:$0x1] %vm598, %v3379
        %3390 = vst.msk [vmem:[%s164 + $0x17] sm:$0x1] %vm598, %v3381
        %3391 = vst.msk [vmem:[%s164 + $0x1f] sm:$0x1] %vm598, %v3383
        %s3392 = sand.u32 %s74, 1
        %s3393 = scalar_lea.sflag [#allocation4], %s3392
        %s3394 = sand.u32 %s74, 1
        %s3395 = smul.addr %s3394, 32
        %s3396 = scalar_lea.vmem [#allocation5], %s3395
        // Predicated region
        $region33: #{tpu_custom_call.1} parent=27 // pred_check
          %p3397 = pneg %p84
        $region34: #{tpu_custom_call.1} parent=27 // pred_check_branch
          %3399 = sbr.rel (%p3397) target = $region36
        $region35: #{tpu_custom_call.1} parent=27 // pred_region
          %s3400 = smul.u32 4, %s19
          %3402 = vsyncadd %s3393, 0
          %s3403 = smul.addr %s3400, 8
          %s3404 = scalar_lea.hbm %s2, %s3403
          %s3405 = sshll.u32 %s3396, 4
          %s3406 = int_to_ptr.vmem [resolvable:$true] %s3405
          %s3407 = sshll.u32 %s3404, 4
          %s3408 = int_to_ptr.hbm [resolvable:$true] %s3407
          %3413 = dma.vmem_to_hbm [thread:$0]  %s3406, 512, %s3408, %s3393, 128, 128, 8
        $region36: #{tpu_custom_call.1} parent=27 // pred_fallthru
          _
      $region28: #{tpu_custom_call.1} parent=5 // pred_fallthru
        _
      %p3414 = scmp.le.s32.totalorder 2, %s14
      // Predicated region
      $region37: #{tpu_custom_call.1} parent=5 // pred_check
        %p3415 = pneg %p3414
      $region38: #{tpu_custom_call.1} parent=5 // pred_check_branch
        %3417 = sbr.rel (%p3415) target = $region40
      $region39: #{tpu_custom_call.1} parent=5 // pred_region
        %s3418 = ssub.s32 %s14, 2
        // Predicated region
        $region41: #{tpu_custom_call.1} parent=39 // pred_check
          %p3419 = pneg %p90
        $region42: #{tpu_custom_call.1} parent=39 // pred_check_branch
          %3421 = sbr.rel (%p3419) target = $region44
        $region43: #{tpu_custom_call.1} parent=39 // pred_region
          %s3422 = sand.u32 %s75, 1
          %s3423 = scalar_lea.sflag [#allocation4], %s3422
          %s3424 = sand.u32 %s75, 1
          %s3425 = smul.addr %s3424, 32
          %s3426 = scalar_lea.vmem [#allocation5], %s3425
          %3428 = dma.done %s3423, 512
        $region44: #{tpu_custom_call.1} parent=39 // pred_fallthru
          _
      $region40: #{tpu_custom_call.1} parent=5 // pred_fallthru
        _
    $region6: #{tpu_custom_call.1} parent=1 // loop_footer
      %s18 = sadd.s32 1, %s14
    $region7: #{tpu_custom_call.1} parent=1 // loop_footer_branch
      %13 = sbr.rel target = $region3
    $region8: #{tpu_custom_call.1} parent=1 // loop_exit
      _
    %3429 = vsyncpa [#allocation3], 1
    %s3430 = scalar_lea.sflag [#allocation3], 1
    %3431 = vsyncpa %s3430, 1
    %3432 = vsyncpa [#allocation4], 1
    %s3433 = scalar_lea.sflag [#allocation4], 1
    %3434 = vsyncpa %s3433, 1

</llo_original>
